<compile_context>
chip_gen: v7x
topology: tpu7x:2x2x1
jax: 0.10.0
libtpu: 0.0.40
codegen_flags: <defaults>
</compile_context>

<pallas_src>
import jax
import jax.numpy as jnp
from jax.experimental import pallas as pl
from jax.experimental.pallas import tpu as pltpu

# ---- small synthetic BERT config (BertModel.from_pretrained replaced by
# ---- deterministically-initialized weights of the same structure) ----
VOCAB = 64
TYPE_VOCAB = 2
MAX_POS = 16
HIDDEN = 32
N_HEADS = 2
HEAD_DIM = HIDDEN // N_HEADS
INTERMEDIATE = 64
N_LAYERS = 2
NUM_LABELS = 6          # len(mlb.classes_) in the reference script (synthetic)
LN_EPS = 1e-12


# --------------------------- fused Pallas kernel -----------------------------
def _bert_fused_kernel(emb_ref, bias_ref, embg_ref, embb_ref,
                       wqkv_ref, bqkv_ref, wo_ref, bo_ref, ln1g_ref, ln1b_ref,
                       w1_ref, b1_ref, w2_ref, b2_ref, ln2g_ref, ln2b_ref,
                       pw_ref, pb_ref, cw_ref, cb_ref,
                       out_ref):
    """One batch element per grid step: embeddings-LN -> N encoder layers ->
    pooler -> classifier -> sigmoid, all VMEM-resident."""

    def ln(x, g, b):                     # LayerNorm in f32 (VPU/XLU work)
        mean = jnp.mean(x, axis=-1, keepdims=True)
        xc = x - mean
        var = jnp.mean(xc * xc, axis=-1, keepdims=True)
        return xc * jax.lax.rsqrt(var + LN_EPS) * g + b

    def mm(a, w):                        # bf16 MXU operands, f32 accumulation
        return jnp.dot(a.astype(jnp.bfloat16), w.astype(jnp.bfloat16),
                       preferred_element_type=jnp.float32)

    # embedding LayerNorm (no fake zero residual)
    x = ln(emb_ref[0], embg_ref[...], embb_ref[...])              # (S, H) f32
    bias = bias_ref[0]                                            # (1, S) key-mask bias
    scale = 1.0 / (HEAD_DIM ** 0.5)

    for l in range(N_LAYERS):                                     # static unroll
        # ---- self-attention: fused QKV projection (one MXU pass, N=3H) ----
        qkv = mm(x, wqkv_ref[l]) + bqkv_ref[l]                    # (S, 3H)
        wo_l = wo_ref[l]                                          # (H, H)
        attn = None
        for h in range(N_HEADS):
            q = qkv[:, h * HEAD_DIM:(h + 1) * HEAD_DIM]
            k = qkv[:, HIDDEN + h * HEAD_DIM:HIDDEN + (h + 1) * HEAD_DIM]
            v = qkv[:, 2 * HIDDEN + h * HEAD_DIM:2 * HIDDEN + (h + 1) * HEAD_DIM]
            # q @ k^T via dot_general contracting last dims (no explicit transpose)
            s = jax.lax.dot_general(
                q.astype(jnp.bfloat16), k.astype(jnp.bfloat16),
                (((1,), (1,)), ((), ())),
                preferred_element_type=jnp.float32) * scale       # (S, S)
            s = s + bias                                          # broadcast over queries
            s = s - jnp.max(s, axis=-1, keepdims=True)
            p = jnp.exp(s)
            p = p * pl.reciprocal(jnp.sum(p, axis=-1, keepdims=True), approx=True)
            ctx_h = mm(p, v)                                      # (S, Dh)
            # fold the per-head slice of the output projection (avoids lane concat)
            contrib = mm(ctx_h, wo_l[h * HEAD_DIM:(h + 1) * HEAD_DIM, :])
            attn = contrib if attn is None else attn + contrib
        # fused bias + residual + LayerNorm
        x = ln(attn + bo_ref[l] + x, ln1g_ref[l], ln1b_ref[l])

        # ---- feed-forward: matmul + bias + GELU fused, then matmul + res + LN ----
        h_mid = mm(x, w1_ref[l]) + b1_ref[l]
        # TODO(synk): HF BERT default is exact (erf) GELU; tanh approximation used here.
        h_mid = 0.5 * h_mid * (1.0 + jnp.tanh(
            0.7978845608028654 * (h_mid + 0.044715 * h_mid * h_mid * h_mid)))
        ffn = mm(h_mid, w2_ref[l]) + b2_ref[l]
        x = ln(ffn + x, ln2g_ref[l], ln2b_ref[l])

    # ---- pooler ([CLS] token) + classifier head (Dropout(0.3) is identity at inference) ----
    cls = x[0:1, :]                                               # (1, H)
    pooled = jnp.tanh(mm(cls, pw_ref[...]) + pb_ref[...])
    logits = mm(pooled, cw_ref[...]) + cb_ref[...]                # (1, NUM_LABELS)
    out_ref[0] = 1.0 / (1.0 + jnp.exp(-logits))


def _full_spec(arr):
    """Whole-array VMEM block, same block for every grid step (DMA'd once)."""
    zeros = (0,) * arr.ndim
    return pl.BlockSpec(arr.shape, lambda i, _z=zeros: _z)


# --------------------------- parameters --------------------------------------
def init_params(key):
    def nrm(k, shape, scale=0.02):
        return scale * jax.random.normal(k, shape, jnp.float32)

    keys = iter(jax.random.split(key, 128))
    p = {
        "word_emb": nrm(next(keys), (VOCAB, HIDDEN)),
        "pos_emb": nrm(next(keys), (MAX_POS, HIDDEN)),
        "type_emb": nrm(next(keys), (TYPE_VOCAB, HIDDEN)),
        "emb_ln_g": jnp.ones((HIDDEN,), jnp.float32),
        "emb_ln_b": jnp.zeros((HIDDEN,), jnp.float32),
        "layers": [],
        "pool_w": nrm(next(keys), (HIDDEN, HIDDEN)),
        "pool_b": nrm(next(keys), (HIDDEN,)),
        "cls_w": nrm(next(keys), (HIDDEN, NUM_LABELS)),
        "cls_b": nrm(next(keys), (NUM_LABELS,)),
    }
    for _ in range(N_LAYERS):
        lp = {
            "wq": nrm(next(keys), (HIDDEN, HIDDEN)), "bq": nrm(next(keys), (HIDDEN,)),
            "wk": nrm(next(keys), (HIDDEN, HIDDEN)), "bk": nrm(next(keys), (HIDDEN,)),
            "wv": nrm(next(keys), (HIDDEN, HIDDEN)), "bv": nrm(next(keys), (HIDDEN,)),
            "wo": nrm(next(keys), (HIDDEN, HIDDEN)), "bo": nrm(next(keys), (HIDDEN,)),
            "ln1_g": jnp.ones((HIDDEN,), jnp.float32), "ln1_b": jnp.zeros((HIDDEN,), jnp.float32),
            "w1": nrm(next(keys), (HIDDEN, INTERMEDIATE)), "b1": nrm(next(keys), (INTERMEDIATE,)),
            "w2": nrm(next(keys), (INTERMEDIATE, HIDDEN)), "b2": nrm(next(keys), (HIDDEN,)),
            "ln2_g": jnp.ones((HIDDEN,), jnp.float32), "ln2_b": jnp.zeros((HIDDEN,), jnp.float32),
        }
        p["layers"].append(lp)
    return p


# --------------------------- forward (single Pallas call) ---------------------
def bert_multilabel_forward(params, input_ids, attention_mask):
    b, s = input_ids.shape

    # embedding lookups are gathers (glue in plain JAX); the entire transformer,
    # pooler and classifier run inside ONE pallas_call.
    tok = params["word_emb"][input_ids]                           # (B, S, H)
    pos = params["pos_emb"][jnp.arange(s)][None, :, :]
    typ = params["type_emb"][0][None, None, :]                    # token_type_ids == 0
    emb = tok + pos + typ                                         # (B, S, H)

    # additive key mask, shared across heads inside the kernel (no jnp.repeat)
    mask_bias = ((1.0 - attention_mask.astype(jnp.float32)) * -10000.0)[:, None, :]  # (B,1,S)

    stack = lambda name: jnp.stack([lp[name] for lp in params["layers"]])
    wqkv = jnp.stack([jnp.concatenate([lp["wq"], lp["wk"], lp["wv"]], axis=1)
                      for lp in params["layers"]])                # (L, H, 3H)
    bqkv = jnp.stack([jnp.concatenate([lp["bq"], lp["bk"], lp["bv"]])
                      for lp in params["layers"]])[:, None, :]    # (L, 1, 3H)
    wo = stack("wo")                                              # (L, H, H)
    bo = stack("bo")[:, None, :]                                  # (L, 1, H)
    ln1g = stack("ln1_g")[:, None, :]
    ln1b = stack("ln1_b")[:, None, :]
    w1 = stack("w1")                                              # (L, H, I)
    b1 = stack("b1")[:, None, :]                                  # (L, 1, I)
    w2 = stack("w2")                                              # (L, I, H)
    b2 = stack("b2")[:, None, :]
    ln2g = stack("ln2_g")[:, None, :]
    ln2b = stack("ln2_b")[:, None, :]

    embg = params["emb_ln_g"].reshape(1, HIDDEN)
    embb = params["emb_ln_b"].reshape(1, HIDDEN)
    pw = params["pool_w"]
    pb = params["pool_b"].reshape(1, HIDDEN)
    cw = params["cls_w"]
    cb = params["cls_b"].reshape(1, NUM_LABELS)

    weights = (embg, embb, wqkv, bqkv, wo, bo, ln1g, ln1b,
               w1, b1, w2, b2, ln2g, ln2b, pw, pb, cw, cb)

    probs = pl.pallas_call(
        _bert_fused_kernel,
        out_shape=jax.ShapeDtypeStruct((b, 1, NUM_LABELS), jnp.float32),
        grid=(b,),
        in_specs=[pl.BlockSpec((1, s, HIDDEN), lambda i: (i, 0, 0)),
                  pl.BlockSpec((1, 1, s), lambda i: (i, 0, 0))]
                 + [_full_spec(w) for w in weights],
        out_specs=pl.BlockSpec((1, 1, NUM_LABELS), lambda i: (i, 0, 0)),
        compiler_params=pltpu.CompilerParams(
            dimension_semantics=("parallel",)),                   # v7x: shard batch over 2 TCs
    )(emb, mask_bias, *weights)

    return probs.reshape(b, NUM_LABELS)                           # (B, NUM_LABELS)


# --------------------------- pure-JAX reference --------------------------------
def reference_forward(params, input_ids, attention_mask):
    b, s = input_ids.shape
    hp = jax.lax.Precision.HIGHEST

    def lin(x, w, bb):
        return jnp.dot(x, w, precision=hp) + bb

    def ln(x, g, bb):
        m = jnp.mean(x, -1, keepdims=True)
        xc = x - m
        v = jnp.mean(xc * xc, -1, keepdims=True)
        return xc * jax.lax.rsqrt(v + LN_EPS) * g + bb

    def gelu(y):
        return 0.5 * y * (1.0 + jnp.tanh(0.7978845608028654 * (y + 0.044715 * y ** 3)))

    x = (params["word_emb"][input_ids] + params["pos_emb"][jnp.arange(s)][None]
         + params["type_emb"][jnp.zeros((b, s), jnp.int32)])
    x = ln(x, params["emb_ln_g"], params["emb_ln_b"])
    bias = (1.0 - attention_mask.astype(jnp.float32))[:, None, None, :] * -10000.0
    for lp in params["layers"]:
        def sh(t):
            return t.reshape(b, s, N_HEADS, HEAD_DIM).transpose(0, 2, 1, 3)
        q, k, v = sh(lin(x, lp["wq"], lp["bq"])), sh(lin(x, lp["wk"], lp["bk"])), sh(lin(x, lp["wv"], lp["bv"]))
        sc = jnp.einsum("bhqd,bhkd->bhqk", q, k, precision=hp) / (HEAD_DIM ** 0.5) + bias
        p = jax.nn.softmax(sc, axis=-1)
        ctx = jnp.einsum("bhqk,bhkd->bhqd", p, v, precision=hp).transpose(0, 2, 1, 3).reshape(b, s, HIDDEN)
        x = ln(lin(ctx, lp["wo"], lp["bo"]) + x, lp["ln1_g"], lp["ln1_b"])
        hdn = gelu(lin(x, lp["w1"], lp["b1"]))
        x = ln(lin(hdn, lp["w2"], lp["b2"]) + x, lp["ln2_g"], lp["ln2_b"])
    pooled = jnp.tanh(lin(x[:, 0], params["pool_w"], params["pool_b"]))
    return jax.nn.sigmoid(lin(pooled, params["cls_w"], params["cls_b"]))


# ------------------------------------ main -------------------------------------
if __name__ == "__main__":
    key = jax.random.PRNGKey(0)
    pkey, ikey = jax.random.split(key)
    params = init_params(pkey)

    B, S = 2, 8
    input_ids = jax.random.randint(ikey, (B, S), 0, VOCAB, dtype=jnp.int32)
    attention_mask = jnp.array([[1, 1, 1, 1, 1, 1, 1, 1],
                                [1, 1, 1, 1, 1, 1, 0, 0]], dtype=jnp.int32)

    out = bert_multilabel_forward(params, input_ids, attention_mask)
    out = jax.block_until_ready(out)

    ref = reference_forward(params, input_ids, attention_mask)
    assert out.shape == (B, NUM_LABELS), out.shape
    assert bool(jnp.all(jnp.isfinite(out)))
    # bf16 MXU operands + approx reciprocal in the kernel vs f32-HIGHEST reference
    assert bool(jnp.allclose(out, ref, atol=5e-3, rtol=5e-3)), (out, ref)

    print("KERNEL_OK")
</pallas_src>

<mosaic_0001>
module attributes {stable_mosaic.version = 11 : i64} {
  func.func @_bert_fused_kernel(%arg0: i32, %arg1: memref<1x8x32xf32, #tpu.memory_space<vmem>>, %arg2: memref<1x1x8xf32, #tpu.memory_space<vmem>>, %arg3: memref<1x32xf32, #tpu.memory_space<vmem>>, %arg4: memref<1x32xf32, #tpu.memory_space<vmem>>, %arg5: memref<2x32x96xf32, #tpu.memory_space<vmem>>, %arg6: memref<2x1x96xf32, #tpu.memory_space<vmem>>, %arg7: memref<2x32x32xf32, #tpu.memory_space<vmem>>, %arg8: memref<2x1x32xf32, #tpu.memory_space<vmem>>, %arg9: memref<2x1x32xf32, #tpu.memory_space<vmem>>, %arg10: memref<2x1x32xf32, #tpu.memory_space<vmem>>, %arg11: memref<2x32x64xf32, #tpu.memory_space<vmem>>, %arg12: memref<2x1x64xf32, #tpu.memory_space<vmem>>, %arg13: memref<2x64x32xf32, #tpu.memory_space<vmem>>, %arg14: memref<2x1x32xf32, #tpu.memory_space<vmem>>, %arg15: memref<2x1x32xf32, #tpu.memory_space<vmem>>, %arg16: memref<2x1x32xf32, #tpu.memory_space<vmem>>, %arg17: memref<32x32xf32, #tpu.memory_space<vmem>>, %arg18: memref<1x32xf32, #tpu.memory_space<vmem>>, %arg19: memref<32x6xf32, #tpu.memory_space<vmem>>, %arg20: memref<1x6xf32, #tpu.memory_space<vmem>>, %arg21: memref<1x1x6xf32, #tpu.memory_space<vmem>>) attributes {dimension_semantics = [#tpu.dimension_semantics<parallel>], iteration_bounds = array<i64: 2>, scalar_prefetch = 0 : i64, scratch_operands = 0 : i64, tpu.core_type = #tpu.core_type<tc>, window_params = [{transform_indices = @transform_0, window_bounds = array<i64: 1, 8, 32>}, {transform_indices = @transform_1, window_bounds = array<i64: 1, 1, 8>}, {pipeline_mode = #tpu.pipeline_mode<synchronous>, transform_indices = @transform_2, window_bounds = array<i64: 1, 32>}, {pipeline_mode = #tpu.pipeline_mode<synchronous>, transform_indices = @transform_3, window_bounds = array<i64: 1, 32>}, {pipeline_mode = #tpu.pipeline_mode<synchronous>, transform_indices = @transform_4, window_bounds = array<i64: 2, 32, 96>}, {pipeline_mode = #tpu.pipeline_mode<synchronous>, transform_indices = @transform_5, window_bounds = array<i64: 2, 1, 96>}, {pipeline_mode = #tpu.pipeline_mode<synchronous>, transform_indices = @transform_6, window_bounds = array<i64: 2, 32, 32>}, {pipeline_mode = #tpu.pipeline_mode<synchronous>, transform_indices = @transform_7, window_bounds = array<i64: 2, 1, 32>}, {pipeline_mode = #tpu.pipeline_mode<synchronous>, transform_indices = @transform_8, window_bounds = array<i64: 2, 1, 32>}, {pipeline_mode = #tpu.pipeline_mode<synchronous>, transform_indices = @transform_9, window_bounds = array<i64: 2, 1, 32>}, {pipeline_mode = #tpu.pipeline_mode<synchronous>, transform_indices = @transform_10, window_bounds = array<i64: 2, 32, 64>}, {pipeline_mode = #tpu.pipeline_mode<synchronous>, transform_indices = @transform_11, window_bounds = array<i64: 2, 1, 64>}, {pipeline_mode = #tpu.pipeline_mode<synchronous>, transform_indices = @transform_12, window_bounds = array<i64: 2, 64, 32>}, {pipeline_mode = #tpu.pipeline_mode<synchronous>, transform_indices = @transform_13, window_bounds = array<i64: 2, 1, 32>}, {pipeline_mode = #tpu.pipeline_mode<synchronous>, transform_indices = @transform_14, window_bounds = array<i64: 2, 1, 32>}, {pipeline_mode = #tpu.pipeline_mode<synchronous>, transform_indices = @transform_15, window_bounds = array<i64: 2, 1, 32>}, {pipeline_mode = #tpu.pipeline_mode<synchronous>, transform_indices = @transform_16, window_bounds = array<i64: 32, 32>}, {pipeline_mode = #tpu.pipeline_mode<synchronous>, transform_indices = @transform_17, window_bounds = array<i64: 1, 32>}, {pipeline_mode = #tpu.pipeline_mode<synchronous>, transform_indices = @transform_18, window_bounds = array<i64: 32, 6>}, {pipeline_mode = #tpu.pipeline_mode<synchronous>, transform_indices = @transform_19, window_bounds = array<i64: 1, 6>}, {transform_indices = @transform_20, window_bounds = array<i64: 1, 1, 6>}]} {
    %c0 = arith.constant 0 : index
    %c0_0 = arith.constant 0 : index
    %c0_1 = arith.constant 0 : index
    %0 = vector.load %arg1[%c0, %c0_0, %c0_1] : memref<1x8x32xf32, #tpu.memory_space<vmem>>, vector<1x8x32xf32>
    %1 = vector.shape_cast %0 : vector<1x8x32xf32> to vector<8x32xf32>
    %c0_2 = arith.constant 0 : index
    %c0_3 = arith.constant 0 : index
    %2 = vector.load %arg3[%c0_2, %c0_3] : memref<1x32xf32, #tpu.memory_space<vmem>>, vector<1x32xf32>
    %c0_4 = arith.constant 0 : index
    %c0_5 = arith.constant 0 : index
    %3 = vector.load %arg4[%c0_4, %c0_5] : memref<1x32xf32, #tpu.memory_space<vmem>>, vector<1x32xf32>
    %cst = arith.constant dense<0.000000e+00> : vector<8xf32>
    %4 = vector.multi_reduction <add>, %1, %cst [1] : vector<8x32xf32> to vector<8xf32>
    %5 = vector.shape_cast %4 : vector<8xf32> to vector<8x1xf32>
    %cst_6 = arith.constant 3.200000e+01 : f32
    %6 = vector.broadcast %cst_6 : f32 to vector<8x1xf32>
    %7 = arith.divf %5, %6 : vector<8x1xf32>
    %8 = vector.broadcast %7 : vector<8x1xf32> to vector<8x32xf32>
    %9 = arith.subf %1, %8 : vector<8x32xf32>
    %10 = arith.mulf %9, %9 : vector<8x32xf32>
    %cst_7 = arith.constant dense<0.000000e+00> : vector<8xf32>
    %11 = vector.multi_reduction <add>, %10, %cst_7 [1] : vector<8x32xf32> to vector<8xf32>
    %12 = vector.shape_cast %11 : vector<8xf32> to vector<8x1xf32>
    %cst_8 = arith.constant 3.200000e+01 : f32
    %13 = vector.broadcast %cst_8 : f32 to vector<8x1xf32>
    %14 = arith.divf %12, %13 : vector<8x1xf32>
    %cst_9 = arith.constant 9.99999996E-13 : f32
    %15 = vector.broadcast %cst_9 : f32 to vector<8x1xf32>
    %16 = arith.addf %14, %15 : vector<8x1xf32>
    %17 = math.rsqrt %16 : vector<8x1xf32>
    %18 = vector.broadcast %17 : vector<8x1xf32> to vector<8x32xf32>
    %19 = arith.mulf %9, %18 : vector<8x32xf32>
    %20 = vector.broadcast %2 : vector<1x32xf32> to vector<8x32xf32>
    %21 = arith.mulf %19, %20 : vector<8x32xf32>
    %22 = vector.broadcast %3 : vector<1x32xf32> to vector<8x32xf32>
    %23 = arith.addf %21, %22 : vector<8x32xf32>
    %c0_10 = arith.constant 0 : index
    %c0_11 = arith.constant 0 : index
    %c0_12 = arith.constant 0 : index
    %24 = vector.load %arg2[%c0_10, %c0_11, %c0_12] : memref<1x1x8xf32, #tpu.memory_space<vmem>>, vector<1x1x8xf32>
    %25 = vector.shape_cast %24 : vector<1x1x8xf32> to vector<1x8xf32>
    %c0_13 = arith.constant 0 : index
    %c0_14 = arith.constant 0 : index
    %c0_15 = arith.constant 0 : index
    %26 = vector.load %arg5[%c0_13, %c0_14, %c0_15] : memref<2x32x96xf32, #tpu.memory_space<vmem>>, vector<1x32x96xf32>
    %27 = vector.shape_cast %26 : vector<1x32x96xf32> to vector<32x96xf32>
    %28 = arith.truncf %23 : vector<8x32xf32> to vector<8x32xbf16>
    %29 = arith.truncf %27 : vector<32x96xf32> to vector<32x96xbf16>
    %cst_16 = arith.constant dense<0.000000e+00> : vector<8x96xf32>
    %30 = tpu.matmul %28, %29, %cst_16 {dimension_numbers = #tpu.dot_dimension_numbers<[1], [0], [0], [1], [0, 0, 1, 1], [], []>} : vector<8x32xbf16>, vector<32x96xbf16>, vector<8x96xf32> -> vector<8x96xf32>
    %c0_17 = arith.constant 0 : index
    %c0_18 = arith.constant 0 : index
    %c0_19 = arith.constant 0 : index
    %31 = vector.load %arg6[%c0_17, %c0_18, %c0_19] : memref<2x1x96xf32, #tpu.memory_space<vmem>>, vector<1x1x96xf32>
    %32 = vector.shape_cast %31 : vector<1x1x96xf32> to vector<1x96xf32>
    %33 = vector.broadcast %32 : vector<1x96xf32> to vector<8x96xf32>
    %34 = arith.addf %30, %33 : vector<8x96xf32>
    %c0_20 = arith.constant 0 : index
    %c0_21 = arith.constant 0 : index
    %c0_22 = arith.constant 0 : index
    %35 = vector.load %arg7[%c0_20, %c0_21, %c0_22] : memref<2x32x32xf32, #tpu.memory_space<vmem>>, vector<1x32x32xf32>
    %36 = vector.shape_cast %35 : vector<1x32x32xf32> to vector<32x32xf32>
    %37 = vector.extract_strided_slice %34 {offsets = [0, 0], sizes = [8, 16], strides = [1, 1]} : vector<8x96xf32> to vector<8x16xf32>
    %38 = vector.extract_strided_slice %34 {offsets = [0, 32], sizes = [8, 16], strides = [1, 1]} : vector<8x96xf32> to vector<8x16xf32>
    %39 = vector.extract_strided_slice %34 {offsets = [0, 64], sizes = [8, 16], strides = [1, 1]} : vector<8x96xf32> to vector<8x16xf32>
    %40 = arith.truncf %37 : vector<8x16xf32> to vector<8x16xbf16>
    %41 = arith.truncf %38 : vector<8x16xf32> to vector<8x16xbf16>
    %cst_23 = arith.constant dense<0.000000e+00> : vector<8x8xf32>
    %42 = tpu.matmul %40, %41, %cst_23 {dimension_numbers = #tpu.dot_dimension_numbers<[1], [1], [0], [0], [0, 0, 1, 0], [], []>} : vector<8x16xbf16>, vector<8x16xbf16>, vector<8x8xf32> -> vector<8x8xf32>
    %cst_24 = arith.constant 2.500000e-01 : f32
    %43 = vector.broadcast %cst_24 : f32 to vector<8x8xf32>
    %44 = arith.mulf %42, %43 : vector<8x8xf32>
    %45 = vector.broadcast %25 : vector<1x8xf32> to vector<8x8xf32>
    %46 = arith.addf %44, %45 : vector<8x8xf32>
    %cst_25 = arith.constant dense<0xFF800000> : vector<8xf32>
    %47 = vector.multi_reduction <maximumf>, %46, %cst_25 [1] : vector<8x8xf32> to vector<8xf32>
    %48 = vector.shape_cast %47 : vector<8xf32> to vector<8x1xf32>
    %49 = vector.broadcast %48 : vector<8x1xf32> to vector<8x8xf32>
    %50 = arith.subf %46, %49 : vector<8x8xf32>
    %51 = math.exp %50 : vector<8x8xf32>
    %cst_26 = arith.constant dense<0.000000e+00> : vector<8xf32>
    %52 = vector.multi_reduction <add>, %51, %cst_26 [1] : vector<8x8xf32> to vector<8xf32>
    %53 = vector.shape_cast %52 : vector<8xf32> to vector<8x1xf32>
    %54 = tpu.reciprocal %53 {approx = true} : vector<8x1xf32> -> vector<8x1xf32>
    %55 = vector.broadcast %54 : vector<8x1xf32> to vector<8x8xf32>
    %56 = arith.mulf %51, %55 : vector<8x8xf32>
    %57 = arith.truncf %56 : vector<8x8xf32> to vector<8x8xbf16>
    %58 = arith.truncf %39 : vector<8x16xf32> to vector<8x16xbf16>
    %cst_27 = arith.constant dense<0.000000e+00> : vector<8x16xf32>
    %59 = tpu.matmul %57, %58, %cst_27 {dimension_numbers = #tpu.dot_dimension_numbers<[1], [0], [0], [1], [0, 0, 1, 1], [], []>} : vector<8x8xbf16>, vector<8x16xbf16>, vector<8x16xf32> -> vector<8x16xf32>
    %60 = vector.extract_strided_slice %36 {offsets = [0, 0], sizes = [16, 32], strides = [1, 1]} : vector<32x32xf32> to vector<16x32xf32>
    %61 = arith.truncf %59 : vector<8x16xf32> to vector<8x16xbf16>
    %62 = arith.truncf %60 : vector<16x32xf32> to vector<16x32xbf16>
    %cst_28 = arith.constant dense<0.000000e+00> : vector<8x32xf32>
    %63 = tpu.matmul %61, %62, %cst_28 {dimension_numbers = #tpu.dot_dimension_numbers<[1], [0], [0], [1], [0, 0, 1, 1], [], []>} : vector<8x16xbf16>, vector<16x32xbf16>, vector<8x32xf32> -> vector<8x32xf32>
    %64 = vector.extract_strided_slice %34 {offsets = [0, 16], sizes = [8, 16], strides = [1, 1]} : vector<8x96xf32> to vector<8x16xf32>
    %65 = vector.extract_strided_slice %34 {offsets = [0, 48], sizes = [8, 16], strides = [1, 1]} : vector<8x96xf32> to vector<8x16xf32>
    %66 = vector.extract_strided_slice %34 {offsets = [0, 80], sizes = [8, 16], strides = [1, 1]} : vector<8x96xf32> to vector<8x16xf32>
    %67 = arith.truncf %64 : vector<8x16xf32> to vector<8x16xbf16>
    %68 = arith.truncf %65 : vector<8x16xf32> to vector<8x16xbf16>
    %cst_29 = arith.constant dense<0.000000e+00> : vector<8x8xf32>
    %69 = tpu.matmul %67, %68, %cst_29 {dimension_numbers = #tpu.dot_dimension_numbers<[1], [1], [0], [0], [0, 0, 1, 0], [], []>} : vector<8x16xbf16>, vector<8x16xbf16>, vector<8x8xf32> -> vector<8x8xf32>
    %cst_30 = arith.constant 2.500000e-01 : f32
    %70 = vector.broadcast %cst_30 : f32 to vector<8x8xf32>
    %71 = arith.mulf %69, %70 : vector<8x8xf32>
    %72 = vector.broadcast %25 : vector<1x8xf32> to vector<8x8xf32>
    %73 = arith.addf %71, %72 : vector<8x8xf32>
    %cst_31 = arith.constant dense<0xFF800000> : vector<8xf32>
    %74 = vector.multi_reduction <maximumf>, %73, %cst_31 [1] : vector<8x8xf32> to vector<8xf32>
    %75 = vector.shape_cast %74 : vector<8xf32> to vector<8x1xf32>
    %76 = vector.broadcast %75 : vector<8x1xf32> to vector<8x8xf32>
    %77 = arith.subf %73, %76 : vector<8x8xf32>
    %78 = math.exp %77 : vector<8x8xf32>
    %cst_32 = arith.constant dense<0.000000e+00> : vector<8xf32>
    %79 = vector.multi_reduction <add>, %78, %cst_32 [1] : vector<8x8xf32> to vector<8xf32>
    %80 = vector.shape_cast %79 : vector<8xf32> to vector<8x1xf32>
    %81 = tpu.reciprocal %80 {approx = true} : vector<8x1xf32> -> vector<8x1xf32>
    %82 = vector.broadcast %81 : vector<8x1xf32> to vector<8x8xf32>
    %83 = arith.mulf %78, %82 : vector<8x8xf32>
    %84 = arith.truncf %83 : vector<8x8xf32> to vector<8x8xbf16>
    %85 = arith.truncf %66 : vector<8x16xf32> to vector<8x16xbf16>
    %cst_33 = arith.constant dense<0.000000e+00> : vector<8x16xf32>
    %86 = tpu.matmul %84, %85, %cst_33 {dimension_numbers = #tpu.dot_dimension_numbers<[1], [0], [0], [1], [0, 0, 1, 1], [], []>} : vector<8x8xbf16>, vector<8x16xbf16>, vector<8x16xf32> -> vector<8x16xf32>
    %87 = vector.extract_strided_slice %36 {offsets = [16, 0], sizes = [16, 32], strides = [1, 1]} : vector<32x32xf32> to vector<16x32xf32>
    %88 = arith.truncf %86 : vector<8x16xf32> to vector<8x16xbf16>
    %89 = arith.truncf %87 : vector<16x32xf32> to vector<16x32xbf16>
    %cst_34 = arith.constant dense<0.000000e+00> : vector<8x32xf32>
    %90 = tpu.matmul %88, %89, %cst_34 {dimension_numbers = #tpu.dot_dimension_numbers<[1], [0], [0], [1], [0, 0, 1, 1], [], []>} : vector<8x16xbf16>, vector<16x32xbf16>, vector<8x32xf32> -> vector<8x32xf32>
    %91 = arith.addf %63, %90 : vector<8x32xf32>
    %c0_35 = arith.constant 0 : index
    %c0_36 = arith.constant 0 : index
    %c0_37 = arith.constant 0 : index
    %92 = vector.load %arg8[%c0_35, %c0_36, %c0_37] : memref<2x1x32xf32, #tpu.memory_space<vmem>>, vector<1x1x32xf32>
    %93 = vector.shape_cast %92 : vector<1x1x32xf32> to vector<1x32xf32>
    %94 = vector.broadcast %93 : vector<1x32xf32> to vector<8x32xf32>
    %95 = arith.addf %91, %94 : vector<8x32xf32>
    %96 = arith.addf %95, %23 : vector<8x32xf32>
    %c0_38 = arith.constant 0 : index
    %c0_39 = arith.constant 0 : index
    %c0_40 = arith.constant 0 : index
    %97 = vector.load %arg9[%c0_38, %c0_39, %c0_40] : memref<2x1x32xf32, #tpu.memory_space<vmem>>, vector<1x1x32xf32>
    %98 = vector.shape_cast %97 : vector<1x1x32xf32> to vector<1x32xf32>
    %c0_41 = arith.constant 0 : index
    %c0_42 = arith.constant 0 : index
    %c0_43 = arith.constant 0 : index
    %99 = vector.load %arg10[%c0_41, %c0_42, %c0_43] : memref<2x1x32xf32, #tpu.memory_space<vmem>>, vector<1x1x32xf32>
    %100 = vector.shape_cast %99 : vector<1x1x32xf32> to vector<1x32xf32>
    %cst_44 = arith.constant dense<0.000000e+00> : vector<8xf32>
    %101 = vector.multi_reduction <add>, %96, %cst_44 [1] : vector<8x32xf32> to vector<8xf32>
    %102 = vector.shape_cast %101 : vector<8xf32> to vector<8x1xf32>
    %cst_45 = arith.constant 3.200000e+01 : f32
    %103 = vector.broadcast %cst_45 : f32 to vector<8x1xf32>
    %104 = arith.divf %102, %103 : vector<8x1xf32>
    %105 = vector.broadcast %104 : vector<8x1xf32> to vector<8x32xf32>
    %106 = arith.subf %96, %105 : vector<8x32xf32>
    %107 = arith.mulf %106, %106 : vector<8x32xf32>
    %cst_46 = arith.constant dense<0.000000e+00> : vector<8xf32>
    %108 = vector.multi_reduction <add>, %107, %cst_46 [1] : vector<8x32xf32> to vector<8xf32>
    %109 = vector.shape_cast %108 : vector<8xf32> to vector<8x1xf32>
    %cst_47 = arith.constant 3.200000e+01 : f32
    %110 = vector.broadcast %cst_47 : f32 to vector<8x1xf32>
    %111 = arith.divf %109, %110 : vector<8x1xf32>
    %cst_48 = arith.constant 9.99999996E-13 : f32
    %112 = vector.broadcast %cst_48 : f32 to vector<8x1xf32>
    %113 = arith.addf %111, %112 : vector<8x1xf32>
    %114 = math.rsqrt %113 : vector<8x1xf32>
    %115 = vector.broadcast %114 : vector<8x1xf32> to vector<8x32xf32>
    %116 = arith.mulf %106, %115 : vector<8x32xf32>
    %117 = vector.broadcast %98 : vector<1x32xf32> to vector<8x32xf32>
    %118 = arith.mulf %116, %117 : vector<8x32xf32>
    %119 = vector.broadcast %100 : vector<1x32xf32> to vector<8x32xf32>
    %120 = arith.addf %118, %119 : vector<8x32xf32>
    %c0_49 = arith.constant 0 : index
    %c0_50 = arith.constant 0 : index
    %c0_51 = arith.constant 0 : index
    %121 = vector.load %arg11[%c0_49, %c0_50, %c0_51] : memref<2x32x64xf32, #tpu.memory_space<vmem>>, vector<1x32x64xf32>
    %122 = vector.shape_cast %121 : vector<1x32x64xf32> to vector<32x64xf32>
    %123 = arith.truncf %120 : vector<8x32xf32> to vector<8x32xbf16>
    %124 = arith.truncf %122 : vector<32x64xf32> to vector<32x64xbf16>
    %cst_52 = arith.constant dense<0.000000e+00> : vector<8x64xf32>
    %125 = tpu.matmul %123, %124, %cst_52 {dimension_numbers = #tpu.dot_dimension_numbers<[1], [0], [0], [1], [0, 0, 1, 1], [], []>} : vector<8x32xbf16>, vector<32x64xbf16>, vector<8x64xf32> -> vector<8x64xf32>
    %c0_53 = arith.constant 0 : index
    %c0_54 = arith.constant 0 : index
    %c0_55 = arith.constant 0 : index
    %126 = vector.load %arg12[%c0_53, %c0_54, %c0_55] : memref<2x1x64xf32, #tpu.memory_space<vmem>>, vector<1x1x64xf32>
    %127 = vector.shape_cast %126 : vector<1x1x64xf32> to vector<1x64xf32>
    %128 = vector.broadcast %127 : vector<1x64xf32> to vector<8x64xf32>
    %129 = arith.addf %125, %128 : vector<8x64xf32>
    %cst_56 = arith.constant 5.000000e-01 : f32
    %130 = vector.broadcast %cst_56 : f32 to vector<8x64xf32>
    %131 = arith.mulf %130, %129 : vector<8x64xf32>
    %cst_57 = arith.constant 4.471500e-02 : f32
    %132 = vector.broadcast %cst_57 : f32 to vector<8x64xf32>
    %133 = arith.mulf %132, %129 : vector<8x64xf32>
    %134 = arith.mulf %133, %129 : vector<8x64xf32>
    %135 = arith.mulf %134, %129 : vector<8x64xf32>
    %136 = arith.addf %129, %135 : vector<8x64xf32>
    %cst_58 = arith.constant 0.797884583 : f32
    %137 = vector.broadcast %cst_58 : f32 to vector<8x64xf32>
    %138 = arith.mulf %137, %136 : vector<8x64xf32>
    %139 = math.tanh %138 : vector<8x64xf32>
    %cst_59 = arith.constant 1.000000e+00 : f32
    %140 = vector.broadcast %cst_59 : f32 to vector<8x64xf32>
    %141 = arith.addf %140, %139 : vector<8x64xf32>
    %142 = arith.mulf %131, %141 : vector<8x64xf32>
    %c0_60 = arith.constant 0 : index
    %c0_61 = arith.constant 0 : index
    %c0_62 = arith.constant 0 : index
    %143 = vector.load %arg13[%c0_60, %c0_61, %c0_62] : memref<2x64x32xf32, #tpu.memory_space<vmem>>, vector<1x64x32xf32>
    %144 = vector.shape_cast %143 : vector<1x64x32xf32> to vector<64x32xf32>
    %145 = arith.truncf %142 : vector<8x64xf32> to vector<8x64xbf16>
    %146 = arith.truncf %144 : vector<64x32xf32> to vector<64x32xbf16>
    %cst_63 = arith.constant dense<0.000000e+00> : vector<8x32xf32>
    %147 = tpu.matmul %145, %146, %cst_63 {dimension_numbers = #tpu.dot_dimension_numbers<[1], [0], [0], [1], [0, 0, 1, 1], [], []>} : vector<8x64xbf16>, vector<64x32xbf16>, vector<8x32xf32> -> vector<8x32xf32>
    %c0_64 = arith.constant 0 : index
    %c0_65 = arith.constant 0 : index
    %c0_66 = arith.constant 0 : index
    %148 = vector.load %arg14[%c0_64, %c0_65, %c0_66] : memref<2x1x32xf32, #tpu.memory_space<vmem>>, vector<1x1x32xf32>
    %149 = vector.shape_cast %148 : vector<1x1x32xf32> to vector<1x32xf32>
    %150 = vector.broadcast %149 : vector<1x32xf32> to vector<8x32xf32>
    %151 = arith.addf %147, %150 : vector<8x32xf32>
    %152 = arith.addf %151, %120 : vector<8x32xf32>
    %c0_67 = arith.constant 0 : index
    %c0_68 = arith.constant 0 : index
    %c0_69 = arith.constant 0 : index
    %153 = vector.load %arg15[%c0_67, %c0_68, %c0_69] : memref<2x1x32xf32, #tpu.memory_space<vmem>>, vector<1x1x32xf32>
    %154 = vector.shape_cast %153 : vector<1x1x32xf32> to vector<1x32xf32>
    %c0_70 = arith.constant 0 : index
    %c0_71 = arith.constant 0 : index
    %c0_72 = arith.constant 0 : index
    %155 = vector.load %arg16[%c0_70, %c0_71, %c0_72] : memref<2x1x32xf32, #tpu.memory_space<vmem>>, vector<1x1x32xf32>
    %156 = vector.shape_cast %155 : vector<1x1x32xf32> to vector<1x32xf32>
    %cst_73 = arith.constant dense<0.000000e+00> : vector<8xf32>
    %157 = vector.multi_reduction <add>, %152, %cst_73 [1] : vector<8x32xf32> to vector<8xf32>
    %158 = vector.shape_cast %157 : vector<8xf32> to vector<8x1xf32>
    %cst_74 = arith.constant 3.200000e+01 : f32
    %159 = vector.broadcast %cst_74 : f32 to vector<8x1xf32>
    %160 = arith.divf %158, %159 : vector<8x1xf32>
    %161 = vector.broadcast %160 : vector<8x1xf32> to vector<8x32xf32>
    %162 = arith.subf %152, %161 : vector<8x32xf32>
    %163 = arith.mulf %162, %162 : vector<8x32xf32>
    %cst_75 = arith.constant dense<0.000000e+00> : vector<8xf32>
    %164 = vector.multi_reduction <add>, %163, %cst_75 [1] : vector<8x32xf32> to vector<8xf32>
    %165 = vector.shape_cast %164 : vector<8xf32> to vector<8x1xf32>
    %cst_76 = arith.constant 3.200000e+01 : f32
    %166 = vector.broadcast %cst_76 : f32 to vector<8x1xf32>
    %167 = arith.divf %165, %166 : vector<8x1xf32>
    %cst_77 = arith.constant 9.99999996E-13 : f32
    %168 = vector.broadcast %cst_77 : f32 to vector<8x1xf32>
    %169 = arith.addf %167, %168 : vector<8x1xf32>
    %170 = math.rsqrt %169 : vector<8x1xf32>
    %171 = vector.broadcast %170 : vector<8x1xf32> to vector<8x32xf32>
    %172 = arith.mulf %162, %171 : vector<8x32xf32>
    %173 = vector.broadcast %154 : vector<1x32xf32> to vector<8x32xf32>
    %174 = arith.mulf %172, %173 : vector<8x32xf32>
    %175 = vector.broadcast %156 : vector<1x32xf32> to vector<8x32xf32>
    %176 = arith.addf %174, %175 : vector<8x32xf32>
    %c1 = arith.constant 1 : index
    %c0_78 = arith.constant 0 : index
    %c0_79 = arith.constant 0 : index
    %177 = vector.load %arg5[%c1, %c0_78, %c0_79] : memref<2x32x96xf32, #tpu.memory_space<vmem>>, vector<1x32x96xf32>
    %178 = vector.shape_cast %177 : vector<1x32x96xf32> to vector<32x96xf32>
    %179 = arith.truncf %176 : vector<8x32xf32> to vector<8x32xbf16>
    %180 = arith.truncf %178 : vector<32x96xf32> to vector<32x96xbf16>
    %cst_80 = arith.constant dense<0.000000e+00> : vector<8x96xf32>
    %181 = tpu.matmul %179, %180, %cst_80 {dimension_numbers = #tpu.dot_dimension_numbers<[1], [0], [0], [1], [0, 0, 1, 1], [], []>} : vector<8x32xbf16>, vector<32x96xbf16>, vector<8x96xf32> -> vector<8x96xf32>
    %c1_81 = arith.constant 1 : index
    %c0_82 = arith.constant 0 : index
    %c0_83 = arith.constant 0 : index
    %182 = vector.load %arg6[%c1_81, %c0_82, %c0_83] : memref<2x1x96xf32, #tpu.memory_space<vmem>>, vector<1x1x96xf32>
    %183 = vector.shape_cast %182 : vector<1x1x96xf32> to vector<1x96xf32>
    %184 = vector.broadcast %183 : vector<1x96xf32> to vector<8x96xf32>
    %185 = arith.addf %181, %184 : vector<8x96xf32>
    %c1_84 = arith.constant 1 : index
    %c0_85 = arith.constant 0 : index
    %c0_86 = arith.constant 0 : index
    %186 = vector.load %arg7[%c1_84, %c0_85, %c0_86] : memref<2x32x32xf32, #tpu.memory_space<vmem>>, vector<1x32x32xf32>
    %187 = vector.shape_cast %186 : vector<1x32x32xf32> to vector<32x32xf32>
    %188 = vector.extract_strided_slice %185 {offsets = [0, 0], sizes = [8, 16], strides = [1, 1]} : vector<8x96xf32> to vector<8x16xf32>
    %189 = vector.extract_strided_slice %185 {offsets = [0, 32], sizes = [8, 16], strides = [1, 1]} : vector<8x96xf32> to vector<8x16xf32>
    %190 = vector.extract_strided_slice %185 {offsets = [0, 64], sizes = [8, 16], strides = [1, 1]} : vector<8x96xf32> to vector<8x16xf32>
    %191 = arith.truncf %188 : vector<8x16xf32> to vector<8x16xbf16>
    %192 = arith.truncf %189 : vector<8x16xf32> to vector<8x16xbf16>
    %cst_87 = arith.constant dense<0.000000e+00> : vector<8x8xf32>
    %193 = tpu.matmul %191, %192, %cst_87 {dimension_numbers = #tpu.dot_dimension_numbers<[1], [1], [0], [0], [0, 0, 1, 0], [], []>} : vector<8x16xbf16>, vector<8x16xbf16>, vector<8x8xf32> -> vector<8x8xf32>
    %cst_88 = arith.constant 2.500000e-01 : f32
    %194 = vector.broadcast %cst_88 : f32 to vector<8x8xf32>
    %195 = arith.mulf %193, %194 : vector<8x8xf32>
    %196 = vector.broadcast %25 : vector<1x8xf32> to vector<8x8xf32>
    %197 = arith.addf %195, %196 : vector<8x8xf32>
    %cst_89 = arith.constant dense<0xFF800000> : vector<8xf32>
    %198 = vector.multi_reduction <maximumf>, %197, %cst_89 [1] : vector<8x8xf32> to vector<8xf32>
    %199 = vector.shape_cast %198 : vector<8xf32> to vector<8x1xf32>
    %200 = vector.broadcast %199 : vector<8x1xf32> to vector<8x8xf32>
    %201 = arith.subf %197, %200 : vector<8x8xf32>
    %202 = math.exp %201 : vector<8x8xf32>
    %cst_90 = arith.constant dense<0.000000e+00> : vector<8xf32>
    %203 = vector.multi_reduction <add>, %202, %cst_90 [1] : vector<8x8xf32> to vector<8xf32>
    %204 = vector.shape_cast %203 : vector<8xf32> to vector<8x1xf32>
    %205 = tpu.reciprocal %204 {approx = true} : vector<8x1xf32> -> vector<8x1xf32>
    %206 = vector.broadcast %205 : vector<8x1xf32> to vector<8x8xf32>
    %207 = arith.mulf %202, %206 : vector<8x8xf32>
    %208 = arith.truncf %207 : vector<8x8xf32> to vector<8x8xbf16>
    %209 = arith.truncf %190 : vector<8x16xf32> to vector<8x16xbf16>
    %cst_91 = arith.constant dense<0.000000e+00> : vector<8x16xf32>
    %210 = tpu.matmul %208, %209, %cst_91 {dimension_numbers = #tpu.dot_dimension_numbers<[1], [0], [0], [1], [0, 0, 1, 1], [], []>} : vector<8x8xbf16>, vector<8x16xbf16>, vector<8x16xf32> -> vector<8x16xf32>
    %211 = vector.extract_strided_slice %187 {offsets = [0, 0], sizes = [16, 32], strides = [1, 1]} : vector<32x32xf32> to vector<16x32xf32>
    %212 = arith.truncf %210 : vector<8x16xf32> to vector<8x16xbf16>
    %213 = arith.truncf %211 : vector<16x32xf32> to vector<16x32xbf16>
    %cst_92 = arith.constant dense<0.000000e+00> : vector<8x32xf32>
    %214 = tpu.matmul %212, %213, %cst_92 {dimension_numbers = #tpu.dot_dimension_numbers<[1], [0], [0], [1], [0, 0, 1, 1], [], []>} : vector<8x16xbf16>, vector<16x32xbf16>, vector<8x32xf32> -> vector<8x32xf32>
    %215 = vector.extract_strided_slice %185 {offsets = [0, 16], sizes = [8, 16], strides = [1, 1]} : vector<8x96xf32> to vector<8x16xf32>
    %216 = vector.extract_strided_slice %185 {offsets = [0, 48], sizes = [8, 16], strides = [1, 1]} : vector<8x96xf32> to vector<8x16xf32>
    %217 = vector.extract_strided_slice %185 {offsets = [0, 80], sizes = [8, 16], strides = [1, 1]} : vector<8x96xf32> to vector<8x16xf32>
    %218 = arith.truncf %215 : vector<8x16xf32> to vector<8x16xbf16>
    %219 = arith.truncf %216 : vector<8x16xf32> to vector<8x16xbf16>
    %cst_93 = arith.constant dense<0.000000e+00> : vector<8x8xf32>
    %220 = tpu.matmul %218, %219, %cst_93 {dimension_numbers = #tpu.dot_dimension_numbers<[1], [1], [0], [0], [0, 0, 1, 0], [], []>} : vector<8x16xbf16>, vector<8x16xbf16>, vector<8x8xf32> -> vector<8x8xf32>
    %cst_94 = arith.constant 2.500000e-01 : f32
    %221 = vector.broadcast %cst_94 : f32 to vector<8x8xf32>
    %222 = arith.mulf %220, %221 : vector<8x8xf32>
    %223 = vector.broadcast %25 : vector<1x8xf32> to vector<8x8xf32>
    %224 = arith.addf %222, %223 : vector<8x8xf32>
    %cst_95 = arith.constant dense<0xFF800000> : vector<8xf32>
    %225 = vector.multi_reduction <maximumf>, %224, %cst_95 [1] : vector<8x8xf32> to vector<8xf32>
    %226 = vector.shape_cast %225 : vector<8xf32> to vector<8x1xf32>
    %227 = vector.broadcast %226 : vector<8x1xf32> to vector<8x8xf32>
    %228 = arith.subf %224, %227 : vector<8x8xf32>
    %229 = math.exp %228 : vector<8x8xf32>
    %cst_96 = arith.constant dense<0.000000e+00> : vector<8xf32>
    %230 = vector.multi_reduction <add>, %229, %cst_96 [1] : vector<8x8xf32> to vector<8xf32>
    %231 = vector.shape_cast %230 : vector<8xf32> to vector<8x1xf32>
    %232 = tpu.reciprocal %231 {approx = true} : vector<8x1xf32> -> vector<8x1xf32>
    %233 = vector.broadcast %232 : vector<8x1xf32> to vector<8x8xf32>
    %234 = arith.mulf %229, %233 : vector<8x8xf32>
    %235 = arith.truncf %234 : vector<8x8xf32> to vector<8x8xbf16>
    %236 = arith.truncf %217 : vector<8x16xf32> to vector<8x16xbf16>
    %cst_97 = arith.constant dense<0.000000e+00> : vector<8x16xf32>
    %237 = tpu.matmul %235, %236, %cst_97 {dimension_numbers = #tpu.dot_dimension_numbers<[1], [0], [0], [1], [0, 0, 1, 1], [], []>} : vector<8x8xbf16>, vector<8x16xbf16>, vector<8x16xf32> -> vector<8x16xf32>
    %238 = vector.extract_strided_slice %187 {offsets = [16, 0], sizes = [16, 32], strides = [1, 1]} : vector<32x32xf32> to vector<16x32xf32>
    %239 = arith.truncf %237 : vector<8x16xf32> to vector<8x16xbf16>
    %240 = arith.truncf %238 : vector<16x32xf32> to vector<16x32xbf16>
    %cst_98 = arith.constant dense<0.000000e+00> : vector<8x32xf32>
    %241 = tpu.matmul %239, %240, %cst_98 {dimension_numbers = #tpu.dot_dimension_numbers<[1], [0], [0], [1], [0, 0, 1, 1], [], []>} : vector<8x16xbf16>, vector<16x32xbf16>, vector<8x32xf32> -> vector<8x32xf32>
    %242 = arith.addf %214, %241 : vector<8x32xf32>
    %c1_99 = arith.constant 1 : index
    %c0_100 = arith.constant 0 : index
    %c0_101 = arith.constant 0 : index
    %243 = vector.load %arg8[%c1_99, %c0_100, %c0_101] : memref<2x1x32xf32, #tpu.memory_space<vmem>>, vector<1x1x32xf32>
    %244 = vector.shape_cast %243 : vector<1x1x32xf32> to vector<1x32xf32>
    %245 = vector.broadcast %244 : vector<1x32xf32> to vector<8x32xf32>
    %246 = arith.addf %242, %245 : vector<8x32xf32>
    %247 = arith.addf %246, %176 : vector<8x32xf32>
    %c1_102 = arith.constant 1 : index
    %c0_103 = arith.constant 0 : index
    %c0_104 = arith.constant 0 : index
    %248 = vector.load %arg9[%c1_102, %c0_103, %c0_104] : memref<2x1x32xf32, #tpu.memory_space<vmem>>, vector<1x1x32xf32>
    %249 = vector.shape_cast %248 : vector<1x1x32xf32> to vector<1x32xf32>
    %c1_105 = arith.constant 1 : index
    %c0_106 = arith.constant 0 : index
    %c0_107 = arith.constant 0 : index
    %250 = vector.load %arg10[%c1_105, %c0_106, %c0_107] : memref<2x1x32xf32, #tpu.memory_space<vmem>>, vector<1x1x32xf32>
    %251 = vector.shape_cast %250 : vector<1x1x32xf32> to vector<1x32xf32>
    %cst_108 = arith.constant dense<0.000000e+00> : vector<8xf32>
    %252 = vector.multi_reduction <add>, %247, %cst_108 [1] : vector<8x32xf32> to vector<8xf32>
    %253 = vector.shape_cast %252 : vector<8xf32> to vector<8x1xf32>
    %cst_109 = arith.constant 3.200000e+01 : f32
    %254 = vector.broadcast %cst_109 : f32 to vector<8x1xf32>
    %255 = arith.divf %253, %254 : vector<8x1xf32>
    %256 = vector.broadcast %255 : vector<8x1xf32> to vector<8x32xf32>
    %257 = arith.subf %247, %256 : vector<8x32xf32>
    %258 = arith.mulf %257, %257 : vector<8x32xf32>
    %cst_110 = arith.constant dense<0.000000e+00> : vector<8xf32>
    %259 = vector.multi_reduction <add>, %258, %cst_110 [1] : vector<8x32xf32> to vector<8xf32>
    %260 = vector.shape_cast %259 : vector<8xf32> to vector<8x1xf32>
    %cst_111 = arith.constant 3.200000e+01 : f32
    %261 = vector.broadcast %cst_111 : f32 to vector<8x1xf32>
    %262 = arith.divf %260, %261 : vector<8x1xf32>
    %cst_112 = arith.constant 9.99999996E-13 : f32
    %263 = vector.broadcast %cst_112 : f32 to vector<8x1xf32>
    %264 = arith.addf %262, %263 : vector<8x1xf32>
    %265 = math.rsqrt %264 : vector<8x1xf32>
    %266 = vector.broadcast %265 : vector<8x1xf32> to vector<8x32xf32>
    %267 = arith.mulf %257, %266 : vector<8x32xf32>
    %268 = vector.broadcast %249 : vector<1x32xf32> to vector<8x32xf32>
    %269 = arith.mulf %267, %268 : vector<8x32xf32>
    %270 = vector.broadcast %251 : vector<1x32xf32> to vector<8x32xf32>
    %271 = arith.addf %269, %270 : vector<8x32xf32>
    %c1_113 = arith.constant 1 : index
    %c0_114 = arith.constant 0 : index
    %c0_115 = arith.constant 0 : index
    %272 = vector.load %arg11[%c1_113, %c0_114, %c0_115] : memref<2x32x64xf32, #tpu.memory_space<vmem>>, vector<1x32x64xf32>
    %273 = vector.shape_cast %272 : vector<1x32x64xf32> to vector<32x64xf32>
    %274 = arith.truncf %271 : vector<8x32xf32> to vector<8x32xbf16>
    %275 = arith.truncf %273 : vector<32x64xf32> to vector<32x64xbf16>
    %cst_116 = arith.constant dense<0.000000e+00> : vector<8x64xf32>
    %276 = tpu.matmul %274, %275, %cst_116 {dimension_numbers = #tpu.dot_dimension_numbers<[1], [0], [0], [1], [0, 0, 1, 1], [], []>} : vector<8x32xbf16>, vector<32x64xbf16>, vector<8x64xf32> -> vector<8x64xf32>
    %c1_117 = arith.constant 1 : index
    %c0_118 = arith.constant 0 : index
    %c0_119 = arith.constant 0 : index
    %277 = vector.load %arg12[%c1_117, %c0_118, %c0_119] : memref<2x1x64xf32, #tpu.memory_space<vmem>>, vector<1x1x64xf32>
    %278 = vector.shape_cast %277 : vector<1x1x64xf32> to vector<1x64xf32>
    %279 = vector.broadcast %278 : vector<1x64xf32> to vector<8x64xf32>
    %280 = arith.addf %276, %279 : vector<8x64xf32>
    %cst_120 = arith.constant 5.000000e-01 : f32
    %281 = vector.broadcast %cst_120 : f32 to vector<8x64xf32>
    %282 = arith.mulf %281, %280 : vector<8x64xf32>
    %cst_121 = arith.constant 4.471500e-02 : f32
    %283 = vector.broadcast %cst_121 : f32 to vector<8x64xf32>
    %284 = arith.mulf %283, %280 : vector<8x64xf32>
    %285 = arith.mulf %284, %280 : vector<8x64xf32>
    %286 = arith.mulf %285, %280 : vector<8x64xf32>
    %287 = arith.addf %280, %286 : vector<8x64xf32>
    %cst_122 = arith.constant 0.797884583 : f32
    %288 = vector.broadcast %cst_122 : f32 to vector<8x64xf32>
    %289 = arith.mulf %288, %287 : vector<8x64xf32>
    %290 = math.tanh %289 : vector<8x64xf32>
    %cst_123 = arith.constant 1.000000e+00 : f32
    %291 = vector.broadcast %cst_123 : f32 to vector<8x64xf32>
    %292 = arith.addf %291, %290 : vector<8x64xf32>
    %293 = arith.mulf %282, %292 : vector<8x64xf32>
    %c1_124 = arith.constant 1 : index
    %c0_125 = arith.constant 0 : index
    %c0_126 = arith.constant 0 : index
    %294 = vector.load %arg13[%c1_124, %c0_125, %c0_126] : memref<2x64x32xf32, #tpu.memory_space<vmem>>, vector<1x64x32xf32>
    %295 = vector.shape_cast %294 : vector<1x64x32xf32> to vector<64x32xf32>
    %296 = arith.truncf %293 : vector<8x64xf32> to vector<8x64xbf16>
    %297 = arith.truncf %295 : vector<64x32xf32> to vector<64x32xbf16>
    %cst_127 = arith.constant dense<0.000000e+00> : vector<8x32xf32>
    %298 = tpu.matmul %296, %297, %cst_127 {dimension_numbers = #tpu.dot_dimension_numbers<[1], [0], [0], [1], [0, 0, 1, 1], [], []>} : vector<8x64xbf16>, vector<64x32xbf16>, vector<8x32xf32> -> vector<8x32xf32>
    %c1_128 = arith.constant 1 : index
    %c0_129 = arith.constant 0 : index
    %c0_130 = arith.constant 0 : index
    %299 = vector.load %arg14[%c1_128, %c0_129, %c0_130] : memref<2x1x32xf32, #tpu.memory_space<vmem>>, vector<1x1x32xf32>
    %300 = vector.shape_cast %299 : vector<1x1x32xf32> to vector<1x32xf32>
    %301 = vector.broadcast %300 : vector<1x32xf32> to vector<8x32xf32>
    %302 = arith.addf %298, %301 : vector<8x32xf32>
    %303 = arith.addf %302, %271 : vector<8x32xf32>
    %c1_131 = arith.constant 1 : index
    %c0_132 = arith.constant 0 : index
    %c0_133 = arith.constant 0 : index
    %304 = vector.load %arg15[%c1_131, %c0_132, %c0_133] : memref<2x1x32xf32, #tpu.memory_space<vmem>>, vector<1x1x32xf32>
    %305 = vector.shape_cast %304 : vector<1x1x32xf32> to vector<1x32xf32>
    %c1_134 = arith.constant 1 : index
    %c0_135 = arith.constant 0 : index
    %c0_136 = arith.constant 0 : index
    %306 = vector.load %arg16[%c1_134, %c0_135, %c0_136] : memref<2x1x32xf32, #tpu.memory_space<vmem>>, vector<1x1x32xf32>
    %307 = vector.shape_cast %306 : vector<1x1x32xf32> to vector<1x32xf32>
    %cst_137 = arith.constant dense<0.000000e+00> : vector<8xf32>
    %308 = vector.multi_reduction <add>, %303, %cst_137 [1] : vector<8x32xf32> to vector<8xf32>
    %309 = vector.shape_cast %308 : vector<8xf32> to vector<8x1xf32>
    %cst_138 = arith.constant 3.200000e+01 : f32
    %310 = vector.broadcast %cst_138 : f32 to vector<8x1xf32>
    %311 = arith.divf %309, %310 : vector<8x1xf32>
    %312 = vector.broadcast %311 : vector<8x1xf32> to vector<8x32xf32>
    %313 = arith.subf %303, %312 : vector<8x32xf32>
    %314 = arith.mulf %313, %313 : vector<8x32xf32>
    %cst_139 = arith.constant dense<0.000000e+00> : vector<8xf32>
    %315 = vector.multi_reduction <add>, %314, %cst_139 [1] : vector<8x32xf32> to vector<8xf32>
    %316 = vector.shape_cast %315 : vector<8xf32> to vector<8x1xf32>
    %cst_140 = arith.constant 3.200000e+01 : f32
    %317 = vector.broadcast %cst_140 : f32 to vector<8x1xf32>
    %318 = arith.divf %316, %317 : vector<8x1xf32>
    %cst_141 = arith.constant 9.99999996E-13 : f32
    %319 = vector.broadcast %cst_141 : f32 to vector<8x1xf32>
    %320 = arith.addf %318, %319 : vector<8x1xf32>
    %321 = math.rsqrt %320 : vector<8x1xf32>
    %322 = vector.broadcast %321 : vector<8x1xf32> to vector<8x32xf32>
    %323 = arith.mulf %313, %322 : vector<8x32xf32>
    %324 = vector.broadcast %305 : vector<1x32xf32> to vector<8x32xf32>
    %325 = arith.mulf %323, %324 : vector<8x32xf32>
    %326 = vector.broadcast %307 : vector<1x32xf32> to vector<8x32xf32>
    %327 = arith.addf %325, %326 : vector<8x32xf32>
    %328 = vector.extract_strided_slice %327 {offsets = [0, 0], sizes = [1, 32], strides = [1, 1]} : vector<8x32xf32> to vector<1x32xf32>
    %c0_142 = arith.constant 0 : index
    %c0_143 = arith.constant 0 : index
    %329 = vector.load %arg17[%c0_142, %c0_143] : memref<32x32xf32, #tpu.memory_space<vmem>>, vector<32x32xf32>
    %330 = arith.truncf %328 : vector<1x32xf32> to vector<1x32xbf16>
    %331 = arith.truncf %329 : vector<32x32xf32> to vector<32x32xbf16>
    %cst_144 = arith.constant dense<0.000000e+00> : vector<1x32xf32>
    %332 = tpu.matmul %330, %331, %cst_144 {dimension_numbers = #tpu.dot_dimension_numbers<[1], [0], [0], [1], [0, 0, 1, 1], [], []>} : vector<1x32xbf16>, vector<32x32xbf16>, vector<1x32xf32> -> vector<1x32xf32>
    %c0_145 = arith.constant 0 : index
    %c0_146 = arith.constant 0 : index
    %333 = vector.load %arg18[%c0_145, %c0_146] : memref<1x32xf32, #tpu.memory_space<vmem>>, vector<1x32xf32>
    %334 = arith.addf %332, %333 : vector<1x32xf32>
    %335 = math.tanh %334 : vector<1x32xf32>
    %c0_147 = arith.constant 0 : index
    %c0_148 = arith.constant 0 : index
    %336 = vector.load %arg19[%c0_147, %c0_148] : memref<32x6xf32, #tpu.memory_space<vmem>>, vector<32x6xf32>
    %337 = arith.truncf %335 : vector<1x32xf32> to vector<1x32xbf16>
    %338 = arith.truncf %336 : vector<32x6xf32> to vector<32x6xbf16>
    %cst_149 = arith.constant dense<0.000000e+00> : vector<1x6xf32>
    %339 = tpu.matmul %337, %338, %cst_149 {dimension_numbers = #tpu.dot_dimension_numbers<[1], [0], [0], [1], [0, 0, 1, 1], [], []>} : vector<1x32xbf16>, vector<32x6xbf16>, vector<1x6xf32> -> vector<1x6xf32>
    %c0_150 = arith.constant 0 : index
    %c0_151 = arith.constant 0 : index
    %340 = vector.load %arg20[%c0_150, %c0_151] : memref<1x6xf32, #tpu.memory_space<vmem>>, vector<1x6xf32>
    %341 = arith.addf %339, %340 : vector<1x6xf32>
    %cst_152 = arith.constant 0.000000e+00 : f32
    %342 = vector.broadcast %cst_152 : f32 to vector<1x6xf32>
    %343 = arith.subf %342, %341 : vector<1x6xf32>
    %344 = math.exp %343 : vector<1x6xf32>
    %cst_153 = arith.constant 1.000000e+00 : f32
    %345 = vector.broadcast %cst_153 : f32 to vector<1x6xf32>
    %346 = arith.addf %345, %344 : vector<1x6xf32>
    %cst_154 = arith.constant 1.000000e+00 : f32
    %347 = vector.broadcast %cst_154 : f32 to vector<1x6xf32>
    %348 = arith.divf %347, %346 : vector<1x6xf32>
    %c0_155 = arith.constant 0 : index
    %c0_156 = arith.constant 0 : index
    %c0_157 = arith.constant 0 : index
    %349 = vector.load %arg21[%c0_155, %c0_156, %c0_157] : memref<1x1x6xf32, #tpu.memory_space<vmem>>, vector<1x1x6xf32>
    %350 = vector.shape_cast %349 : vector<1x1x6xf32> to vector<1x6xf32>
    %351 = vector.shape_cast %348 : vector<1x6xf32> to vector<1x1x6xf32>
    tpu.vector_store %arg21[%c0_155, %c0_156, %c0_157], %351 {strides = array<i32>} : memref<1x1x6xf32, #tpu.memory_space<vmem>>, vector<1x1x6xf32>,
    return
  }
  func.func @transform_0(%arg0: i32) -> (i32, i32, i32) {
    %c0_i32 = arith.constant 0 : i32
    %c0_i32_0 = arith.constant 0 : i32
    %c0_i32_1 = arith.constant 0 : i32
    return %arg0, %c0_i32, %c0_i32_0 : i32, i32, i32
  }
  func.func @transform_1(%arg0: i32) -> (i32, i32, i32) {
    %c0_i32 = arith.constant 0 : i32
    %c0_i32_0 = arith.constant 0 : i32
    %c0_i32_1 = arith.constant 0 : i32
    return %arg0, %c0_i32, %c0_i32_0 : i32, i32, i32
  }
  func.func @transform_2(%arg0: i32) -> (i32, i32) {
    %c0_i32 = arith.constant 0 : i32
    %c0_i32_0 = arith.constant 0 : i32
    %c0_i32_1 = arith.constant 0 : i32
    return %c0_i32, %c0_i32_0 : i32, i32
  }
  func.func @transform_3(%arg0: i32) -> (i32, i32) {
    %c0_i32 = arith.constant 0 : i32
    %c0_i32_0 = arith.constant 0 : i32
    %c0_i32_1 = arith.constant 0 : i32
    return %c0_i32, %c0_i32_0 : i32, i32
  }
  func.func @transform_4(%arg0: i32) -> (i32, i32, i32) {
    %c0_i32 = arith.constant 0 : i32
    %c0_i32_0 = arith.constant 0 : i32
    %c0_i32_1 = arith.constant 0 : i32
    %c0_i32_2 = arith.constant 0 : i32
    return %c0_i32, %c0_i32_0, %c0_i32_1 : i32, i32, i32
  }
  func.func @transform_5(%arg0: i32) -> (i32, i32, i32) {
    %c0_i32 = arith.constant 0 : i32
    %c0_i32_0 = arith.constant 0 : i32
    %c0_i32_1 = arith.constant 0 : i32
    %c0_i32_2 = arith.constant 0 : i32
    return %c0_i32, %c0_i32_0, %c0_i32_1 : i32, i32, i32
  }
  func.func @transform_6(%arg0: i32) -> (i32, i32, i32) {
    %c0_i32 = arith.constant 0 : i32
    %c0_i32_0 = arith.constant 0 : i32
    %c0_i32_1 = arith.constant 0 : i32
    %c0_i32_2 = arith.constant 0 : i32
    return %c0_i32, %c0_i32_0, %c0_i32_1 : i32, i32, i32
  }
  func.func @transform_7(%arg0: i32) -> (i32, i32, i32) {
    %c0_i32 = arith.constant 0 : i32
    %c0_i32_0 = arith.constant 0 : i32
    %c0_i32_1 = arith.constant 0 : i32
    %c0_i32_2 = arith.constant 0 : i32
    return %c0_i32, %c0_i32_0, %c0_i32_1 : i32, i32, i32
  }
  func.func @transform_8(%arg0: i32) -> (i32, i32, i32) {
    %c0_i32 = arith.constant 0 : i32
    %c0_i32_0 = arith.constant 0 : i32
    %c0_i32_1 = arith.constant 0 : i32
    %c0_i32_2 = arith.constant 0 : i32
    return %c0_i32, %c0_i32_0, %c0_i32_1 : i32, i32, i32
  }
  func.func @transform_9(%arg0: i32) -> (i32, i32, i32) {
    %c0_i32 = arith.constant 0 : i32
    %c0_i32_0 = arith.constant 0 : i32
    %c0_i32_1 = arith.constant 0 : i32
    %c0_i32_2 = arith.constant 0 : i32
    return %c0_i32, %c0_i32_0, %c0_i32_1 : i32, i32, i32
  }
  func.func @transform_10(%arg0: i32) -> (i32, i32, i32) {
    %c0_i32 = arith.constant 0 : i32
    %c0_i32_0 = arith.constant 0 : i32
    %c0_i32_1 = arith.constant 0 : i32
    %c0_i32_2 = arith.constant 0 : i32
    return %c0_i32, %c0_i32_0, %c0_i32_1 : i32, i32, i32
  }
  func.func @transform_11(%arg0: i32) -> (i32, i32, i32) {
    %c0_i32 = arith.constant 0 : i32
    %c0_i32_0 = arith.constant 0 : i32
    %c0_i32_1 = arith.constant 0 : i32
    %c0_i32_2 = arith.constant 0 : i32
    return %c0_i32, %c0_i32_0, %c0_i32_1 : i32, i32, i32
  }
  func.func @transform_12(%arg0: i32) -> (i32, i32, i32) {
    %c0_i32 = arith.constant 0 : i32
    %c0_i32_0 = arith.constant 0 : i32
    %c0_i32_1 = arith.constant 0 : i32
    %c0_i32_2 = arith.constant 0 : i32
    return %c0_i32, %c0_i32_0, %c0_i32_1 : i32, i32, i32
  }
  func.func @transform_13(%arg0: i32) -> (i32, i32, i32) {
    %c0_i32 = arith.constant 0 : i32
    %c0_i32_0 = arith.constant 0 : i32
    %c0_i32_1 = arith.constant 0 : i32
    %c0_i32_2 = arith.constant 0 : i32
    return %c0_i32, %c0_i32_0, %c0_i32_1 : i32, i32, i32
  }
  func.func @transform_14(%arg0: i32) -> (i32, i32, i32) {
    %c0_i32 = arith.constant 0 : i32
    %c0_i32_0 = arith.constant 0 : i32
    %c0_i32_1 = arith.constant 0 : i32
    %c0_i32_2 = arith.constant 0 : i32
    return %c0_i32, %c0_i32_0, %c0_i32_1 : i32, i32, i32
  }
  func.func @transform_15(%arg0: i32) -> (i32, i32, i32) {
    %c0_i32 = arith.constant 0 : i32
    %c0_i32_0 = arith.constant 0 : i32
    %c0_i32_1 = arith.constant 0 : i32
    %c0_i32_2 = arith.constant 0 : i32
    return %c0_i32, %c0_i32_0, %c0_i32_1 : i32, i32, i32
  }
  func.func @transform_16(%arg0: i32) -> (i32, i32) {
    %c0_i32 = arith.constant 0 : i32
    %c0_i32_0 = arith.constant 0 : i32
    %c0_i32_1 = arith.constant 0 : i32
    return %c0_i32, %c0_i32_0 : i32, i32
  }
  func.func @transform_17(%arg0: i32) -> (i32, i32) {
    %c0_i32 = arith.constant 0 : i32
    %c0_i32_0 = arith.constant 0 : i32
    %c0_i32_1 = arith.constant 0 : i32
    return %c0_i32, %c0_i32_0 : i32, i32
  }
  func.func @transform_18(%arg0: i32) -> (i32, i32) {
    %c0_i32 = arith.constant 0 : i32
    %c0_i32_0 = arith.constant 0 : i32
    %c0_i32_1 = arith.constant 0 : i32
    return %c0_i32, %c0_i32_0 : i32, i32
  }
  func.func @transform_19(%arg0: i32) -> (i32, i32) {
    %c0_i32 = arith.constant 0 : i32
    %c0_i32_0 = arith.constant 0 : i32
    %c0_i32_1 = arith.constant 0 : i32
    return %c0_i32, %c0_i32_0 : i32, i32
  }
  func.func @transform_20(%arg0: i32) -> (i32, i32, i32) {
    %c0_i32 = arith.constant 0 : i32
    %c0_i32_0 = arith.constant 0 : i32
    %c0_i32_1 = arith.constant 0 : i32
    return %arg0, %c0_i32, %c0_i32_0 : i32, i32, i32
  }
}

</mosaic_0001>

<llo_original>
// kernel: tpu_custom_call.1
$region0: #{tpu_custom_call.1}
  #allocation0 [shape = 'u32[]', space=smem, size = 0x4, offset = 0x4, fixed_abs, tag = 'smem constant byte address 0x4 - core index']
  #allocation1 [shape = 'u32[144,128]{1,0:T(1,128)}', space=vmem, size = 0x12000, scoped, tag = 'internal scratch']
  %s0 = inlined_call_operand.hbm [shape: f32[2,8,32], index: 0, kind: input, shape index: {}]
  %s1 = inlined_call_operand.hbm [shape: f32[2,1,8], index: 1, kind: input, shape index: {}]
  %s2 = inlined_call_operand.hbm [shape: f32[1,32], index: 2, kind: input, shape index: {}]
  %s3 = inlined_call_operand.hbm [shape: f32[1,32], index: 3, kind: input, shape index: {}]
  %s4 = inlined_call_operand.vmem [shape: f32[2,32,96], index: 4, kind: input, shape index: {}]
  %s5 = inlined_call_operand.hbm [shape: f32[2,1,96], index: 5, kind: input, shape index: {}]
  %s6 = inlined_call_operand.vmem [shape: f32[2,32,32], index: 6, kind: input, shape index: {}]
  %s7 = inlined_call_operand.hbm [shape: f32[2,1,32], index: 7, kind: input, shape index: {}]
  %s8 = inlined_call_operand.hbm [shape: f32[2,1,32], index: 8, kind: input, shape index: {}]
  %s9 = inlined_call_operand.hbm [shape: f32[2,1,32], index: 9, kind: input, shape index: {}]
  %s10 = inlined_call_operand.vmem [shape: f32[2,32,64], index: 10, kind: input, shape index: {}]
  %s11 = inlined_call_operand.hbm [shape: f32[2,1,64], index: 11, kind: input, shape index: {}]
  %s12 = inlined_call_operand.vmem [shape: f32[2,64,32], index: 12, kind: input, shape index: {}]
  %s13 = inlined_call_operand.hbm [shape: f32[2,1,32], index: 13, kind: input, shape index: {}]
  %s14 = inlined_call_operand.hbm [shape: f32[2,1,32], index: 14, kind: input, shape index: {}]
  %s15 = inlined_call_operand.hbm [shape: f32[2,1,32], index: 15, kind: input, shape index: {}]
  %s16 = inlined_call_operand.vmem [shape: f32[32,32], index: 16, kind: input, shape index: {}]
  %s17 = inlined_call_operand.hbm [shape: f32[1,32], index: 17, kind: input, shape index: {}]
  %s18 = inlined_call_operand.vmem [shape: f32[32,6], index: 18, kind: input, shape index: {}]
  %s19 = inlined_call_operand.vmem [shape: f32[1,6], index: 19, kind: input, shape index: {}]
  %s20 = inlined_call_operand.hbm [shape: f32[2,1,6], index: 20, kind: output, shape index: {}]
  %s21 = sld [smem:[#allocation0]]
  $region165: #{tpu_custom_call.1} parent=0
    _
  %s23 = ssub.s32 1, %s21
  %s24 = scalar_select 0, %s23, %s21
  $region1: #{tpu_custom_call.1} parent=0
    #allocation2 [shape = 'u8[8192]{0}', space=vmem, size = 0x2000, scoped, tag = 'input window, operand 0']
    #allocation3 [shape = 's32[2]{0}', space=sflag, size = 0x8, scoped, tag = 'scoped memory for tpu_custom_call.1']
    #allocation4 [shape = 's32[2]{0}', space=sflag, size = 0x8, scoped, tag = 'scoped memory for tpu_custom_call.1']
    #allocation5 [shape = 'u8[1024]{0}', space=vmem, size = 0x400, scoped, tag = 'input window, operand 1']
    #allocation6 [shape = 's32[2]{0}', space=sflag, size = 0x8, scoped, tag = 'scoped memory for tpu_custom_call.1']
    #allocation7 [shape = 'u8[512]{0}', space=vmem, size = 0x400, scoped, tag = 'input window, operand 2, single buffered']
    #allocation8 [shape = 'u8[512]{0}', space=vmem, size = 0x400, scoped, tag = 'input window, operand 3, single buffered']
    #allocation9 [shape = 's32[1]{0}', space=sflag, size = 0x4, scoped, tag = 'scoped memory for tpu_custom_call.1']
    #allocation10 [shape = 'u8[1024]{0}', space=vmem, size = 0x400, scoped, tag = 'input window, operand 5, single buffered']
    #allocation11 [shape = 'u8[1024]{0}', space=vmem, size = 0x400, scoped, tag = 'input window, operand 7, single buffered']
    #allocation12 [shape = 's32[1]{0}', space=sflag, size = 0x4, scoped, tag = 'scoped memory for tpu_custom_call.1']
    #allocation13 [shape = 'u8[1024]{0}', space=vmem, size = 0x400, scoped, tag = 'input window, operand 8, single buffered']
    #allocation14 [shape = 'u8[1024]{0}', space=vmem, size = 0x400, scoped, tag = 'input window, operand 9, single buffered']
    #allocation15 [shape = 's32[1]{0}', space=sflag, size = 0x4, scoped, tag = 'scoped memory for tpu_custom_call.1']
    #allocation16 [shape = 'u8[1024]{0}', space=vmem, size = 0x400, scoped, tag = 'input window, operand 11, single buffered']
    #allocation17 [shape = 'u8[1024]{0}', space=vmem, size = 0x400, scoped, tag = 'input window, operand 13, single buffered']
    #allocation18 [shape = 's32[1]{0}', space=sflag, size = 0x4, scoped, tag = 'scoped memory for tpu_custom_call.1']
    #allocation19 [shape = 'u8[1024]{0}', space=vmem, size = 0x400, scoped, tag = 'input window, operand 14, single buffered']
    #allocation20 [shape = 'u8[1024]{0}', space=vmem, size = 0x400, scoped, tag = 'input window, operand 15, single buffered']
    #allocation21 [shape = 's32[1]{0}', space=sflag, size = 0x4, scoped, tag = 'scoped memory for tpu_custom_call.1']
    #allocation22 [shape = 'u8[512]{0}', space=vmem, size = 0x400, scoped, tag = 'input window, operand 17, single buffered']
    #allocation23 [shape = 'u8[1024]{0}', space=vmem, size = 0x400, scoped, tag = 'output window, operand 0']
    %25 = vsyncpa [#allocation3], 0
    %s26 = scalar_lea.sflag [#allocation3], 1
    %27 = vsyncpa %s26, 0
    %28 = vsyncpa [#allocation6], 0
    %s29 = scalar_lea.sflag [#allocation6], 1
    %30 = vsyncpa %s29, 0
    %31 = vsyncpa [#allocation9], 0
    %32 = vsyncpa [#allocation12], 0
    %33 = vsyncpa [#allocation15], 0
    %34 = vsyncpa [#allocation18], 0
    %35 = vsyncpa [#allocation21], 0
    %36 = vsyncpa [#allocation4], 0
    %s37 = scalar_lea.sflag [#allocation4], 1
    %38 = vsyncpa %s37, 0
    loop: start=0, step=1, limit=4
    $region2: #{tpu_custom_call.1} parent=1 // loop_pre_header
      _
    $region3: #{tpu_custom_call.1} parent=1 // loop_header
      %s40 = sphi 0, %s44
      %p41 = scmp.ge.s32.totalorder %s40, 4
      %s50 = sphi 0, %s52
      %s53 = sphi 0, %s50
      %s54 = sphi 0, %s53
      %s70 = sphi 0, %s54
      %s76 = sphi 0, %s78
      %s79 = sphi 0, %s76
      %s80 = sphi 0, %s79
      %s96 = sphi 0, %s80
      %s100 = sphi 0, %s100
      %s102 = sphi 0, %s100
      %s103 = sphi 0, %s102
      %s117 = sphi 0, %s103
      %s121 = sphi 0, %s121
      %s123 = sphi 0, %s121
      %s124 = sphi 0, %s123
      %s138 = sphi 0, %s124
      %s142 = sphi 0, %s142
      %s144 = sphi 0, %s142
      %s145 = sphi 0, %s144
      %s159 = sphi 0, %s145
      %s163 = sphi 0, %s163
      %s165 = sphi 0, %s163
      %s166 = sphi 0, %s165
      %s180 = sphi 0, %s166
      %s184 = sphi 0, %s184
      %s186 = sphi 0, %s184
      %s187 = sphi 0, %s186
      %s201 = sphi 0, %s187
      %s205 = sphi 0, %s205
      %s207 = sphi 0, %s205
      %s208 = sphi 0, %s207
      %s222 = sphi 0, %s208
      %s226 = sphi 0, %s226
      %s228 = sphi 0, %s226
      %s229 = sphi 0, %s228
      %s243 = sphi 0, %s229
      %s247 = sphi 0, %s247
      %s249 = sphi 0, %s247
      %s250 = sphi 0, %s249
      %s264 = sphi 0, %s250
      %s268 = sphi 0, %s268
      %s270 = sphi 0, %s268
      %s271 = sphi 0, %s270
      %s285 = sphi 0, %s271
      %s289 = sphi 0, %s289
      %s291 = sphi 0, %s289
      %s292 = sphi 0, %s291
      %s306 = sphi 0, %s292
      %s310 = sphi 0, %s310
      %s312 = sphi 0, %s310
      %s313 = sphi 0, %s312
      %s327 = sphi 0, %s313
      %s331 = sphi 0, %s331
      %s333 = sphi 0, %s331
      %s334 = sphi 0, %s333
      %s348 = sphi 0, %s334
      %s352 = sphi 0, %s352
      %s354 = sphi 0, %s352
      %s355 = sphi 0, %s354
      %s369 = sphi 0, %s355
      %s373 = sphi 0, %s373
      %s375 = sphi 0, %s373
      %s376 = sphi 0, %s375
      %s390 = sphi 0, %s376
      %s394 = sphi 0, %s394
      %s396 = sphi 0, %s394
      %s397 = sphi 0, %s396
      %s411 = sphi 0, %s397
      %s415 = sphi 0, %s415
      %s417 = sphi 0, %s415
      %s418 = sphi 0, %s417
      %s432 = sphi 0, %s418
      %s436 = sphi 0, %s436
      %s438 = sphi 0, %s436
      %s439 = sphi 0, %s438
      %s453 = sphi 0, %s439
      %s457 = sphi 0, %s457
      %s459 = sphi 0, %s457
      %s460 = sphi 0, %s459
      %s474 = sphi 0, %s460
      %s480 = sphi 0, %s482
      %s483 = sphi 0, %s480
      %s484 = sphi 0, %s483
      %s500 = sphi 0, %s484
    $region4: #{tpu_custom_call.1} parent=1 // loop_header_branch
      %43 = sbr.rel (%p41) target = $region8
    $region5: #{tpu_custom_call.1} parent=1 // loop_body
      %s45 = ssub.s32 %s40, 1
      %s46 = ssub.s32 %s40, 2
      %s47 = sadd.s32 %s40, 1
      %s48 = ssub.s32 %s40, %s47
      %p49 = scmp.eq.s32.totalorder %s48, 0
      %s51 = sadd.s32 %s50, 1
      %s52 = scalar_select %p49, %s50, %s51
      %p55 = pneg %p49
      %p56 = scmp.eq.s32.totalorder %s40, 1
      %p57 = por %p55, %p56
      %p58 = scmp.ne.s32.totalorder %s50, %s53
      %p59 = scmp.eq.s32.totalorder %s40, 0
      %p60 = por %p58, %p59
      %p61 = scmp.ne.s32.totalorder %s50, %s53
      %p62 = scmp.eq.s32.totalorder %s45, 1
      %p63 = por %p61, %p62
      %p64 = scmp.ne.s32.totalorder %s53, %s54
      %p65 = scmp.eq.s32.totalorder %s45, 0
      %p66 = por %p64, %p65
      %p67 = scmp.ne.s32.totalorder %s53, %s54
      %p68 = scmp.eq.s32.totalorder %s46, 1
      %p69 = por %p67, %p68
      %p71 = scmp.ne.s32.totalorder %s54, %s70
      %p72 = scmp.eq.s32.totalorder %s46, 0
      %p73 = por %p71, %p72
      %s74 = ssub.s32 %s40, %s47
      %p75 = scmp.eq.s32.totalorder %s74, 0
      %s77 = sadd.s32 %s76, 1
      %s78 = scalar_select %p75, %s76, %s77
      %p81 = pneg %p75
      %p82 = scmp.eq.s32.totalorder %s40, 1
      %p83 = por %p81, %p82
      %p84 = scmp.ne.s32.totalorder %s76, %s79
      %p85 = scmp.eq.s32.totalorder %s40, 0
      %p86 = por %p84, %p85
      %p87 = scmp.ne.s32.totalorder %s76, %s79
      %p88 = scmp.eq.s32.totalorder %s45, 1
      %p89 = por %p87, %p88
      %p90 = scmp.ne.s32.totalorder %s79, %s80
      %p91 = scmp.eq.s32.totalorder %s45, 0
      %p92 = por %p90, %p91
      %p93 = scmp.ne.s32.totalorder %s79, %s80
      %p94 = scmp.eq.s32.totalorder %s46, 1
      %p95 = por %p93, %p94
      %p97 = scmp.ne.s32.totalorder %s80, %s96
      %p98 = scmp.eq.s32.totalorder %s46, 0
      %p99 = por %p97, %p98
      %s101 = sadd.s32 %s100, 1
      %p104 = scmp.eq.s32.totalorder %s40, 1
      %p105 = scmp.ne.s32.totalorder %s100, %s102
      %p106 = scmp.eq.s32.totalorder %s40, 0
      %p107 = por %p105, %p106
      %p108 = scmp.ne.s32.totalorder %s100, %s102
      %p109 = scmp.eq.s32.totalorder %s45, 1
      %p110 = por %p108, %p109
      %p111 = scmp.ne.s32.totalorder %s102, %s103
      %p112 = scmp.eq.s32.totalorder %s45, 0
      %p113 = por %p111, %p112
      %p114 = scmp.ne.s32.totalorder %s102, %s103
      %p115 = scmp.eq.s32.totalorder %s46, 1
      %p116 = por %p114, %p115
      %p118 = scmp.ne.s32.totalorder %s103, %s117
      %p119 = scmp.eq.s32.totalorder %s46, 0
      %p120 = por %p118, %p119
      %s122 = sadd.s32 %s121, 1
      %p125 = scmp.eq.s32.totalorder %s40, 1
      %p126 = scmp.ne.s32.totalorder %s121, %s123
      %p127 = scmp.eq.s32.totalorder %s40, 0
      %p128 = por %p126, %p127
      %p129 = scmp.ne.s32.totalorder %s121, %s123
      %p130 = scmp.eq.s32.totalorder %s45, 1
      %p131 = por %p129, %p130
      %p132 = scmp.ne.s32.totalorder %s123, %s124
      %p133 = scmp.eq.s32.totalorder %s45, 0
      %p134 = por %p132, %p133
      %p135 = scmp.ne.s32.totalorder %s123, %s124
      %p136 = scmp.eq.s32.totalorder %s46, 1
      %p137 = por %p135, %p136
      %p139 = scmp.ne.s32.totalorder %s124, %s138
      %p140 = scmp.eq.s32.totalorder %s46, 0
      %p141 = por %p139, %p140
      %s143 = sadd.s32 %s142, 1
      %p146 = scmp.eq.s32.totalorder %s40, 1
      %p147 = scmp.ne.s32.totalorder %s142, %s144
      %p148 = scmp.eq.s32.totalorder %s40, 0
      %p149 = por %p147, %p148
      %p150 = scmp.ne.s32.totalorder %s142, %s144
      %p151 = scmp.eq.s32.totalorder %s45, 1
      %p152 = por %p150, %p151
      %p153 = scmp.ne.s32.totalorder %s144, %s145
      %p154 = scmp.eq.s32.totalorder %s45, 0
      %p155 = por %p153, %p154
      %p156 = scmp.ne.s32.totalorder %s144, %s145
      %p157 = scmp.eq.s32.totalorder %s46, 1
      %p158 = por %p156, %p157
      %p160 = scmp.ne.s32.totalorder %s145, %s159
      %p161 = scmp.eq.s32.totalorder %s46, 0
      %p162 = por %p160, %p161
      %s164 = sadd.s32 %s163, 1
      %p167 = scmp.eq.s32.totalorder %s40, 1
      %p168 = scmp.ne.s32.totalorder %s163, %s165
      %p169 = scmp.eq.s32.totalorder %s40, 0
      %p170 = por %p168, %p169
      %p171 = scmp.ne.s32.totalorder %s163, %s165
      %p172 = scmp.eq.s32.totalorder %s45, 1
      %p173 = por %p171, %p172
      %p174 = scmp.ne.s32.totalorder %s165, %s166
      %p175 = scmp.eq.s32.totalorder %s45, 0
      %p176 = por %p174, %p175
      %p177 = scmp.ne.s32.totalorder %s165, %s166
      %p178 = scmp.eq.s32.totalorder %s46, 1
      %p179 = por %p177, %p178
      %p181 = scmp.ne.s32.totalorder %s166, %s180
      %p182 = scmp.eq.s32.totalorder %s46, 0
      %p183 = por %p181, %p182
      %s185 = sadd.s32 %s184, 1
      %p188 = scmp.eq.s32.totalorder %s40, 1
      %p189 = scmp.ne.s32.totalorder %s184, %s186
      %p190 = scmp.eq.s32.totalorder %s40, 0
      %p191 = por %p189, %p190
      %p192 = scmp.ne.s32.totalorder %s184, %s186
      %p193 = scmp.eq.s32.totalorder %s45, 1
      %p194 = por %p192, %p193
      %p195 = scmp.ne.s32.totalorder %s186, %s187
      %p196 = scmp.eq.s32.totalorder %s45, 0
      %p197 = por %p195, %p196
      %p198 = scmp.ne.s32.totalorder %s186, %s187
      %p199 = scmp.eq.s32.totalorder %s46, 1
      %p200 = por %p198, %p199
      %p202 = scmp.ne.s32.totalorder %s187, %s201
      %p203 = scmp.eq.s32.totalorder %s46, 0
      %p204 = por %p202, %p203
      %s206 = sadd.s32 %s205, 1
      %p209 = scmp.eq.s32.totalorder %s40, 1
      %p210 = scmp.ne.s32.totalorder %s205, %s207
      %p211 = scmp.eq.s32.totalorder %s40, 0
      %p212 = por %p210, %p211
      %p213 = scmp.ne.s32.totalorder %s205, %s207
      %p214 = scmp.eq.s32.totalorder %s45, 1
      %p215 = por %p213, %p214
      %p216 = scmp.ne.s32.totalorder %s207, %s208
      %p217 = scmp.eq.s32.totalorder %s45, 0
      %p218 = por %p216, %p217
      %p219 = scmp.ne.s32.totalorder %s207, %s208
      %p220 = scmp.eq.s32.totalorder %s46, 1
      %p221 = por %p219, %p220
      %p223 = scmp.ne.s32.totalorder %s208, %s222
      %p224 = scmp.eq.s32.totalorder %s46, 0
      %p225 = por %p223, %p224
      %s227 = sadd.s32 %s226, 1
      %p230 = scmp.eq.s32.totalorder %s40, 1
      %p231 = scmp.ne.s32.totalorder %s226, %s228
      %p232 = scmp.eq.s32.totalorder %s40, 0
      %p233 = por %p231, %p232
      %p234 = scmp.ne.s32.totalorder %s226, %s228
      %p235 = scmp.eq.s32.totalorder %s45, 1
      %p236 = por %p234, %p235
      %p237 = scmp.ne.s32.totalorder %s228, %s229
      %p238 = scmp.eq.s32.totalorder %s45, 0
      %p239 = por %p237, %p238
      %p240 = scmp.ne.s32.totalorder %s228, %s229
      %p241 = scmp.eq.s32.totalorder %s46, 1
      %p242 = por %p240, %p241
      %p244 = scmp.ne.s32.totalorder %s229, %s243
      %p245 = scmp.eq.s32.totalorder %s46, 0
      %p246 = por %p244, %p245
      %s248 = sadd.s32 %s247, 1
      %p251 = scmp.eq.s32.totalorder %s40, 1
      %p252 = scmp.ne.s32.totalorder %s247, %s249
      %p253 = scmp.eq.s32.totalorder %s40, 0
      %p254 = por %p252, %p253
      %p255 = scmp.ne.s32.totalorder %s247, %s249
      %p256 = scmp.eq.s32.totalorder %s45, 1
      %p257 = por %p255, %p256
      %p258 = scmp.ne.s32.totalorder %s249, %s250
      %p259 = scmp.eq.s32.totalorder %s45, 0
      %p260 = por %p258, %p259
      %p261 = scmp.ne.s32.totalorder %s249, %s250
      %p262 = scmp.eq.s32.totalorder %s46, 1
      %p263 = por %p261, %p262
      %p265 = scmp.ne.s32.totalorder %s250, %s264
      %p266 = scmp.eq.s32.totalorder %s46, 0
      %p267 = por %p265, %p266
      %s269 = sadd.s32 %s268, 1
      %p272 = scmp.eq.s32.totalorder %s40, 1
      %p273 = scmp.ne.s32.totalorder %s268, %s270
      %p274 = scmp.eq.s32.totalorder %s40, 0
      %p275 = por %p273, %p274
      %p276 = scmp.ne.s32.totalorder %s268, %s270
      %p277 = scmp.eq.s32.totalorder %s45, 1
      %p278 = por %p276, %p277
      %p279 = scmp.ne.s32.totalorder %s270, %s271
      %p280 = scmp.eq.s32.totalorder %s45, 0
      %p281 = por %p279, %p280
      %p282 = scmp.ne.s32.totalorder %s270, %s271
      %p283 = scmp.eq.s32.totalorder %s46, 1
      %p284 = por %p282, %p283
      %p286 = scmp.ne.s32.totalorder %s271, %s285
      %p287 = scmp.eq.s32.totalorder %s46, 0
      %p288 = por %p286, %p287
      %s290 = sadd.s32 %s289, 1
      %p293 = scmp.eq.s32.totalorder %s40, 1
      %p294 = scmp.ne.s32.totalorder %s289, %s291
      %p295 = scmp.eq.s32.totalorder %s40, 0
      %p296 = por %p294, %p295
      %p297 = scmp.ne.s32.totalorder %s289, %s291
      %p298 = scmp.eq.s32.totalorder %s45, 1
      %p299 = por %p297, %p298
      %p300 = scmp.ne.s32.totalorder %s291, %s292
      %p301 = scmp.eq.s32.totalorder %s45, 0
      %p302 = por %p300, %p301
      %p303 = scmp.ne.s32.totalorder %s291, %s292
      %p304 = scmp.eq.s32.totalorder %s46, 1
      %p305 = por %p303, %p304
      %p307 = scmp.ne.s32.totalorder %s292, %s306
      %p308 = scmp.eq.s32.totalorder %s46, 0
      %p309 = por %p307, %p308
      %s311 = sadd.s32 %s310, 1
      %p314 = scmp.eq.s32.totalorder %s40, 1
      %p315 = scmp.ne.s32.totalorder %s310, %s312
      %p316 = scmp.eq.s32.totalorder %s40, 0
      %p317 = por %p315, %p316
      %p318 = scmp.ne.s32.totalorder %s310, %s312
      %p319 = scmp.eq.s32.totalorder %s45, 1
      %p320 = por %p318, %p319
      %p321 = scmp.ne.s32.totalorder %s312, %s313
      %p322 = scmp.eq.s32.totalorder %s45, 0
      %p323 = por %p321, %p322
      %p324 = scmp.ne.s32.totalorder %s312, %s313
      %p325 = scmp.eq.s32.totalorder %s46, 1
      %p326 = por %p324, %p325
      %p328 = scmp.ne.s32.totalorder %s313, %s327
      %p329 = scmp.eq.s32.totalorder %s46, 0
      %p330 = por %p328, %p329
      %s332 = sadd.s32 %s331, 1
      %p335 = scmp.eq.s32.totalorder %s40, 1
      %p336 = scmp.ne.s32.totalorder %s331, %s333
      %p337 = scmp.eq.s32.totalorder %s40, 0
      %p338 = por %p336, %p337
      %p339 = scmp.ne.s32.totalorder %s331, %s333
      %p340 = scmp.eq.s32.totalorder %s45, 1
      %p341 = por %p339, %p340
      %p342 = scmp.ne.s32.totalorder %s333, %s334
      %p343 = scmp.eq.s32.totalorder %s45, 0
      %p344 = por %p342, %p343
      %p345 = scmp.ne.s32.totalorder %s333, %s334
      %p346 = scmp.eq.s32.totalorder %s46, 1
      %p347 = por %p345, %p346
      %p349 = scmp.ne.s32.totalorder %s334, %s348
      %p350 = scmp.eq.s32.totalorder %s46, 0
      %p351 = por %p349, %p350
      %s353 = sadd.s32 %s352, 1
      %p356 = scmp.eq.s32.totalorder %s40, 1
      %p357 = scmp.ne.s32.totalorder %s352, %s354
      %p358 = scmp.eq.s32.totalorder %s40, 0
      %p359 = por %p357, %p358
      %p360 = scmp.ne.s32.totalorder %s352, %s354
      %p361 = scmp.eq.s32.totalorder %s45, 1
      %p362 = por %p360, %p361
      %p363 = scmp.ne.s32.totalorder %s354, %s355
      %p364 = scmp.eq.s32.totalorder %s45, 0
      %p365 = por %p363, %p364
      %p366 = scmp.ne.s32.totalorder %s354, %s355
      %p367 = scmp.eq.s32.totalorder %s46, 1
      %p368 = por %p366, %p367
      %p370 = scmp.ne.s32.totalorder %s355, %s369
      %p371 = scmp.eq.s32.totalorder %s46, 0
      %p372 = por %p370, %p371
      %s374 = sadd.s32 %s373, 1
      %p377 = scmp.eq.s32.totalorder %s40, 1
      %p378 = scmp.ne.s32.totalorder %s373, %s375
      %p379 = scmp.eq.s32.totalorder %s40, 0
      %p380 = por %p378, %p379
      %p381 = scmp.ne.s32.totalorder %s373, %s375
      %p382 = scmp.eq.s32.totalorder %s45, 1
      %p383 = por %p381, %p382
      %p384 = scmp.ne.s32.totalorder %s375, %s376
      %p385 = scmp.eq.s32.totalorder %s45, 0
      %p386 = por %p384, %p385
      %p387 = scmp.ne.s32.totalorder %s375, %s376
      %p388 = scmp.eq.s32.totalorder %s46, 1
      %p389 = por %p387, %p388
      %p391 = scmp.ne.s32.totalorder %s376, %s390
      %p392 = scmp.eq.s32.totalorder %s46, 0
      %p393 = por %p391, %p392
      %s395 = sadd.s32 %s394, 1
      %p398 = scmp.eq.s32.totalorder %s40, 1
      %p399 = scmp.ne.s32.totalorder %s394, %s396
      %p400 = scmp.eq.s32.totalorder %s40, 0
      %p401 = por %p399, %p400
      %p402 = scmp.ne.s32.totalorder %s394, %s396
      %p403 = scmp.eq.s32.totalorder %s45, 1
      %p404 = por %p402, %p403
      %p405 = scmp.ne.s32.totalorder %s396, %s397
      %p406 = scmp.eq.s32.totalorder %s45, 0
      %p407 = por %p405, %p406
      %p408 = scmp.ne.s32.totalorder %s396, %s397
      %p409 = scmp.eq.s32.totalorder %s46, 1
      %p410 = por %p408, %p409
      %p412 = scmp.ne.s32.totalorder %s397, %s411
      %p413 = scmp.eq.s32.totalorder %s46, 0
      %p414 = por %p412, %p413
      %s416 = sadd.s32 %s415, 1
      %p419 = scmp.eq.s32.totalorder %s40, 1
      %p420 = scmp.ne.s32.totalorder %s415, %s417
      %p421 = scmp.eq.s32.totalorder %s40, 0
      %p422 = por %p420, %p421
      %p423 = scmp.ne.s32.totalorder %s415, %s417
      %p424 = scmp.eq.s32.totalorder %s45, 1
      %p425 = por %p423, %p424
      %p426 = scmp.ne.s32.totalorder %s417, %s418
      %p427 = scmp.eq.s32.totalorder %s45, 0
      %p428 = por %p426, %p427
      %p429 = scmp.ne.s32.totalorder %s417, %s418
      %p430 = scmp.eq.s32.totalorder %s46, 1
      %p431 = por %p429, %p430
      %p433 = scmp.ne.s32.totalorder %s418, %s432
      %p434 = scmp.eq.s32.totalorder %s46, 0
      %p435 = por %p433, %p434
      %s437 = sadd.s32 %s436, 1
      %p440 = scmp.eq.s32.totalorder %s40, 1
      %p441 = scmp.ne.s32.totalorder %s436, %s438
      %p442 = scmp.eq.s32.totalorder %s40, 0
      %p443 = por %p441, %p442
      %p444 = scmp.ne.s32.totalorder %s436, %s438
      %p445 = scmp.eq.s32.totalorder %s45, 1
      %p446 = por %p444, %p445
      %p447 = scmp.ne.s32.totalorder %s438, %s439
      %p448 = scmp.eq.s32.totalorder %s45, 0
      %p449 = por %p447, %p448
      %p450 = scmp.ne.s32.totalorder %s438, %s439
      %p451 = scmp.eq.s32.totalorder %s46, 1
      %p452 = por %p450, %p451
      %p454 = scmp.ne.s32.totalorder %s439, %s453
      %p455 = scmp.eq.s32.totalorder %s46, 0
      %p456 = por %p454, %p455
      %s458 = sadd.s32 %s457, 1
      %p461 = scmp.eq.s32.totalorder %s40, 1
      %p462 = scmp.ne.s32.totalorder %s457, %s459
      %p463 = scmp.eq.s32.totalorder %s40, 0
      %p464 = por %p462, %p463
      %p465 = scmp.ne.s32.totalorder %s457, %s459
      %p466 = scmp.eq.s32.totalorder %s45, 1
      %p467 = por %p465, %p466
      %p468 = scmp.ne.s32.totalorder %s459, %s460
      %p469 = scmp.eq.s32.totalorder %s45, 0
      %p470 = por %p468, %p469
      %p471 = scmp.ne.s32.totalorder %s459, %s460
      %p472 = scmp.eq.s32.totalorder %s46, 1
      %p473 = por %p471, %p472
      %p475 = scmp.ne.s32.totalorder %s460, %s474
      %p476 = scmp.eq.s32.totalorder %s46, 0
      %p477 = por %p475, %p476
      %s478 = ssub.s32 %s40, %s47
      %p479 = scmp.eq.s32.totalorder %s478, 0
      %s481 = sadd.s32 %s480, 1
      %s482 = scalar_select %p479, %s480, %s481
      %p485 = pneg %p479
      %p486 = scmp.eq.s32.totalorder %s40, 1
      %p487 = por %p485, %p486
      %p488 = scmp.ne.s32.totalorder %s480, %s483
      %p489 = scmp.eq.s32.totalorder %s40, 0
      %p490 = por %p488, %p489
      %p491 = scmp.ne.s32.totalorder %s480, %s483
      %p492 = scmp.eq.s32.totalorder %s45, 1
      %p493 = por %p491, %p492
      %p494 = scmp.ne.s32.totalorder %s483, %s484
      %p495 = scmp.eq.s32.totalorder %s45, 0
      %p496 = por %p494, %p495
      %p497 = scmp.ne.s32.totalorder %s483, %s484
      %p498 = scmp.eq.s32.totalorder %s46, 1
      %p499 = por %p497, %p498
      %p501 = scmp.ne.s32.totalorder %s484, %s500
      %p502 = scmp.eq.s32.totalorder %s46, 0
      %p503 = por %p501, %p502
      %p504 = scmp.le.s32.totalorder 1, %s40
      %p505 = scmp.lt.s32.totalorder %s40, 3
      %p506 = pnand %p504, %p505
      %p507 = pneg %p506
      // Predicated region
      $region9: #{tpu_custom_call.1} parent=5 // pred_check
        _
      $region10: #{tpu_custom_call.1} parent=5 // pred_check_branch
        %509 = sbr.rel (%p506) target = $region12
      $region11: #{tpu_custom_call.1} parent=5 // pred_region
        %s510 = ssub.s32 %s40, 1
        // Predicated region
        $region13: #{tpu_custom_call.1} parent=11 // pred_check
          %p511 = pneg %p113
        $region14: #{tpu_custom_call.1} parent=11 // pred_check_branch
          %513 = sbr.rel (%p511) target = $region16
        $region15: #{tpu_custom_call.1} parent=11 // pred_region
          %s515 = ssub.s32 16, 16
          %516 = vsyncadd [#allocation6], %s515
          %s518 = sshll.u32 [#allocation7], 4
          %s519 = int_to_ptr.vmem [resolvable:$true] %s518
          %521 = dma.hbm_to_vmem [thread:$0]  %s2, 16, %s519, [#allocation6]
        $region16: #{tpu_custom_call.1} parent=11 // pred_fallthru
          _
        // Predicated region
        $region17: #{tpu_custom_call.1} parent=11 // pred_check
          %p522 = pneg %p134
        $region18: #{tpu_custom_call.1} parent=11 // pred_check_branch
          %524 = sbr.rel (%p522) target = $region20
        $region19: #{tpu_custom_call.1} parent=11 // pred_region
          %s526 = ssub.s32 16, 16
          %527 = vsyncadd [#allocation9], %s526
          %s529 = sshll.u32 [#allocation8], 4
          %s530 = int_to_ptr.vmem [resolvable:$true] %s529
          %532 = dma.hbm_to_vmem [thread:$0]  %s3, 16, %s530, [#allocation9]
        $region20: #{tpu_custom_call.1} parent=11 // pred_fallthru
          _
        // Predicated region
        $region21: #{tpu_custom_call.1} parent=11 // pred_check
          %p533 = pneg %p155
        $region22: #{tpu_custom_call.1} parent=11 // pred_check_branch
          %535 = sbr.rel (%p533) target = $region24
        $region23: #{tpu_custom_call.1} parent=11 // pred_region
          _
        $region24: #{tpu_custom_call.1} parent=11 // pred_fallthru
          _
        // Predicated region
        $region25: #{tpu_custom_call.1} parent=11 // pred_check
          %p536 = pneg %p176
        $region26: #{tpu_custom_call.1} parent=11 // pred_check_branch
          %538 = sbr.rel (%p536) target = $region28
        $region27: #{tpu_custom_call.1} parent=11 // pred_region
          %s540 = ssub.s32 32, 32
          %541 = vsyncadd [#allocation9], %s540
          %s542 = sshll.u32 [#allocation10], 4
          %s543 = int_to_ptr.vmem [resolvable:$true] %s542
          %548 = dma.hbm_to_vmem [thread:$0]  %s5, 32, %s543, [#allocation9], 16, 16, 1
        $region28: #{tpu_custom_call.1} parent=11 // pred_fallthru
          _
        // Predicated region
        $region29: #{tpu_custom_call.1} parent=11 // pred_check
          %p549 = pneg %p197
        $region30: #{tpu_custom_call.1} parent=11 // pred_check_branch
          %551 = sbr.rel (%p549) target = $region32
        $region31: #{tpu_custom_call.1} parent=11 // pred_region
          _
        $region32: #{tpu_custom_call.1} parent=11 // pred_fallthru
          _
        // Predicated region
        $region33: #{tpu_custom_call.1} parent=11 // pred_check
          %p552 = pneg %p218
        $region34: #{tpu_custom_call.1} parent=11 // pred_check_branch
          %554 = sbr.rel (%p552) target = $region36
        $region35: #{tpu_custom_call.1} parent=11 // pred_region
          %s556 = ssub.s32 32, 32
          %557 = vsyncadd [#allocation12], %s556
          %s558 = sshll.u32 [#allocation11], 4
          %s559 = int_to_ptr.vmem [resolvable:$true] %s558
          %564 = dma.hbm_to_vmem [thread:$0]  %s7, 32, %s559, [#allocation12], 16, 16, 1
        $region36: #{tpu_custom_call.1} parent=11 // pred_fallthru
          _
        // Predicated region
        $region37: #{tpu_custom_call.1} parent=11 // pred_check
          %p565 = pneg %p239
        $region38: #{tpu_custom_call.1} parent=11 // pred_check_branch
          %567 = sbr.rel (%p565) target = $region40
        $region39: #{tpu_custom_call.1} parent=11 // pred_region
          %s569 = ssub.s32 32, 32
          %570 = vsyncadd [#allocation12], %s569
          %s571 = sshll.u32 [#allocation13], 4
          %s572 = int_to_ptr.vmem [resolvable:$true] %s571
          %577 = dma.hbm_to_vmem [thread:$0]  %s8, 32, %s572, [#allocation12], 16, 16, 1
        $region40: #{tpu_custom_call.1} parent=11 // pred_fallthru
          _
        // Predicated region
        $region41: #{tpu_custom_call.1} parent=11 // pred_check
          %p578 = pneg %p260
        $region42: #{tpu_custom_call.1} parent=11 // pred_check_branch
          %580 = sbr.rel (%p578) target = $region44
        $region43: #{tpu_custom_call.1} parent=11 // pred_region
          %s582 = ssub.s32 32, 32
          %583 = vsyncadd [#allocation15], %s582
          %s584 = sshll.u32 [#allocation14], 4
          %s585 = int_to_ptr.vmem [resolvable:$true] %s584
          %590 = dma.hbm_to_vmem [thread:$0]  %s9, 32, %s585, [#allocation15], 16, 16, 1
        $region44: #{tpu_custom_call.1} parent=11 // pred_fallthru
          _
        // Predicated region
        $region45: #{tpu_custom_call.1} parent=11 // pred_check
          %p591 = pneg %p281
        $region46: #{tpu_custom_call.1} parent=11 // pred_check_branch
          %593 = sbr.rel (%p591) target = $region48
        $region47: #{tpu_custom_call.1} parent=11 // pred_region
          _
        $region48: #{tpu_custom_call.1} parent=11 // pred_fallthru
          _
        // Predicated region
        $region49: #{tpu_custom_call.1} parent=11 // pred_check
          %p594 = pneg %p302
        $region50: #{tpu_custom_call.1} parent=11 // pred_check_branch
          %596 = sbr.rel (%p594) target = $region52
        $region51: #{tpu_custom_call.1} parent=11 // pred_region
          %s598 = ssub.s32 32, 32
          %599 = vsyncadd [#allocation15], %s598
          %s600 = sshll.u32 [#allocation16], 4
          %s601 = int_to_ptr.vmem [resolvable:$true] %s600
          %606 = dma.hbm_to_vmem [thread:$0]  %s11, 32, %s601, [#allocation15], 16, 16, 1
        $region52: #{tpu_custom_call.1} parent=11 // pred_fallthru
          _
        // Predicated region
        $region53: #{tpu_custom_call.1} parent=11 // pred_check
          %p607 = pneg %p323
        $region54: #{tpu_custom_call.1} parent=11 // pred_check_branch
          %609 = sbr.rel (%p607) target = $region56
        $region55: #{tpu_custom_call.1} parent=11 // pred_region
          _
        $region56: #{tpu_custom_call.1} parent=11 // pred_fallthru
          _
        // Predicated region
        $region57: #{tpu_custom_call.1} parent=11 // pred_check
          %p610 = pneg %p344
        $region58: #{tpu_custom_call.1} parent=11 // pred_check_branch
          %612 = sbr.rel (%p610) target = $region60
        $region59: #{tpu_custom_call.1} parent=11 // pred_region
          %s614 = ssub.s32 32, 32
          %615 = vsyncadd [#allocation18], %s614
          %s616 = sshll.u32 [#allocation17], 4
          %s617 = int_to_ptr.vmem [resolvable:$true] %s616
          %622 = dma.hbm_to_vmem [thread:$0]  %s13, 32, %s617, [#allocation18], 16, 16, 1
        $region60: #{tpu_custom_call.1} parent=11 // pred_fallthru
          _
        // Predicated region
        $region61: #{tpu_custom_call.1} parent=11 // pred_check
          %p623 = pneg %p365
        $region62: #{tpu_custom_call.1} parent=11 // pred_check_branch
          %625 = sbr.rel (%p623) target = $region64
        $region63: #{tpu_custom_call.1} parent=11 // pred_region
          %s627 = ssub.s32 32, 32
          %628 = vsyncadd [#allocation18], %s627
          %s629 = sshll.u32 [#allocation19], 4
          %s630 = int_to_ptr.vmem [resolvable:$true] %s629
          %635 = dma.hbm_to_vmem [thread:$0]  %s14, 32, %s630, [#allocation18], 16, 16, 1
        $region64: #{tpu_custom_call.1} parent=11 // pred_fallthru
          _
        // Predicated region
        $region65: #{tpu_custom_call.1} parent=11 // pred_check
          %p636 = pneg %p386
        $region66: #{tpu_custom_call.1} parent=11 // pred_check_branch
          %638 = sbr.rel (%p636) target = $region68
        $region67: #{tpu_custom_call.1} parent=11 // pred_region
          %s640 = ssub.s32 32, 32
          %641 = vsyncadd [#allocation21], %s640
          %s642 = sshll.u32 [#allocation20], 4
          %s643 = int_to_ptr.vmem [resolvable:$true] %s642
          %648 = dma.hbm_to_vmem [thread:$0]  %s15, 32, %s643, [#allocation21], 16, 16, 1
        $region68: #{tpu_custom_call.1} parent=11 // pred_fallthru
          _
        // Predicated region
        $region69: #{tpu_custom_call.1} parent=11 // pred_check
          %p649 = pneg %p407
        $region70: #{tpu_custom_call.1} parent=11 // pred_check_branch
          %651 = sbr.rel (%p649) target = $region72
        $region71: #{tpu_custom_call.1} parent=11 // pred_region
          _
        $region72: #{tpu_custom_call.1} parent=11 // pred_fallthru
          _
        // Predicated region
        $region73: #{tpu_custom_call.1} parent=11 // pred_check
          %p652 = pneg %p428
        $region74: #{tpu_custom_call.1} parent=11 // pred_check_branch
          %654 = sbr.rel (%p652) target = $region76
        $region75: #{tpu_custom_call.1} parent=11 // pred_region
          %s656 = ssub.s32 16, 16
          %657 = vsyncadd [#allocation21], %s656
          %s659 = sshll.u32 [#allocation22], 4
          %s660 = int_to_ptr.vmem [resolvable:$true] %s659
          %662 = dma.hbm_to_vmem [thread:$0]  %s17, 16, %s660, [#allocation21]
        $region76: #{tpu_custom_call.1} parent=11 // pred_fallthru
          _
        // Predicated region
        $region77: #{tpu_custom_call.1} parent=11 // pred_check
          %p663 = pneg %p449
        $region78: #{tpu_custom_call.1} parent=11 // pred_check_branch
          %665 = sbr.rel (%p663) target = $region80
        $region79: #{tpu_custom_call.1} parent=11 // pred_region
          _
        $region80: #{tpu_custom_call.1} parent=11 // pred_fallthru
          _
        // Predicated region
        $region81: #{tpu_custom_call.1} parent=11 // pred_check
          %p666 = pneg %p470
        $region82: #{tpu_custom_call.1} parent=11 // pred_check_branch
          %668 = sbr.rel (%p666) target = $region84
        $region83: #{tpu_custom_call.1} parent=11 // pred_region
          _
        $region84: #{tpu_custom_call.1} parent=11 // pred_fallthru
          _
      $region12: #{tpu_custom_call.1} parent=5 // pred_fallthru
        _
      %p669 = scmp.lt.s32.totalorder %s40, 2
      // Predicated region
      $region85: #{tpu_custom_call.1} parent=5 // pred_check
        %p670 = pneg %p669
      $region86: #{tpu_custom_call.1} parent=5 // pred_check_branch
        %672 = sbr.rel (%p670) target = $region88
      $region87: #{tpu_custom_call.1} parent=5 // pred_region
        // Predicated region
        $region89: #{tpu_custom_call.1} parent=87 // pred_check
          %p673 = pneg %p60
        $region90: #{tpu_custom_call.1} parent=87 // pred_check_branch
          %675 = sbr.rel (%p673) target = $region92
        $region91: #{tpu_custom_call.1} parent=87 // pred_region
          %s676 = sand.u32 %s50, 1
          %s677 = scalar_lea.sflag [#allocation3], %s676
          %s678 = sand.u32 %s50, 1
          %s679 = smul.addr %s678, 8
          %s680 = scalar_lea.vmem [#allocation2], %s679
          %s682 = ssub.s32 128, 128
          %683 = vsyncadd %s677, %s682
          %s684 = smul.addr %s40, 128
          %s685 = scalar_lea.hbm %s0, %s684
          %s687 = sshll.u32 %s680, 4
          %s688 = int_to_ptr.vmem [resolvable:$true] %s687
          %690 = dma.hbm_to_vmem [thread:$0]  %s685, 128, %s688, %s677
        $region92: #{tpu_custom_call.1} parent=87 // pred_fallthru
          _
        // Predicated region
        $region93: #{tpu_custom_call.1} parent=87 // pred_check
          %p691 = pneg %p86
        $region94: #{tpu_custom_call.1} parent=87 // pred_check_branch
          %693 = sbr.rel (%p691) target = $region96
        $region95: #{tpu_custom_call.1} parent=87 // pred_region
          %s694 = sand.u32 %s40, 1
          %s695 = scalar_lea.sflag [#allocation6], %s694
          %s696 = sand.u32 %s76, 1
          %s697 = scalar_lea.vmem [#allocation5], %s696
          %s699 = ssub.s32 16, 16
          %700 = vsyncadd %s695, %s699
          %s701 = smul.addr %s40, 16
          %s702 = scalar_lea.hbm %s1, %s701
          %s704 = sshll.u32 %s697, 4
          %s705 = int_to_ptr.vmem [resolvable:$true] %s704
          %707 = dma.hbm_to_vmem [thread:$0]  %s702, 16, %s705, %s695
        $region96: #{tpu_custom_call.1} parent=87 // pred_fallthru
          _
      $region88: #{tpu_custom_call.1} parent=5 // pred_fallthru
        _
      %p708 = scmp.le.s32.totalorder 1, %s40
      %p709 = scmp.lt.s32.totalorder %s40, 3
      %p710 = pnand %p708, %p709
      %p711 = pneg %p710
      // Predicated region
      $region97: #{tpu_custom_call.1} parent=5 // pred_check
        _
      $region98: #{tpu_custom_call.1} parent=5 // pred_check_branch
        %713 = sbr.rel (%p710) target = $region100
      $region99: #{tpu_custom_call.1} parent=5 // pred_region
        %s714 = ssub.s32 %s40, 1
        %s715 = sand.u32 %s53, 1
        %s716 = scalar_lea.sflag [#allocation3], %s715
        %s717 = sand.u32 %s53, 1
        %s718 = smul.addr %s717, 8
        %s719 = scalar_lea.vmem [#allocation2], %s718
        // Predicated region
        $region101: #{tpu_custom_call.1} parent=99 // pred_check
          %p720 = pneg %p66
        $region102: #{tpu_custom_call.1} parent=99 // pred_check_branch
          %722 = sbr.rel (%p720) target = $region104
        $region103: #{tpu_custom_call.1} parent=99 // pred_region
          %723 = dma.done %s716, 128
        $region104: #{tpu_custom_call.1} parent=99 // pred_fallthru
          _
        %s724 = sand.u32 %s45, 1
        %s725 = scalar_lea.sflag [#allocation6], %s724
        %s726 = sand.u32 %s79, 1
        %s727 = scalar_lea.vmem [#allocation5], %s726
        // Predicated region
        $region105: #{tpu_custom_call.1} parent=99 // pred_check
          %p728 = pneg %p92
        $region106: #{tpu_custom_call.1} parent=99 // pred_check_branch
          %730 = sbr.rel (%p728) target = $region108
        $region107: #{tpu_custom_call.1} parent=99 // pred_region
          %731 = dma.done %s725, 16
        $region108: #{tpu_custom_call.1} parent=99 // pred_fallthru
          _
        // Predicated region
        $region109: #{tpu_custom_call.1} parent=99 // pred_check
          %p732 = pneg %p113
        $region110: #{tpu_custom_call.1} parent=99 // pred_check_branch
          %734 = sbr.rel (%p732) target = $region112
        $region111: #{tpu_custom_call.1} parent=99 // pred_region
          %735 = dma.done [#allocation6], 16
        $region112: #{tpu_custom_call.1} parent=99 // pred_fallthru
          _
        // Predicated region
        $region113: #{tpu_custom_call.1} parent=99 // pred_check
          %p736 = pneg %p134
        $region114: #{tpu_custom_call.1} parent=99 // pred_check_branch
          %738 = sbr.rel (%p736) target = $region116
        $region115: #{tpu_custom_call.1} parent=99 // pred_region
          %739 = dma.done [#allocation9], 16
        $region116: #{tpu_custom_call.1} parent=99 // pred_fallthru
          _
        // Predicated region
        $region117: #{tpu_custom_call.1} parent=99 // pred_check
          %p740 = pneg %p176
        $region118: #{tpu_custom_call.1} parent=99 // pred_check_branch
          %742 = sbr.rel (%p740) target = $region120
        $region119: #{tpu_custom_call.1} parent=99 // pred_region
          %743 = dma.done [#allocation9], 32
        $region120: #{tpu_custom_call.1} parent=99 // pred_fallthru
          _
        // Predicated region
        $region121: #{tpu_custom_call.1} parent=99 // pred_check
          %p744 = pneg %p218
        $region122: #{tpu_custom_call.1} parent=99 // pred_check_branch
          %746 = sbr.rel (%p744) target = $region124
        $region123: #{tpu_custom_call.1} parent=99 // pred_region
          %747 = dma.done [#allocation12], 32
        $region124: #{tpu_custom_call.1} parent=99 // pred_fallthru
          _
        // Predicated region
        $region125: #{tpu_custom_call.1} parent=99 // pred_check
          %p748 = pneg %p239
        $region126: #{tpu_custom_call.1} parent=99 // pred_check_branch
          %750 = sbr.rel (%p748) target = $region128
        $region127: #{tpu_custom_call.1} parent=99 // pred_region
          %751 = dma.done [#allocation12], 32
        $region128: #{tpu_custom_call.1} parent=99 // pred_fallthru
          _
        // Predicated region
        $region129: #{tpu_custom_call.1} parent=99 // pred_check
          %p752 = pneg %p260
        $region130: #{tpu_custom_call.1} parent=99 // pred_check_branch
          %754 = sbr.rel (%p752) target = $region132
        $region131: #{tpu_custom_call.1} parent=99 // pred_region
          %755 = dma.done [#allocation15], 32
        $region132: #{tpu_custom_call.1} parent=99 // pred_fallthru
          _
        // Predicated region
        $region133: #{tpu_custom_call.1} parent=99 // pred_check
          %p756 = pneg %p302
        $region134: #{tpu_custom_call.1} parent=99 // pred_check_branch
          %758 = sbr.rel (%p756) target = $region136
        $region135: #{tpu_custom_call.1} parent=99 // pred_region
          %759 = dma.done [#allocation15], 32
        $region136: #{tpu_custom_call.1} parent=99 // pred_fallthru
          _
        // Predicated region
        $region137: #{tpu_custom_call.1} parent=99 // pred_check
          %p760 = pneg %p344
        $region138: #{tpu_custom_call.1} parent=99 // pred_check_branch
          %762 = sbr.rel (%p760) target = $region140
        $region139: #{tpu_custom_call.1} parent=99 // pred_region
          %763 = dma.done [#allocation18], 32
        $region140: #{tpu_custom_call.1} parent=99 // pred_fallthru
          _
        // Predicated region
        $region141: #{tpu_custom_call.1} parent=99 // pred_check
          %p764 = pneg %p365
        $region142: #{tpu_custom_call.1} parent=99 // pred_check_branch
          %766 = sbr.rel (%p764) target = $region144
        $region143: #{tpu_custom_call.1} parent=99 // pred_region
          %767 = dma.done [#allocation18], 32
        $region144: #{tpu_custom_call.1} parent=99 // pred_fallthru
          _
        // Predicated region
        $region145: #{tpu_custom_call.1} parent=99 // pred_check
          %p768 = pneg %p386
        $region146: #{tpu_custom_call.1} parent=99 // pred_check_branch
          %770 = sbr.rel (%p768) target = $region148
        $region147: #{tpu_custom_call.1} parent=99 // pred_region
          %771 = dma.done [#allocation21], 32
        $region148: #{tpu_custom_call.1} parent=99 // pred_fallthru
          _
        // Predicated region
        $region149: #{tpu_custom_call.1} parent=99 // pred_check
          %p772 = pneg %p428
        $region150: #{tpu_custom_call.1} parent=99 // pred_check_branch
          %774 = sbr.rel (%p772) target = $region152
        $region151: #{tpu_custom_call.1} parent=99 // pred_region
          %775 = dma.done [#allocation21], 16
        $region152: #{tpu_custom_call.1} parent=99 // pred_fallthru
          _
        %s776 = sand.u32 %s53, 1
        %s777 = scalar_lea.sflag [#allocation3], %s776
        %s778 = sand.u32 %s53, 1
        %s779 = smul.addr %s778, 8
        %s780 = scalar_lea.vmem [#allocation2], %s779
        %p781 = pneg %p66
        %p782 = pneg %p63
        %s783 = sand.u32 %s45, 1
        %s784 = scalar_lea.sflag [#allocation6], %s783
        %s785 = sand.u32 %s79, 1
        %s786 = scalar_lea.vmem [#allocation5], %s785
        %p787 = pneg %p92
        %p788 = pneg %p89
        %p789 = pneg %p113
        %p790 = pneg %p110
        %p791 = pneg %p134
        %p792 = pneg %p131
        %p793 = pneg %p155
        %p794 = pneg %p152
        %p795 = pneg %p176
        %p796 = pneg %p173
        %p797 = pneg %p197
        %p798 = pneg %p194
        %p799 = pneg %p218
        %p800 = pneg %p215
        %p801 = pneg %p239
        %p802 = pneg %p236
        %p803 = pneg %p260
        %p804 = pneg %p257
        %p805 = pneg %p281
        %p806 = pneg %p278
        %p807 = pneg %p302
        %p808 = pneg %p299
        %p809 = pneg %p323
        %p810 = pneg %p320
        %p811 = pneg %p344
        %p812 = pneg %p341
        %p813 = pneg %p365
        %p814 = pneg %p362
        %p815 = pneg %p386
        %p816 = pneg %p383
        %p817 = pneg %p407
        %p818 = pneg %p404
        %p819 = pneg %p428
        %p820 = pneg %p425
        %p821 = pneg %p449
        %p822 = pneg %p446
        %p823 = pneg %p470
        %p824 = pneg %p467
        %p825 = pneg %p496
        %p826 = pneg %p493
        %s827 = sand.u32 %s483, 1
        %s828 = scalar_lea.sflag [#allocation4], %s827
        %s829 = sand.u32 %s483, 1
        %s830 = scalar_lea.vmem [#allocation23], %s829
        %v832 = vld [vmem:[%s719] sm:$0xff]
        %v833 = vld [vmem:[#allocation7] sm:$0x1]
        %v834 = vld [vmem:[#allocation8] sm:$0x1]
        %vm835 = vcmask 261120
        %v836 = vsel %vm835, %v832, 0.0
        %837 = vadd.xlane.f32.xlu0 %v836
        %v838 = vpop.xlane.xlu0 %837
        %v839 = vrcp.pop 32.0
        %v840 = vmul.f32 %v838, %v839
        %v841 = vsub.f32 %v832, %v840
        %v842 = vmul.f32 %v841, %v841
        %v843 = vsel %vm835, %v842, 0.0
        %844 = vadd.xlane.f32.xlu0 %v843
        %v845 = vpop.xlane.xlu0 %844
        %v846 = vmul.f32 %v845, %v839
        %v847 = vadd.f32 %v846, 1e-12
        %v848 = vrsqrt.pop %v847
        %v849 = vmul.f32 %v841, %v848
        %v851 = vlaneseq
        %v852 = vshrl.u32 %v851, 7
        %v853 = vsub.s32 0, %v852
        %v854 = vrot.slane %v833, %v853
        %v856 = vmul.f32 %v849, %v854
        %v858 = vlaneseq
        %v859 = vshrl.u32 %v858, 7
        %v860 = vsub.s32 0, %v859
        %v861 = vrot.slane %v834, %v860
        %v863 = vadd.f32 %v856, %v861
        %v864 = vld [vmem:[%s727] sm:$0x1]
        %v865 = vld [vmem:[%s4] sm:$0xff]
        %v866 = vld [vmem:[%s4 + $0x8] sm:$0xff]
        %v867 = vld [vmem:[%s4 + $0x10] sm:$0xff]
        %v868 = vld [vmem:[%s4 + $0x18] sm:$0xff]
        %v869 = vpack.c.bf16 %v863, %v863
        %v870 = vpack.c.bf16 %v866, %v865
        %v871 = vpack.c.bf16 %v868, %v867
        %v872 = vld [vmem:[#allocation10] sm:$0x1]
        %v874 = vlaneseq
        %v875 = vshrl.u32 %v874, 7
        %v876 = vsub.s32 0, %v875
        %v877 = vrot.slane %v872, %v876
        %v880 = vsel %vm835, %v869, 0
        %882 = vmatprep.subr.bf16.mxu0 0
        %883 = vmatpush1.bf16.msra.mxu0 %v870
        %884 = vmatprep.subr.bf16.mxu0 0
        %885 = vmatpush1.bf16.msra.mxu0 %v871
        %886 = vmatprep.subr.bf16.mxu0 0
        %887 = vmatpush1.bf16.msra.mxu0 0
        %888 = vmatprep.subr.bf16.mxu0 0
        %889 = vmatpush1.bf16.msra.mxu0 0
        %890 = vmatprep.subr.bf16.mxu0 0
        %891 = vmatpush1.bf16.msra.mxu0 0
        %892 = vmatprep.subr.bf16.mxu0 0
        %893 = vmatpush1.bf16.msra.mxu0 0
        %894 = vmatprep.subr.bf16.mxu0 0
        %895 = vmatpush1.bf16.msra.mxu0 0
        %896 = vmatprep.subr.bf16.mxu0 0
        %897 = vmatpush1.bf16.msra.mxu0 0
        %898 = vmatprep.subr.bf16.mxu0 0
        %899 = vmatpush1.bf16.msra.mxu0 0
        %900 = vmatprep.subr.bf16.mxu0 0
        %901 = vmatpush1.bf16.msra.mxu0 0
        %902 = vmatprep.subr.bf16.mxu0 0
        %903 = vmatpush1.bf16.msra.mxu0 0
        %904 = vmatprep.subr.bf16.mxu0 0
        %905 = vmatpush1.bf16.msra.mxu0 0
        %906 = vmatprep.subr.bf16.mxu0 0
        %907 = vmatpush1.bf16.msra.mxu0 0
        %908 = vmatprep.subr.bf16.mxu0 0
        %909 = vmatpush1.bf16.msra.mxu0 0
        %910 = vmatprep.subr.bf16.mxu0 0
        %911 = vmatpush1.bf16.msra.mxu0 0
        %912 = vmatprep.subr.bf16.mxu0 0
        %913 = vmatpush1.bf16.msra.mxu0 0
        %914 = vmatprep.mubr.bf16.mxu0 0
        %915 = vmatmul.mubr.bf16.gmra.mrb[0].mxu0 %v880
        %v916 = vpop.f32.mrb[0].mxu0
        %v917 = vadd.f32 %v877, %v916
        %v918 = vpop.f32.mrb[0].mxu0
        %v919 = vpop.f32.mrb[0].mxu0
        %v920 = vpop.f32.mrb[0].mxu0
        %921 = vdwg.mxu0
        %v922 = vld [vmem:[%s6] sm:$0xff]
        %v923 = vld [vmem:[%s6 + $0x8] sm:$0xff]
        %v924 = vld [vmem:[%s6 + $0x10] sm:$0xff]
        %v925 = vld [vmem:[%s6 + $0x18] sm:$0xff]
        %v926 = vpack.c.bf16 %v917, %v917
        %928 = vrot.lane.b32.xlu0 %v926, 96
        %v929 = vpop.permute.xlu0 %928
        %vm930 = vcmask 130048
        %v932 = vsel %vm930, %v926, 0
        %v935 = vsel %vm930, %v929, 0
        %937 = vmatprep.subr.bf16.mxu0 0
        %938 = vmatpush1.bf16.xpose.msra.mxu0 %v935
        %939 = vmatprep.subr.bf16.mxu0 0
        %940 = vmatpush1.bf16.xpose.msra.mxu0 0
        %941 = vmatprep.subr.bf16.mxu0 0
        %942 = vmatpush1.bf16.xpose.msra.mxu0 0
        %943 = vmatprep.subr.bf16.mxu0 0
        %944 = vmatpush1.bf16.xpose.msra.mxu0 0
        %945 = vmatprep.subr.bf16.mxu0 0
        %946 = vmatpush1.bf16.xpose.msra.mxu0 0
        %947 = vmatprep.subr.bf16.mxu0 0
        %948 = vmatpush1.bf16.xpose.msra.mxu0 0
        %949 = vmatprep.subr.bf16.mxu0 0
        %950 = vmatpush1.bf16.xpose.msra.mxu0 0
        %951 = vmatprep.subr.bf16.mxu0 0
        %952 = vmatpush1.bf16.xpose.msra.mxu0 0
        %953 = vmatprep.subr.bf16.mxu0 0
        %954 = vmatpush1.bf16.xpose.msra.mxu0 0
        %955 = vmatprep.subr.bf16.mxu0 0
        %956 = vmatpush1.bf16.xpose.msra.mxu0 0
        %957 = vmatprep.subr.bf16.mxu0 0
        %958 = vmatpush1.bf16.xpose.msra.mxu0 0
        %959 = vmatprep.subr.bf16.mxu0 0
        %960 = vmatpush1.bf16.xpose.msra.mxu0 0
        %961 = vmatprep.subr.bf16.mxu0 0
        %962 = vmatpush1.bf16.xpose.msra.mxu0 0
        %963 = vmatprep.subr.bf16.mxu0 0
        %964 = vmatpush1.bf16.xpose.msra.mxu0 0
        %965 = vmatprep.subr.bf16.mxu0 0
        %966 = vmatpush1.bf16.xpose.msra.mxu0 0
        %967 = vmatprep.subr.bf16.mxu0 0
        %968 = vmatpush1.bf16.xpose.msra.mxu0 0
        %969 = vmatprep.mubr.bf16.mxu0 0
        %970 = vmatmul.mubr.bf16.gmra.mrb[0].mxu0 %v932
        %v971 = vpop.f32.mrb[0].mxu0
        %v972 = vadd.f32 0.0, %v971
        %v973 = vpop.f32.mrb[0].mxu0
        %v974 = vpop.f32.mrb[0].mxu0
        %v975 = vpop.f32.mrb[0].mxu0
        %976 = vdwg.mxu0
        %v977 = vmul.f32 %v972, 0.25
        %v979 = vlaneseq
        %v980 = vshrl.u32 %v979, 7
        %v981 = vsub.s32 0, %v980
        %v982 = vrot.slane %v864, %v981
        %v984 = vadd.f32 %v977, %v982
        %vm985 = vcmask 64512
        %v986 = vsel %vm985, %v984, -inf
        %987 = vmax.xlane.f32.xlu0 %v986
        %v988 = vpop.xlane.xlu0 %987
        %v989 = vsub.f32 %v984, %v988
        %v990 = vmul.f32 %v989, 1.442695
        %v991 = vpow.pop %v990
        %v992 = vsel %vm985, %v991, 0.0
        %993 = vadd.xlane.f32.xlu0 %v992
        %v994 = vpop.xlane.xlu0 %993
        %v995 = vrcp.pop %v994
        %v996 = vmul.f32 %v991, %v995
        %v997 = vpack.c.bf16 %v996, %v996
        %998 = vrot.lane.b32.xlu0 %v926, 64
        %v999 = vpop.permute.xlu0 %998
        %v1001 = vsel %vm985, %v997, 0
        %vm1003 = vcmask 1043456
        %v1005 = vsel %vm1003, %v999, 0
        %1007 = vmatprep.subr.bf16.mxu0 0
        %1008 = vmatpush1.bf16.msra.mxu0 %v1005
        %1009 = vmatprep.subr.bf16.mxu0 0
        %1010 = vmatpush1.bf16.msra.mxu0 0
        %1011 = vmatprep.subr.bf16.mxu0 0
        %1012 = vmatpush1.bf16.msra.mxu0 0
        %1013 = vmatprep.subr.bf16.mxu0 0
        %1014 = vmatpush1.bf16.msra.mxu0 0
        %1015 = vmatprep.subr.bf16.mxu0 0
        %1016 = vmatpush1.bf16.msra.mxu0 0
        %1017 = vmatprep.subr.bf16.mxu0 0
        %1018 = vmatpush1.bf16.msra.mxu0 0
        %1019 = vmatprep.subr.bf16.mxu0 0
        %1020 = vmatpush1.bf16.msra.mxu0 0
        %1021 = vmatprep.subr.bf16.mxu0 0
        %1022 = vmatpush1.bf16.msra.mxu0 0
        %1023 = vmatprep.subr.bf16.mxu0 0
        %1024 = vmatpush1.bf16.msra.mxu0 0
        %1025 = vmatprep.subr.bf16.mxu0 0
        %1026 = vmatpush1.bf16.msra.mxu0 0
        %1027 = vmatprep.subr.bf16.mxu0 0
        %1028 = vmatpush1.bf16.msra.mxu0 0
        %1029 = vmatprep.subr.bf16.mxu0 0
        %1030 = vmatpush1.bf16.msra.mxu0 0
        %1031 = vmatprep.subr.bf16.mxu0 0
        %1032 = vmatpush1.bf16.msra.mxu0 0
        %1033 = vmatprep.subr.bf16.mxu0 0
        %1034 = vmatpush1.bf16.msra.mxu0 0
        %1035 = vmatprep.subr.bf16.mxu0 0
        %1036 = vmatpush1.bf16.msra.mxu0 0
        %1037 = vmatprep.subr.bf16.mxu0 0
        %1038 = vmatpush1.bf16.msra.mxu0 0
        %1039 = vmatprep.mubr.bf16.mxu0 0
        %1040 = vmatmul.mubr.bf16.gmra.mrb[0].mxu0 %v1001
        %v1041 = vpop.f32.mrb[0].mxu0
        %v1042 = vadd.f32 0.0, %v1041
        %v1043 = vpop.f32.mrb[0].mxu0
        %v1044 = vpop.f32.mrb[0].mxu0
        %v1045 = vpop.f32.mrb[0].mxu0
        %1046 = vdwg.mxu0
        %v1047 = vpack.c.bf16 %v1042, %v1042
        %v1048 = vpack.c.bf16 %v923, %v922
        %1049 = vrot.lane.b32.xlu0 %v926, 112
        %v1050 = vpop.permute.xlu0 %1049
        %1051 = vrot.lane.b32.xlu0 %v926, 80
        %v1052 = vpop.permute.xlu0 %1051
        %v1054 = vsel %vm930, %v1050, 0
        %v1057 = vsel %vm930, %v1052, 0
        %1059 = vmatprep.subr.bf16.mxu0 0
        %1060 = vmatpush1.bf16.xpose.msra.mxu0 %v1057
        %1061 = vmatprep.subr.bf16.mxu0 0
        %1062 = vmatpush1.bf16.xpose.msra.mxu0 0
        %1063 = vmatprep.subr.bf16.mxu0 0
        %1064 = vmatpush1.bf16.xpose.msra.mxu0 0
        %1065 = vmatprep.subr.bf16.mxu0 0
        %1066 = vmatpush1.bf16.xpose.msra.mxu0 0
        %1067 = vmatprep.subr.bf16.mxu0 0
        %1068 = vmatpush1.bf16.xpose.msra.mxu0 0
        %1069 = vmatprep.subr.bf16.mxu0 0
        %1070 = vmatpush1.bf16.xpose.msra.mxu0 0
        %1071 = vmatprep.subr.bf16.mxu0 0
        %1072 = vmatpush1.bf16.xpose.msra.mxu0 0
        %1073 = vmatprep.subr.bf16.mxu0 0
        %1074 = vmatpush1.bf16.xpose.msra.mxu0 0
        %1075 = vmatprep.subr.bf16.mxu0 0
        %1076 = vmatpush1.bf16.xpose.msra.mxu0 0
        %1077 = vmatprep.subr.bf16.mxu0 0
        %1078 = vmatpush1.bf16.xpose.msra.mxu0 0
        %1079 = vmatprep.subr.bf16.mxu0 0
        %1080 = vmatpush1.bf16.xpose.msra.mxu0 0
        %1081 = vmatprep.subr.bf16.mxu0 0
        %1082 = vmatpush1.bf16.xpose.msra.mxu0 0
        %1083 = vmatprep.subr.bf16.mxu0 0
        %1084 = vmatpush1.bf16.xpose.msra.mxu0 0
        %1085 = vmatprep.subr.bf16.mxu0 0
        %1086 = vmatpush1.bf16.xpose.msra.mxu0 0
        %1087 = vmatprep.subr.bf16.mxu0 0
        %1088 = vmatpush1.bf16.xpose.msra.mxu0 0
        %1089 = vmatprep.subr.bf16.mxu0 0
        %1090 = vmatpush1.bf16.xpose.msra.mxu0 0
        %1091 = vmatprep.mubr.bf16.mxu0 0
        %1092 = vmatmul.mubr.bf16.gmra.mrb[0].mxu0 %v1054
        %v1093 = vpop.f32.mrb[0].mxu0
        %v1094 = vadd.f32 0.0, %v1093
        %v1095 = vpop.f32.mrb[0].mxu0
        %v1096 = vpop.f32.mrb[0].mxu0
        %v1097 = vpop.f32.mrb[0].mxu0
        %1098 = vdwg.mxu0
        %v1099 = vmul.f32 %v1094, 0.25
        %v1100 = vadd.f32 %v1099, %v982
        %v1101 = vsel %vm985, %v1100, -inf
        %1102 = vmax.xlane.f32.xlu0 %v1101
        %v1103 = vpop.xlane.xlu0 %1102
        %v1104 = vsub.f32 %v1100, %v1103
        %v1105 = vmul.f32 %v1104, 1.442695
        %v1106 = vpow.pop %v1105
        %v1107 = vsel %vm985, %v1106, 0.0
        %1108 = vadd.xlane.f32.xlu0 %v1107
        %v1109 = vpop.xlane.xlu0 %1108
        %v1110 = vrcp.pop %v1109
        %v1111 = vmul.f32 %v1106, %v1110
        %v1112 = vpack.c.bf16 %v1111, %v1111
        %1113 = vrot.lane.b32.xlu0 %v926, 48
        %v1114 = vpop.permute.xlu0 %1113
        %v1116 = vsel %vm985, %v1112, 0
        %v1119 = vsel %vm1003, %v1114, 0
        %1121 = vmatprep.subr.bf16.mxu0 0
        %1122 = vmatpush1.bf16.msra.mxu0 %v1119
        %1123 = vmatprep.subr.bf16.mxu0 0
        %1124 = vmatpush1.bf16.msra.mxu0 0
        %1125 = vmatprep.subr.bf16.mxu0 0
        %1126 = vmatpush1.bf16.msra.mxu0 0
        %1127 = vmatprep.subr.bf16.mxu0 0
        %1128 = vmatpush1.bf16.msra.mxu0 0
        %1129 = vmatprep.subr.bf16.mxu0 0
        %1130 = vmatpush1.bf16.msra.mxu0 0
        %1131 = vmatprep.subr.bf16.mxu0 0
        %1132 = vmatpush1.bf16.msra.mxu0 0
        %1133 = vmatprep.subr.bf16.mxu0 0
        %1134 = vmatpush1.bf16.msra.mxu0 0
        %1135 = vmatprep.subr.bf16.mxu0 0
        %1136 = vmatpush1.bf16.msra.mxu0 0
        %1137 = vmatprep.subr.bf16.mxu0 0
        %1138 = vmatpush1.bf16.msra.mxu0 0
        %1139 = vmatprep.subr.bf16.mxu0 0
        %1140 = vmatpush1.bf16.msra.mxu0 0
        %1141 = vmatprep.subr.bf16.mxu0 0
        %1142 = vmatpush1.bf16.msra.mxu0 0
        %1143 = vmatprep.subr.bf16.mxu0 0
        %1144 = vmatpush1.bf16.msra.mxu0 0
        %1145 = vmatprep.subr.bf16.mxu0 0
        %1146 = vmatpush1.bf16.msra.mxu0 0
        %1147 = vmatprep.subr.bf16.mxu0 0
        %1148 = vmatpush1.bf16.msra.mxu0 0
        %1149 = vmatprep.subr.bf16.mxu0 0
        %1150 = vmatpush1.bf16.msra.mxu0 0
        %1151 = vmatprep.subr.bf16.mxu0 0
        %1152 = vmatpush1.bf16.msra.mxu0 0
        %1153 = vmatprep.mubr.bf16.mxu0 0
        %1154 = vmatmul.mubr.bf16.gmra.mrb[0].mxu0 %v1116
        %v1155 = vpop.f32.mrb[0].mxu0
        %v1156 = vadd.f32 0.0, %v1155
        %v1157 = vpop.f32.mrb[0].mxu0
        %v1158 = vpop.f32.mrb[0].mxu0
        %v1159 = vpop.f32.mrb[0].mxu0
        %1160 = vdwg.mxu0
        %v1161 = vpack.c.bf16 %v1156, %v1156
        %v1162 = vpack.c.bf16 %v925, %v924
        %v1164 = vsel %vm930, %v1161, 0
        %1166 = vmatprep.subr.bf16.mxu0 0
        %1167 = vmatpush1.bf16.msra.mxu0 %v1162
        %1168 = vmatprep.subr.bf16.mxu0 0
        %1169 = vmatpush1.bf16.msra.mxu0 0
        %1170 = vmatprep.subr.bf16.mxu0 0
        %1171 = vmatpush1.bf16.msra.mxu0 0
        %1172 = vmatprep.subr.bf16.mxu0 0
        %1173 = vmatpush1.bf16.msra.mxu0 0
        %1174 = vmatprep.subr.bf16.mxu0 0
        %1175 = vmatpush1.bf16.msra.mxu0 0
        %1176 = vmatprep.subr.bf16.mxu0 0
        %1177 = vmatpush1.bf16.msra.mxu0 0
        %1178 = vmatprep.subr.bf16.mxu0 0
        %1179 = vmatpush1.bf16.msra.mxu0 0
        %1180 = vmatprep.subr.bf16.mxu0 0
        %1181 = vmatpush1.bf16.msra.mxu0 0
        %1182 = vmatprep.subr.bf16.mxu0 0
        %1183 = vmatpush1.bf16.msra.mxu0 0
        %1184 = vmatprep.subr.bf16.mxu0 0
        %1185 = vmatpush1.bf16.msra.mxu0 0
        %1186 = vmatprep.subr.bf16.mxu0 0
        %1187 = vmatpush1.bf16.msra.mxu0 0
        %1188 = vmatprep.subr.bf16.mxu0 0
        %1189 = vmatpush1.bf16.msra.mxu0 0
        %1190 = vmatprep.subr.bf16.mxu0 0
        %1191 = vmatpush1.bf16.msra.mxu0 0
        %1192 = vmatprep.subr.bf16.mxu0 0
        %1193 = vmatpush1.bf16.msra.mxu0 0
        %1194 = vmatprep.subr.bf16.mxu0 0
        %1195 = vmatpush1.bf16.msra.mxu0 0
        %1196 = vmatprep.subr.bf16.mxu0 0
        %1197 = vmatpush1.bf16.msra.mxu0 0
        %1198 = vmatprep.mubr.bf16.mxu0 0
        %1199 = vmatmul.mubr.bf16.gmra.mrb[0].mxu0 %v1164
        %v1200 = vpop.f32.mrb[0].mxu0
        %v1201 = vadd.f32 0.0, %v1200
        %v1202 = vpop.f32.mrb[0].mxu0
        %v1203 = vpop.f32.mrb[0].mxu0
        %v1204 = vpop.f32.mrb[0].mxu0
        %1205 = vdwg.mxu0
        %v1207 = vsel %vm930, %v1047, 0
        %1209 = vmatprep.subr.bf16.mxu0 0
        %1210 = vmatpush1.bf16.msra.mxu0 %v1048
        %1211 = vmatprep.subr.bf16.mxu0 0
        %1212 = vmatpush1.bf16.msra.mxu0 0
        %1213 = vmatprep.subr.bf16.mxu0 0
        %1214 = vmatpush1.bf16.msra.mxu0 0
        %1215 = vmatprep.subr.bf16.mxu0 0
        %1216 = vmatpush1.bf16.msra.mxu0 0
        %1217 = vmatprep.subr.bf16.mxu0 0
        %1218 = vmatpush1.bf16.msra.mxu0 0
        %1219 = vmatprep.subr.bf16.mxu0 0
        %1220 = vmatpush1.bf16.msra.mxu0 0
        %1221 = vmatprep.subr.bf16.mxu0 0
        %1222 = vmatpush1.bf16.msra.mxu0 0
        %1223 = vmatprep.subr.bf16.mxu0 0
        %1224 = vmatpush1.bf16.msra.mxu0 0
        %1225 = vmatprep.subr.bf16.mxu0 0
        %1226 = vmatpush1.bf16.msra.mxu0 0
        %1227 = vmatprep.subr.bf16.mxu0 0
        %1228 = vmatpush1.bf16.msra.mxu0 0
        %1229 = vmatprep.subr.bf16.mxu0 0
        %1230 = vmatpush1.bf16.msra.mxu0 0
        %1231 = vmatprep.subr.bf16.mxu0 0
        %1232 = vmatpush1.bf16.msra.mxu0 0
        %1233 = vmatprep.subr.bf16.mxu0 0
        %1234 = vmatpush1.bf16.msra.mxu0 0
        %1235 = vmatprep.subr.bf16.mxu0 0
        %1236 = vmatpush1.bf16.msra.mxu0 0
        %1237 = vmatprep.subr.bf16.mxu0 0
        %1238 = vmatpush1.bf16.msra.mxu0 0
        %1239 = vmatprep.subr.bf16.mxu0 0
        %1240 = vmatpush1.bf16.msra.mxu0 0
        %1241 = vmatprep.mubr.bf16.mxu0 0
        %1242 = vmatmul.mubr.bf16.gmra.mrb[0].mxu0 %v1207
        %v1243 = vpop.f32.mrb[0].mxu0
        %v1244 = vadd.f32 %v1201, %v1243
        %v1245 = vpop.f32.mrb[0].mxu0
        %v1246 = vpop.f32.mrb[0].mxu0
        %v1247 = vpop.f32.mrb[0].mxu0
        %1248 = vdwg.mxu0
        %v1249 = vld [vmem:[#allocation11] sm:$0x1]
        %v1251 = vlaneseq
        %v1252 = vshrl.u32 %v1251, 7
        %v1253 = vsub.s32 0, %v1252
        %v1254 = vrot.slane %v1249, %v1253
        %v1256 = vadd.f32 %v1244, %v1254
        %v1257 = vadd.f32 %v1256, %v863
        %v1258 = vld [vmem:[#allocation13] sm:$0x1]
        %v1259 = vld [vmem:[#allocation14] sm:$0x1]
        %v1260 = vsel %vm835, %v1257, 0.0
        %1261 = vadd.xlane.f32.xlu0 %v1260
        %v1262 = vpop.xlane.xlu0 %1261
        %v1263 = vmul.f32 %v1262, %v839
        %v1264 = vsub.f32 %v1257, %v1263
        %v1265 = vmul.f32 %v1264, %v1264
        %v1266 = vsel %vm835, %v1265, 0.0
        %1267 = vadd.xlane.f32.xlu0 %v1266
        %v1268 = vpop.xlane.xlu0 %1267
        %v1269 = vmul.f32 %v1268, %v839
        %v1270 = vadd.f32 %v1269, 1e-12
        %v1271 = vrsqrt.pop %v1270
        %v1272 = vmul.f32 %v1264, %v1271
        %v1274 = vlaneseq
        %v1275 = vshrl.u32 %v1274, 7
        %v1276 = vsub.s32 0, %v1275
        %v1277 = vrot.slane %v1258, %v1276
        %v1279 = vmul.f32 %v1272, %v1277
        %v1281 = vlaneseq
        %v1282 = vshrl.u32 %v1281, 7
        %v1283 = vsub.s32 0, %v1282
        %v1284 = vrot.slane %v1259, %v1283
        %v1286 = vadd.f32 %v1279, %v1284
        %v1287 = vld [vmem:[%s10] sm:$0xff]
        %v1288 = vld [vmem:[%s10 + $0x8] sm:$0xff]
        %v1289 = vld [vmem:[%s10 + $0x10] sm:$0xff]
        %v1290 = vld [vmem:[%s10 + $0x18] sm:$0xff]
        %v1291 = vpack.c.bf16 %v1286, %v1286
        %v1292 = vpack.c.bf16 %v1288, %v1287
        %v1293 = vpack.c.bf16 %v1290, %v1289
        %v1294 = vld [vmem:[#allocation16] sm:$0x1]
        %v1296 = vlaneseq
        %v1297 = vshrl.u32 %v1296, 7
        %v1298 = vsub.s32 0, %v1297
        %v1299 = vrot.slane %v1294, %v1298
        %v1302 = vsel %vm835, %v1291, 0
        %1304 = vmatprep.subr.bf16.mxu0 0
        %1305 = vmatpush1.bf16.msra.mxu0 %v1292
        %1306 = vmatprep.subr.bf16.mxu0 0
        %1307 = vmatpush1.bf16.msra.mxu0 %v1293
        %1308 = vmatprep.subr.bf16.mxu0 0
        %1309 = vmatpush1.bf16.msra.mxu0 0
        %1310 = vmatprep.subr.bf16.mxu0 0
        %1311 = vmatpush1.bf16.msra.mxu0 0
        %1312 = vmatprep.subr.bf16.mxu0 0
        %1313 = vmatpush1.bf16.msra.mxu0 0
        %1314 = vmatprep.subr.bf16.mxu0 0
        %1315 = vmatpush1.bf16.msra.mxu0 0
        %1316 = vmatprep.subr.bf16.mxu0 0
        %1317 = vmatpush1.bf16.msra.mxu0 0
        %1318 = vmatprep.subr.bf16.mxu0 0
        %1319 = vmatpush1.bf16.msra.mxu0 0
        %1320 = vmatprep.subr.bf16.mxu0 0
        %1321 = vmatpush1.bf16.msra.mxu0 0
        %1322 = vmatprep.subr.bf16.mxu0 0
        %1323 = vmatpush1.bf16.msra.mxu0 0
        %1324 = vmatprep.subr.bf16.mxu0 0
        %1325 = vmatpush1.bf16.msra.mxu0 0
        %1326 = vmatprep.subr.bf16.mxu0 0
        %1327 = vmatpush1.bf16.msra.mxu0 0
        %1328 = vmatprep.subr.bf16.mxu0 0
        %1329 = vmatpush1.bf16.msra.mxu0 0
        %1330 = vmatprep.subr.bf16.mxu0 0
        %1331 = vmatpush1.bf16.msra.mxu0 0
        %1332 = vmatprep.subr.bf16.mxu0 0
        %1333 = vmatpush1.bf16.msra.mxu0 0
        %1334 = vmatprep.subr.bf16.mxu0 0
        %1335 = vmatpush1.bf16.msra.mxu0 0
        %1336 = vmatprep.mubr.bf16.mxu0 0
        %1337 = vmatmul.mubr.bf16.gmra.mrb[0].mxu0 %v1302
        %v1338 = vpop.f32.mrb[0].mxu0
        %v1339 = vadd.f32 %v1299, %v1338
        %v1340 = vpop.f32.mrb[0].mxu0
        %v1341 = vpop.f32.mrb[0].mxu0
        %v1342 = vpop.f32.mrb[0].mxu0
        %1343 = vdwg.mxu0
        %v1344 = vmul.f32 %v1339, 0.5
        %v1345 = vmul.f32 %v1339, 0.044715
        %v1346 = vmul.f32 %v1345, %v1339
        %v1347 = vmul.f32 %v1346, %v1339
        %v1348 = vadd.f32 %v1339, %v1347
        %v1349 = vmul.f32 %v1348, 0.7978846
        %v1350 = vtanh.pop %v1349
        %v1351 = vadd.f32 %v1350, 1.0
        %v1352 = vmul.f32 %v1344, %v1351
        %v1353 = vld [vmem:[%s12] sm:$0xff]
        %v1354 = vld [vmem:[%s12 + $0x8] sm:$0xff]
        %v1355 = vld [vmem:[%s12 + $0x10] sm:$0xff]
        %v1356 = vld [vmem:[%s12 + $0x18] sm:$0xff]
        %v1357 = vld [vmem:[%s12 + $0x20] sm:$0xff]
        %v1358 = vld [vmem:[%s12 + $0x28] sm:$0xff]
        %v1359 = vld [vmem:[%s12 + $0x30] sm:$0xff]
        %v1360 = vld [vmem:[%s12 + $0x38] sm:$0xff]
        %v1361 = vpack.c.bf16 %v1352, %v1352
        %v1362 = vpack.c.bf16 %v1354, %v1353
        %v1363 = vpack.c.bf16 %v1356, %v1355
        %v1364 = vpack.c.bf16 %v1358, %v1357
        %v1365 = vpack.c.bf16 %v1360, %v1359
        %v1366 = vld [vmem:[#allocation17] sm:$0x1]
        %v1368 = vlaneseq
        %v1369 = vshrl.u32 %v1368, 7
        %v1370 = vsub.s32 0, %v1369
        %v1371 = vrot.slane %v1366, %v1370
        %vm1373 = vcmask 523264
        %v1375 = vsel %vm1373, %v1361, 0
        %1377 = vmatprep.subr.bf16.mxu0 0
        %1378 = vmatpush1.bf16.msra.mxu0 %v1362
        %1379 = vmatprep.subr.bf16.mxu0 0
        %1380 = vmatpush1.bf16.msra.mxu0 %v1363
        %1381 = vmatprep.subr.bf16.mxu0 0
        %1382 = vmatpush1.bf16.msra.mxu0 %v1364
        %1383 = vmatprep.subr.bf16.mxu0 0
        %1384 = vmatpush1.bf16.msra.mxu0 %v1365
        %1385 = vmatprep.subr.bf16.mxu0 0
        %1386 = vmatpush1.bf16.msra.mxu0 0
        %1387 = vmatprep.subr.bf16.mxu0 0
        %1388 = vmatpush1.bf16.msra.mxu0 0
        %1389 = vmatprep.subr.bf16.mxu0 0
        %1390 = vmatpush1.bf16.msra.mxu0 0
        %1391 = vmatprep.subr.bf16.mxu0 0
        %1392 = vmatpush1.bf16.msra.mxu0 0
        %1393 = vmatprep.subr.bf16.mxu0 0
        %1394 = vmatpush1.bf16.msra.mxu0 0
        %1395 = vmatprep.subr.bf16.mxu0 0
        %1396 = vmatpush1.bf16.msra.mxu0 0
        %1397 = vmatprep.subr.bf16.mxu0 0
        %1398 = vmatpush1.bf16.msra.mxu0 0
        %1399 = vmatprep.subr.bf16.mxu0 0
        %1400 = vmatpush1.bf16.msra.mxu0 0
        %1401 = vmatprep.subr.bf16.mxu0 0
        %1402 = vmatpush1.bf16.msra.mxu0 0
        %1403 = vmatprep.subr.bf16.mxu0 0
        %1404 = vmatpush1.bf16.msra.mxu0 0
        %1405 = vmatprep.subr.bf16.mxu0 0
        %1406 = vmatpush1.bf16.msra.mxu0 0
        %1407 = vmatprep.subr.bf16.mxu0 0
        %1408 = vmatpush1.bf16.msra.mxu0 0
        %1409 = vmatprep.mubr.bf16.mxu0 0
        %1410 = vmatmul.mubr.bf16.gmra.mrb[0].mxu0 %v1375
        %v1411 = vpop.f32.mrb[0].mxu0
        %v1412 = vadd.f32 %v1371, %v1411
        %v1413 = vpop.f32.mrb[0].mxu0
        %v1414 = vpop.f32.mrb[0].mxu0
        %v1415 = vpop.f32.mrb[0].mxu0
        %1416 = vdwg.mxu0
        %v1417 = vadd.f32 %v1412, %v1286
        %v1418 = vld [vmem:[#allocation19] sm:$0x1]
        %v1419 = vld [vmem:[#allocation20] sm:$0x1]
        %v1420 = vsel %vm835, %v1417, 0.0
        %1421 = vadd.xlane.f32.xlu0 %v1420
        %v1422 = vpop.xlane.xlu0 %1421
        %v1423 = vmul.f32 %v1422, %v839
        %v1424 = vsub.f32 %v1417, %v1423
        %v1425 = vmul.f32 %v1424, %v1424
        %v1426 = vsel %vm835, %v1425, 0.0
        %1427 = vadd.xlane.f32.xlu0 %v1426
        %v1428 = vpop.xlane.xlu0 %1427
        %v1429 = vmul.f32 %v1428, %v839
        %v1430 = vadd.f32 %v1429, 1e-12
        %v1431 = vrsqrt.pop %v1430
        %v1432 = vmul.f32 %v1424, %v1431
        %v1434 = vlaneseq
        %v1435 = vshrl.u32 %v1434, 7
        %v1436 = vsub.s32 0, %v1435
        %v1437 = vrot.slane %v1418, %v1436
        %v1439 = vmul.f32 %v1432, %v1437
        %v1441 = vlaneseq
        %v1442 = vshrl.u32 %v1441, 7
        %v1443 = vsub.s32 0, %v1442
        %v1444 = vrot.slane %v1419, %v1443
        %v1446 = vadd.f32 %v1439, %v1444
        %s1447 = scalar_lea.vmem %s4, 32
        %v1448 = vld [vmem:[%s1447] sm:$0xff]
        %v1449 = vld [vmem:[%s1447 + $0x8] sm:$0xff]
        %v1450 = vld [vmem:[%s1447 + $0x10] sm:$0xff]
        %v1451 = vld [vmem:[%s1447 + $0x18] sm:$0xff]
        %v1452 = vpack.c.bf16 %v1446, %v1446
        %v1453 = vpack.c.bf16 %v1449, %v1448
        %v1454 = vpack.c.bf16 %v1451, %v1450
        %s1455 = scalar_lea.vmem [#allocation10], 1
        %v1456 = vld [vmem:[%s1455] sm:$0x1]
        %v1458 = vlaneseq
        %v1459 = vshrl.u32 %v1458, 7
        %v1460 = vsub.s32 0, %v1459
        %v1461 = vrot.slane %v1456, %v1460
        %v1464 = vsel %vm835, %v1452, 0
        %1466 = vmatprep.subr.bf16.mxu0 0
        %1467 = vmatpush1.bf16.msra.mxu0 %v1453
        %1468 = vmatprep.subr.bf16.mxu0 0
        %1469 = vmatpush1.bf16.msra.mxu0 %v1454
        %1470 = vmatprep.subr.bf16.mxu0 0
        %1471 = vmatpush1.bf16.msra.mxu0 0
        %1472 = vmatprep.subr.bf16.mxu0 0
        %1473 = vmatpush1.bf16.msra.mxu0 0
        %1474 = vmatprep.subr.bf16.mxu0 0
        %1475 = vmatpush1.bf16.msra.mxu0 0
        %1476 = vmatprep.subr.bf16.mxu0 0
        %1477 = vmatpush1.bf16.msra.mxu0 0
        %1478 = vmatprep.subr.bf16.mxu0 0
        %1479 = vmatpush1.bf16.msra.mxu0 0
        %1480 = vmatprep.subr.bf16.mxu0 0
        %1481 = vmatpush1.bf16.msra.mxu0 0
        %1482 = vmatprep.subr.bf16.mxu0 0
        %1483 = vmatpush1.bf16.msra.mxu0 0
        %1484 = vmatprep.subr.bf16.mxu0 0
        %1485 = vmatpush1.bf16.msra.mxu0 0
        %1486 = vmatprep.subr.bf16.mxu0 0
        %1487 = vmatpush1.bf16.msra.mxu0 0
        %1488 = vmatprep.subr.bf16.mxu0 0
        %1489 = vmatpush1.bf16.msra.mxu0 0
        %1490 = vmatprep.subr.bf16.mxu0 0
        %1491 = vmatpush1.bf16.msra.mxu0 0
        %1492 = vmatprep.subr.bf16.mxu0 0
        %1493 = vmatpush1.bf16.msra.mxu0 0
        %1494 = vmatprep.subr.bf16.mxu0 0
        %1495 = vmatpush1.bf16.msra.mxu0 0
        %1496 = vmatprep.subr.bf16.mxu0 0
        %1497 = vmatpush1.bf16.msra.mxu0 0
        %1498 = vmatprep.mubr.bf16.mxu0 0
        %1499 = vmatmul.mubr.bf16.gmra.mrb[0].mxu0 %v1464
        %v1500 = vpop.f32.mrb[0].mxu0
        %v1501 = vadd.f32 %v1461, %v1500
        %v1502 = vpop.f32.mrb[0].mxu0
        %v1503 = vpop.f32.mrb[0].mxu0
        %v1504 = vpop.f32.mrb[0].mxu0
        %1505 = vdwg.mxu0
        %s1506 = scalar_lea.vmem %s6, 32
        %v1507 = vld [vmem:[%s1506] sm:$0xff]
        %v1508 = vld [vmem:[%s1506 + $0x8] sm:$0xff]
        %v1509 = vld [vmem:[%s1506 + $0x10] sm:$0xff]
        %v1510 = vld [vmem:[%s1506 + $0x18] sm:$0xff]
        %v1511 = vpack.c.bf16 %v1501, %v1501
        %1513 = vrot.lane.b32.xlu0 %v1511, 96
        %v1514 = vpop.permute.xlu0 %1513
        %v1516 = vsel %vm930, %v1511, 0
        %v1519 = vsel %vm930, %v1514, 0
        %1521 = vmatprep.subr.bf16.mxu0 0
        %1522 = vmatpush1.bf16.xpose.msra.mxu0 %v1519
        %1523 = vmatprep.subr.bf16.mxu0 0
        %1524 = vmatpush1.bf16.xpose.msra.mxu0 0
        %1525 = vmatprep.subr.bf16.mxu0 0
        %1526 = vmatpush1.bf16.xpose.msra.mxu0 0
        %1527 = vmatprep.subr.bf16.mxu0 0
        %1528 = vmatpush1.bf16.xpose.msra.mxu0 0
        %1529 = vmatprep.subr.bf16.mxu0 0
        %1530 = vmatpush1.bf16.xpose.msra.mxu0 0
        %1531 = vmatprep.subr.bf16.mxu0 0
        %1532 = vmatpush1.bf16.xpose.msra.mxu0 0
        %1533 = vmatprep.subr.bf16.mxu0 0
        %1534 = vmatpush1.bf16.xpose.msra.mxu0 0
        %1535 = vmatprep.subr.bf16.mxu0 0
        %1536 = vmatpush1.bf16.xpose.msra.mxu0 0
        %1537 = vmatprep.subr.bf16.mxu0 0
        %1538 = vmatpush1.bf16.xpose.msra.mxu0 0
        %1539 = vmatprep.subr.bf16.mxu0 0
        %1540 = vmatpush1.bf16.xpose.msra.mxu0 0
        %1541 = vmatprep.subr.bf16.mxu0 0
        %1542 = vmatpush1.bf16.xpose.msra.mxu0 0
        %1543 = vmatprep.subr.bf16.mxu0 0
        %1544 = vmatpush1.bf16.xpose.msra.mxu0 0
        %1545 = vmatprep.subr.bf16.mxu0 0
        %1546 = vmatpush1.bf16.xpose.msra.mxu0 0
        %1547 = vmatprep.subr.bf16.mxu0 0
        %1548 = vmatpush1.bf16.xpose.msra.mxu0 0
        %1549 = vmatprep.subr.bf16.mxu0 0
        %1550 = vmatpush1.bf16.xpose.msra.mxu0 0
        %1551 = vmatprep.subr.bf16.mxu0 0
        %1552 = vmatpush1.bf16.xpose.msra.mxu0 0
        %1553 = vmatprep.mubr.bf16.mxu0 0
        %1554 = vmatmul.mubr.bf16.gmra.mrb[0].mxu0 %v1516
        %v1555 = vpop.f32.mrb[0].mxu0
        %v1556 = vadd.f32 0.0, %v1555
        %v1557 = vpop.f32.mrb[0].mxu0
        %v1558 = vpop.f32.mrb[0].mxu0
        %v1559 = vpop.f32.mrb[0].mxu0
        %1560 = vdwg.mxu0
        %v1561 = vmul.f32 %v1556, 0.25
        %v1562 = vadd.f32 %v1561, %v982
        %v1563 = vsel %vm985, %v1562, -inf
        %1564 = vmax.xlane.f32.xlu0 %v1563
        %v1565 = vpop.xlane.xlu0 %1564
        %v1566 = vsub.f32 %v1562, %v1565
        %v1567 = vmul.f32 %v1566, 1.442695
        %v1568 = vpow.pop %v1567
        %v1569 = vsel %vm985, %v1568, 0.0
        %1570 = vadd.xlane.f32.xlu0 %v1569
        %v1571 = vpop.xlane.xlu0 %1570
        %v1572 = vrcp.pop %v1571
        %v1573 = vmul.f32 %v1568, %v1572
        %v1574 = vpack.c.bf16 %v1573, %v1573
        %1575 = vrot.lane.b32.xlu0 %v1511, 64
        %v1576 = vpop.permute.xlu0 %1575
        %v1578 = vsel %vm985, %v1574, 0
        %v1581 = vsel %vm1003, %v1576, 0
        %1583 = vmatprep.subr.bf16.mxu0 0
        %1584 = vmatpush1.bf16.msra.mxu0 %v1581
        %1585 = vmatprep.subr.bf16.mxu0 0
        %1586 = vmatpush1.bf16.msra.mxu0 0
        %1587 = vmatprep.subr.bf16.mxu0 0
        %1588 = vmatpush1.bf16.msra.mxu0 0
        %1589 = vmatprep.subr.bf16.mxu0 0
        %1590 = vmatpush1.bf16.msra.mxu0 0
        %1591 = vmatprep.subr.bf16.mxu0 0
        %1592 = vmatpush1.bf16.msra.mxu0 0
        %1593 = vmatprep.subr.bf16.mxu0 0
        %1594 = vmatpush1.bf16.msra.mxu0 0
        %1595 = vmatprep.subr.bf16.mxu0 0
        %1596 = vmatpush1.bf16.msra.mxu0 0
        %1597 = vmatprep.subr.bf16.mxu0 0
        %1598 = vmatpush1.bf16.msra.mxu0 0
        %1599 = vmatprep.subr.bf16.mxu0 0
        %1600 = vmatpush1.bf16.msra.mxu0 0
        %1601 = vmatprep.subr.bf16.mxu0 0
        %1602 = vmatpush1.bf16.msra.mxu0 0
        %1603 = vmatprep.subr.bf16.mxu0 0
        %1604 = vmatpush1.bf16.msra.mxu0 0
        %1605 = vmatprep.subr.bf16.mxu0 0
        %1606 = vmatpush1.bf16.msra.mxu0 0
        %1607 = vmatprep.subr.bf16.mxu0 0
        %1608 = vmatpush1.bf16.msra.mxu0 0
        %1609 = vmatprep.subr.bf16.mxu0 0
        %1610 = vmatpush1.bf16.msra.mxu0 0
        %1611 = vmatprep.subr.bf16.mxu0 0
        %1612 = vmatpush1.bf16.msra.mxu0 0
        %1613 = vmatprep.subr.bf16.mxu0 0
        %1614 = vmatpush1.bf16.msra.mxu0 0
        %1615 = vmatprep.mubr.bf16.mxu0 0
        %1616 = vmatmul.mubr.bf16.gmra.mrb[0].mxu0 %v1578
        %v1617 = vpop.f32.mrb[0].mxu0
        %v1618 = vadd.f32 0.0, %v1617
        %v1619 = vpop.f32.mrb[0].mxu0
        %v1620 = vpop.f32.mrb[0].mxu0
        %v1621 = vpop.f32.mrb[0].mxu0
        %1622 = vdwg.mxu0
        %v1623 = vpack.c.bf16 %v1618, %v1618
        %v1624 = vpack.c.bf16 %v1508, %v1507
        %1625 = vrot.lane.b32.xlu0 %v1511, 112
        %v1626 = vpop.permute.xlu0 %1625
        %1627 = vrot.lane.b32.xlu0 %v1511, 80
        %v1628 = vpop.permute.xlu0 %1627
        %v1630 = vsel %vm930, %v1626, 0
        %v1633 = vsel %vm930, %v1628, 0
        %1635 = vmatprep.subr.bf16.mxu0 0
        %1636 = vmatpush1.bf16.xpose.msra.mxu0 %v1633
        %1637 = vmatprep.subr.bf16.mxu0 0
        %1638 = vmatpush1.bf16.xpose.msra.mxu0 0
        %1639 = vmatprep.subr.bf16.mxu0 0
        %1640 = vmatpush1.bf16.xpose.msra.mxu0 0
        %1641 = vmatprep.subr.bf16.mxu0 0
        %1642 = vmatpush1.bf16.xpose.msra.mxu0 0
        %1643 = vmatprep.subr.bf16.mxu0 0
        %1644 = vmatpush1.bf16.xpose.msra.mxu0 0
        %1645 = vmatprep.subr.bf16.mxu0 0
        %1646 = vmatpush1.bf16.xpose.msra.mxu0 0
        %1647 = vmatprep.subr.bf16.mxu0 0
        %1648 = vmatpush1.bf16.xpose.msra.mxu0 0
        %1649 = vmatprep.subr.bf16.mxu0 0
        %1650 = vmatpush1.bf16.xpose.msra.mxu0 0
        %1651 = vmatprep.subr.bf16.mxu0 0
        %1652 = vmatpush1.bf16.xpose.msra.mxu0 0
        %1653 = vmatprep.subr.bf16.mxu0 0
        %1654 = vmatpush1.bf16.xpose.msra.mxu0 0
        %1655 = vmatprep.subr.bf16.mxu0 0
        %1656 = vmatpush1.bf16.xpose.msra.mxu0 0
        %1657 = vmatprep.subr.bf16.mxu0 0
        %1658 = vmatpush1.bf16.xpose.msra.mxu0 0
        %1659 = vmatprep.subr.bf16.mxu0 0
        %1660 = vmatpush1.bf16.xpose.msra.mxu0 0
        %1661 = vmatprep.subr.bf16.mxu0 0
        %1662 = vmatpush1.bf16.xpose.msra.mxu0 0
        %1663 = vmatprep.subr.bf16.mxu0 0
        %1664 = vmatpush1.bf16.xpose.msra.mxu0 0
        %1665 = vmatprep.subr.bf16.mxu0 0
        %1666 = vmatpush1.bf16.xpose.msra.mxu0 0
        %1667 = vmatprep.mubr.bf16.mxu0 0
        %1668 = vmatmul.mubr.bf16.gmra.mrb[0].mxu0 %v1630
        %v1669 = vpop.f32.mrb[0].mxu0
        %v1670 = vadd.f32 0.0, %v1669
        %v1671 = vpop.f32.mrb[0].mxu0
        %v1672 = vpop.f32.mrb[0].mxu0
        %v1673 = vpop.f32.mrb[0].mxu0
        %1674 = vdwg.mxu0
        %v1675 = vmul.f32 %v1670, 0.25
        %v1676 = vadd.f32 %v1675, %v982
        %v1677 = vsel %vm985, %v1676, -inf
        %1678 = vmax.xlane.f32.xlu0 %v1677
        %v1679 = vpop.xlane.xlu0 %1678
        %v1680 = vsub.f32 %v1676, %v1679
        %v1681 = vmul.f32 %v1680, 1.442695
        %v1682 = vpow.pop %v1681
        %v1683 = vsel %vm985, %v1682, 0.0
        %1684 = vadd.xlane.f32.xlu0 %v1683
        %v1685 = vpop.xlane.xlu0 %1684
        %v1686 = vrcp.pop %v1685
        %v1687 = vmul.f32 %v1682, %v1686
        %v1688 = vpack.c.bf16 %v1687, %v1687
        %1689 = vrot.lane.b32.xlu0 %v1511, 48
        %v1690 = vpop.permute.xlu0 %1689
        %v1692 = vsel %vm985, %v1688, 0
        %v1695 = vsel %vm1003, %v1690, 0
        %1697 = vmatprep.subr.bf16.mxu0 0
        %1698 = vmatpush1.bf16.msra.mxu0 %v1695
        %1699 = vmatprep.subr.bf16.mxu0 0
        %1700 = vmatpush1.bf16.msra.mxu0 0
        %1701 = vmatprep.subr.bf16.mxu0 0
        %1702 = vmatpush1.bf16.msra.mxu0 0
        %1703 = vmatprep.subr.bf16.mxu0 0
        %1704 = vmatpush1.bf16.msra.mxu0 0
        %1705 = vmatprep.subr.bf16.mxu0 0
        %1706 = vmatpush1.bf16.msra.mxu0 0
        %1707 = vmatprep.subr.bf16.mxu0 0
        %1708 = vmatpush1.bf16.msra.mxu0 0
        %1709 = vmatprep.subr.bf16.mxu0 0
        %1710 = vmatpush1.bf16.msra.mxu0 0
        %1711 = vmatprep.subr.bf16.mxu0 0
        %1712 = vmatpush1.bf16.msra.mxu0 0
        %1713 = vmatprep.subr.bf16.mxu0 0
        %1714 = vmatpush1.bf16.msra.mxu0 0
        %1715 = vmatprep.subr.bf16.mxu0 0
        %1716 = vmatpush1.bf16.msra.mxu0 0
        %1717 = vmatprep.subr.bf16.mxu0 0
        %1718 = vmatpush1.bf16.msra.mxu0 0
        %1719 = vmatprep.subr.bf16.mxu0 0
        %1720 = vmatpush1.bf16.msra.mxu0 0
        %1721 = vmatprep.subr.bf16.mxu0 0
        %1722 = vmatpush1.bf16.msra.mxu0 0
        %1723 = vmatprep.subr.bf16.mxu0 0
        %1724 = vmatpush1.bf16.msra.mxu0 0
        %1725 = vmatprep.subr.bf16.mxu0 0
        %1726 = vmatpush1.bf16.msra.mxu0 0
        %1727 = vmatprep.subr.bf16.mxu0 0
        %1728 = vmatpush1.bf16.msra.mxu0 0
        %1729 = vmatprep.mubr.bf16.mxu0 0
        %1730 = vmatmul.mubr.bf16.gmra.mrb[0].mxu0 %v1692
        %v1731 = vpop.f32.mrb[0].mxu0
        %v1732 = vadd.f32 0.0, %v1731
        %v1733 = vpop.f32.mrb[0].mxu0
        %v1734 = vpop.f32.mrb[0].mxu0
        %v1735 = vpop.f32.mrb[0].mxu0
        %1736 = vdwg.mxu0
        %v1737 = vpack.c.bf16 %v1732, %v1732
        %v1738 = vpack.c.bf16 %v1510, %v1509
        %v1740 = vsel %vm930, %v1737, 0
        %1742 = vmatprep.subr.bf16.mxu0 0
        %1743 = vmatpush1.bf16.msra.mxu0 %v1738
        %1744 = vmatprep.subr.bf16.mxu0 0
        %1745 = vmatpush1.bf16.msra.mxu0 0
        %1746 = vmatprep.subr.bf16.mxu0 0
        %1747 = vmatpush1.bf16.msra.mxu0 0
        %1748 = vmatprep.subr.bf16.mxu0 0
        %1749 = vmatpush1.bf16.msra.mxu0 0
        %1750 = vmatprep.subr.bf16.mxu0 0
        %1751 = vmatpush1.bf16.msra.mxu0 0
        %1752 = vmatprep.subr.bf16.mxu0 0
        %1753 = vmatpush1.bf16.msra.mxu0 0
        %1754 = vmatprep.subr.bf16.mxu0 0
        %1755 = vmatpush1.bf16.msra.mxu0 0
        %1756 = vmatprep.subr.bf16.mxu0 0
        %1757 = vmatpush1.bf16.msra.mxu0 0
        %1758 = vmatprep.subr.bf16.mxu0 0
        %1759 = vmatpush1.bf16.msra.mxu0 0
        %1760 = vmatprep.subr.bf16.mxu0 0
        %1761 = vmatpush1.bf16.msra.mxu0 0
        %1762 = vmatprep.subr.bf16.mxu0 0
        %1763 = vmatpush1.bf16.msra.mxu0 0
        %1764 = vmatprep.subr.bf16.mxu0 0
        %1765 = vmatpush1.bf16.msra.mxu0 0
        %1766 = vmatprep.subr.bf16.mxu0 0
        %1767 = vmatpush1.bf16.msra.mxu0 0
        %1768 = vmatprep.subr.bf16.mxu0 0
        %1769 = vmatpush1.bf16.msra.mxu0 0
        %1770 = vmatprep.subr.bf16.mxu0 0
        %1771 = vmatpush1.bf16.msra.mxu0 0
        %1772 = vmatprep.subr.bf16.mxu0 0
        %1773 = vmatpush1.bf16.msra.mxu0 0
        %1774 = vmatprep.mubr.bf16.mxu0 0
        %1775 = vmatmul.mubr.bf16.gmra.mrb[0].mxu0 %v1740
        %v1776 = vpop.f32.mrb[0].mxu0
        %v1777 = vadd.f32 0.0, %v1776
        %v1778 = vpop.f32.mrb[0].mxu0
        %v1779 = vpop.f32.mrb[0].mxu0
        %v1780 = vpop.f32.mrb[0].mxu0
        %1781 = vdwg.mxu0
        %v1783 = vsel %vm930, %v1623, 0
        %1785 = vmatprep.subr.bf16.mxu0 0
        %1786 = vmatpush1.bf16.msra.mxu0 %v1624
        %1787 = vmatprep.subr.bf16.mxu0 0
        %1788 = vmatpush1.bf16.msra.mxu0 0
        %1789 = vmatprep.subr.bf16.mxu0 0
        %1790 = vmatpush1.bf16.msra.mxu0 0
        %1791 = vmatprep.subr.bf16.mxu0 0
        %1792 = vmatpush1.bf16.msra.mxu0 0
        %1793 = vmatprep.subr.bf16.mxu0 0
        %1794 = vmatpush1.bf16.msra.mxu0 0
        %1795 = vmatprep.subr.bf16.mxu0 0
        %1796 = vmatpush1.bf16.msra.mxu0 0
        %1797 = vmatprep.subr.bf16.mxu0 0
        %1798 = vmatpush1.bf16.msra.mxu0 0
        %1799 = vmatprep.subr.bf16.mxu0 0
        %1800 = vmatpush1.bf16.msra.mxu0 0
        %1801 = vmatprep.subr.bf16.mxu0 0
        %1802 = vmatpush1.bf16.msra.mxu0 0
        %1803 = vmatprep.subr.bf16.mxu0 0
        %1804 = vmatpush1.bf16.msra.mxu0 0
        %1805 = vmatprep.subr.bf16.mxu0 0
        %1806 = vmatpush1.bf16.msra.mxu0 0
        %1807 = vmatprep.subr.bf16.mxu0 0
        %1808 = vmatpush1.bf16.msra.mxu0 0
        %1809 = vmatprep.subr.bf16.mxu0 0
        %1810 = vmatpush1.bf16.msra.mxu0 0
        %1811 = vmatprep.subr.bf16.mxu0 0
        %1812 = vmatpush1.bf16.msra.mxu0 0
        %1813 = vmatprep.subr.bf16.mxu0 0
        %1814 = vmatpush1.bf16.msra.mxu0 0
        %1815 = vmatprep.subr.bf16.mxu0 0
        %1816 = vmatpush1.bf16.msra.mxu0 0
        %1817 = vmatprep.mubr.bf16.mxu0 0
        %1818 = vmatmul.mubr.bf16.gmra.mrb[0].mxu0 %v1783
        %v1819 = vpop.f32.mrb[0].mxu0
        %v1820 = vadd.f32 %v1777, %v1819
        %v1821 = vpop.f32.mrb[0].mxu0
        %v1822 = vpop.f32.mrb[0].mxu0
        %v1823 = vpop.f32.mrb[0].mxu0
        %1824 = vdwg.mxu0
        %s1825 = scalar_lea.vmem [#allocation11], 1
        %v1826 = vld [vmem:[%s1825] sm:$0x1]
        %v1828 = vlaneseq
        %v1829 = vshrl.u32 %v1828, 7
        %v1830 = vsub.s32 0, %v1829
        %v1831 = vrot.slane %v1826, %v1830
        %v1833 = vadd.f32 %v1820, %v1831
        %v1834 = vadd.f32 %v1833, %v1446
        %s1835 = scalar_lea.vmem [#allocation13], 1
        %v1836 = vld [vmem:[%s1835] sm:$0x1]
        %s1837 = scalar_lea.vmem [#allocation14], 1
        %v1838 = vld [vmem:[%s1837] sm:$0x1]
        %v1839 = vsel %vm835, %v1834, 0.0
        %1840 = vadd.xlane.f32.xlu0 %v1839
        %v1841 = vpop.xlane.xlu0 %1840
        %v1842 = vmul.f32 %v1841, %v839
        %v1843 = vsub.f32 %v1834, %v1842
        %v1844 = vmul.f32 %v1843, %v1843
        %v1845 = vsel %vm835, %v1844, 0.0
        %1846 = vadd.xlane.f32.xlu0 %v1845
        %v1847 = vpop.xlane.xlu0 %1846
        %v1848 = vmul.f32 %v1847, %v839
        %v1849 = vadd.f32 %v1848, 1e-12
        %v1850 = vrsqrt.pop %v1849
        %v1851 = vmul.f32 %v1843, %v1850
        %v1853 = vlaneseq
        %v1854 = vshrl.u32 %v1853, 7
        %v1855 = vsub.s32 0, %v1854
        %v1856 = vrot.slane %v1836, %v1855
        %v1858 = vmul.f32 %v1851, %v1856
        %v1860 = vlaneseq
        %v1861 = vshrl.u32 %v1860, 7
        %v1862 = vsub.s32 0, %v1861
        %v1863 = vrot.slane %v1838, %v1862
        %v1865 = vadd.f32 %v1858, %v1863
        %s1866 = scalar_lea.vmem %s10, 32
        %v1867 = vld [vmem:[%s1866] sm:$0xff]
        %v1868 = vld [vmem:[%s1866 + $0x8] sm:$0xff]
        %v1869 = vld [vmem:[%s1866 + $0x10] sm:$0xff]
        %v1870 = vld [vmem:[%s1866 + $0x18] sm:$0xff]
        %v1871 = vpack.c.bf16 %v1865, %v1865
        %v1872 = vpack.c.bf16 %v1868, %v1867
        %v1873 = vpack.c.bf16 %v1870, %v1869
        %s1874 = scalar_lea.vmem [#allocation16], 1
        %v1875 = vld [vmem:[%s1874] sm:$0x1]
        %v1877 = vlaneseq
        %v1878 = vshrl.u32 %v1877, 7
        %v1879 = vsub.s32 0, %v1878
        %v1880 = vrot.slane %v1875, %v1879
        %v1883 = vsel %vm835, %v1871, 0
        %1885 = vmatprep.subr.bf16.mxu0 0
        %1886 = vmatpush1.bf16.msra.mxu0 %v1872
        %1887 = vmatprep.subr.bf16.mxu0 0
        %1888 = vmatpush1.bf16.msra.mxu0 %v1873
        %1889 = vmatprep.subr.bf16.mxu0 0
        %1890 = vmatpush1.bf16.msra.mxu0 0
        %1891 = vmatprep.subr.bf16.mxu0 0
        %1892 = vmatpush1.bf16.msra.mxu0 0
        %1893 = vmatprep.subr.bf16.mxu0 0
        %1894 = vmatpush1.bf16.msra.mxu0 0
        %1895 = vmatprep.subr.bf16.mxu0 0
        %1896 = vmatpush1.bf16.msra.mxu0 0
        %1897 = vmatprep.subr.bf16.mxu0 0
        %1898 = vmatpush1.bf16.msra.mxu0 0
        %1899 = vmatprep.subr.bf16.mxu0 0
        %1900 = vmatpush1.bf16.msra.mxu0 0
        %1901 = vmatprep.subr.bf16.mxu0 0
        %1902 = vmatpush1.bf16.msra.mxu0 0
        %1903 = vmatprep.subr.bf16.mxu0 0
        %1904 = vmatpush1.bf16.msra.mxu0 0
        %1905 = vmatprep.subr.bf16.mxu0 0
        %1906 = vmatpush1.bf16.msra.mxu0 0
        %1907 = vmatprep.subr.bf16.mxu0 0
        %1908 = vmatpush1.bf16.msra.mxu0 0
        %1909 = vmatprep.subr.bf16.mxu0 0
        %1910 = vmatpush1.bf16.msra.mxu0 0
        %1911 = vmatprep.subr.bf16.mxu0 0
        %1912 = vmatpush1.bf16.msra.mxu0 0
        %1913 = vmatprep.subr.bf16.mxu0 0
        %1914 = vmatpush1.bf16.msra.mxu0 0
        %1915 = vmatprep.subr.bf16.mxu0 0
        %1916 = vmatpush1.bf16.msra.mxu0 0
        %1917 = vmatprep.mubr.bf16.mxu0 0
        %1918 = vmatmul.mubr.bf16.gmra.mrb[0].mxu0 %v1883
        %v1919 = vpop.f32.mrb[0].mxu0
        %v1920 = vadd.f32 %v1880, %v1919
        %v1921 = vpop.f32.mrb[0].mxu0
        %v1922 = vpop.f32.mrb[0].mxu0
        %v1923 = vpop.f32.mrb[0].mxu0
        %1924 = vdwg.mxu0
        %v1925 = vmul.f32 %v1920, 0.5
        %v1926 = vmul.f32 %v1920, 0.044715
        %v1927 = vmul.f32 %v1926, %v1920
        %v1928 = vmul.f32 %v1927, %v1920
        %v1929 = vadd.f32 %v1920, %v1928
        %v1930 = vmul.f32 %v1929, 0.7978846
        %v1931 = vtanh.pop %v1930
        %v1932 = vadd.f32 %v1931, 1.0
        %v1933 = vmul.f32 %v1925, %v1932
        %s1934 = scalar_lea.vmem %s12, 64
        %v1935 = vld [vmem:[%s1934] sm:$0xff]
        %v1936 = vld [vmem:[%s1934 + $0x8] sm:$0xff]
        %v1937 = vld [vmem:[%s1934 + $0x10] sm:$0xff]
        %v1938 = vld [vmem:[%s1934 + $0x18] sm:$0xff]
        %v1939 = vld [vmem:[%s1934 + $0x20] sm:$0xff]
        %v1940 = vld [vmem:[%s1934 + $0x28] sm:$0xff]
        %v1941 = vld [vmem:[%s1934 + $0x30] sm:$0xff]
        %v1942 = vld [vmem:[%s1934 + $0x38] sm:$0xff]
        %v1943 = vpack.c.bf16 %v1933, %v1933
        %v1944 = vpack.c.bf16 %v1936, %v1935
        %v1945 = vpack.c.bf16 %v1938, %v1937
        %v1946 = vpack.c.bf16 %v1940, %v1939
        %v1947 = vpack.c.bf16 %v1942, %v1941
        %s1948 = scalar_lea.vmem [#allocation17], 1
        %v1949 = vld [vmem:[%s1948] sm:$0x1]
        %v1951 = vlaneseq
        %v1952 = vshrl.u32 %v1951, 7
        %v1953 = vsub.s32 0, %v1952
        %v1954 = vrot.slane %v1949, %v1953
        %v1957 = vsel %vm1373, %v1943, 0
        %1959 = vmatprep.subr.bf16.mxu0 0
        %1960 = vmatpush1.bf16.msra.mxu0 %v1944
        %1961 = vmatprep.subr.bf16.mxu0 0
        %1962 = vmatpush1.bf16.msra.mxu0 %v1945
        %1963 = vmatprep.subr.bf16.mxu0 0
        %1964 = vmatpush1.bf16.msra.mxu0 %v1946
        %1965 = vmatprep.subr.bf16.mxu0 0
        %1966 = vmatpush1.bf16.msra.mxu0 %v1947
        %1967 = vmatprep.subr.bf16.mxu0 0
        %1968 = vmatpush1.bf16.msra.mxu0 0
        %1969 = vmatprep.subr.bf16.mxu0 0
        %1970 = vmatpush1.bf16.msra.mxu0 0
        %1971 = vmatprep.subr.bf16.mxu0 0
        %1972 = vmatpush1.bf16.msra.mxu0 0
        %1973 = vmatprep.subr.bf16.mxu0 0
        %1974 = vmatpush1.bf16.msra.mxu0 0
        %1975 = vmatprep.subr.bf16.mxu0 0
        %1976 = vmatpush1.bf16.msra.mxu0 0
        %1977 = vmatprep.subr.bf16.mxu0 0
        %1978 = vmatpush1.bf16.msra.mxu0 0
        %1979 = vmatprep.subr.bf16.mxu0 0
        %1980 = vmatpush1.bf16.msra.mxu0 0
        %1981 = vmatprep.subr.bf16.mxu0 0
        %1982 = vmatpush1.bf16.msra.mxu0 0
        %1983 = vmatprep.subr.bf16.mxu0 0
        %1984 = vmatpush1.bf16.msra.mxu0 0
        %1985 = vmatprep.subr.bf16.mxu0 0
        %1986 = vmatpush1.bf16.msra.mxu0 0
        %1987 = vmatprep.subr.bf16.mxu0 0
        %1988 = vmatpush1.bf16.msra.mxu0 0
        %1989 = vmatprep.subr.bf16.mxu0 0
        %1990 = vmatpush1.bf16.msra.mxu0 0
        %1991 = vmatprep.mubr.bf16.mxu0 0
        %1992 = vmatmul.mubr.bf16.gmra.mrb[0].mxu0 %v1957
        %v1993 = vpop.f32.mrb[0].mxu0
        %v1994 = vadd.f32 %v1954, %v1993
        %v1995 = vpop.f32.mrb[0].mxu0
        %v1996 = vpop.f32.mrb[0].mxu0
        %v1997 = vpop.f32.mrb[0].mxu0
        %1998 = vdwg.mxu0
        %v1999 = vadd.f32 %v1994, %v1865
        %s2000 = scalar_lea.vmem [#allocation19], 1
        %v2001 = vld [vmem:[%s2000] sm:$0x1]
        %s2002 = scalar_lea.vmem [#allocation20], 1
        %v2003 = vld [vmem:[%s2002] sm:$0x1]
        %v2004 = vsel %vm835, %v1999, 0.0
        %2005 = vadd.xlane.f32.xlu0 %v2004
        %v2006 = vpop.xlane.xlu0 %2005
        %v2007 = vmul.f32 %v2006, %v839
        %v2008 = vsub.f32 %v1999, %v2007
        %v2009 = vmul.f32 %v2008, %v2008
        %v2010 = vsel %vm835, %v2009, 0.0
        %2011 = vadd.xlane.f32.xlu0 %v2010
        %v2012 = vpop.xlane.xlu0 %2011
        %v2013 = vmul.f32 %v2012, %v839
        %v2014 = vadd.f32 %v2013, 1e-12
        %v2015 = vrsqrt.pop %v2014
        %v2016 = vmul.f32 %v2008, %v2015
        %v2018 = vlaneseq
        %v2019 = vshrl.u32 %v2018, 7
        %v2020 = vsub.s32 0, %v2019
        %v2021 = vrot.slane %v2001, %v2020
        %v2023 = vmul.f32 %v2016, %v2021
        %v2025 = vlaneseq
        %v2026 = vshrl.u32 %v2025, 7
        %v2027 = vsub.s32 0, %v2026
        %v2028 = vrot.slane %v2003, %v2027
        %v2030 = vadd.f32 %v2023, %v2028
        %v2031 = vld [vmem:[%s16] sm:$0xff]
        %v2032 = vld [vmem:[%s16 + $0x8] sm:$0xff]
        %v2033 = vld [vmem:[%s16 + $0x10] sm:$0xff]
        %v2034 = vld [vmem:[%s16 + $0x18] sm:$0xff]
        %v2035 = vpack.c.bf16 %v2030, %v2030
        %v2036 = vpack.c.bf16 %v2032, %v2031
        %v2037 = vpack.c.bf16 %v2034, %v2033
        %v2038 = vld [vmem:[#allocation22] sm:$0x1]
        %v2040 = vsel %vm835, %v2035, 0
        %2042 = vmatprep.subr.bf16.mxu0 0
        %2043 = vmatpush1.bf16.msra.mxu0 %v2036
        %2044 = vmatprep.subr.bf16.mxu0 0
        %2045 = vmatpush1.bf16.msra.mxu0 %v2037
        %2046 = vmatprep.subr.bf16.mxu0 0
        %2047 = vmatpush1.bf16.msra.mxu0 0
        %2048 = vmatprep.subr.bf16.mxu0 0
        %2049 = vmatpush1.bf16.msra.mxu0 0
        %2050 = vmatprep.subr.bf16.mxu0 0
        %2051 = vmatpush1.bf16.msra.mxu0 0
        %2052 = vmatprep.subr.bf16.mxu0 0
        %2053 = vmatpush1.bf16.msra.mxu0 0
        %2054 = vmatprep.subr.bf16.mxu0 0
        %2055 = vmatpush1.bf16.msra.mxu0 0
        %2056 = vmatprep.subr.bf16.mxu0 0
        %2057 = vmatpush1.bf16.msra.mxu0 0
        %2058 = vmatprep.subr.bf16.mxu0 0
        %2059 = vmatpush1.bf16.msra.mxu0 0
        %2060 = vmatprep.subr.bf16.mxu0 0
        %2061 = vmatpush1.bf16.msra.mxu0 0
        %2062 = vmatprep.subr.bf16.mxu0 0
        %2063 = vmatpush1.bf16.msra.mxu0 0
        %2064 = vmatprep.subr.bf16.mxu0 0
        %2065 = vmatpush1.bf16.msra.mxu0 0
        %2066 = vmatprep.subr.bf16.mxu0 0
        %2067 = vmatpush1.bf16.msra.mxu0 0
        %2068 = vmatprep.subr.bf16.mxu0 0
        %2069 = vmatpush1.bf16.msra.mxu0 0
        %2070 = vmatprep.subr.bf16.mxu0 0
        %2071 = vmatpush1.bf16.msra.mxu0 0
        %2072 = vmatprep.subr.bf16.mxu0 0
        %2073 = vmatpush1.bf16.msra.mxu0 0
        %2074 = vmatprep.mubr.bf16.mxu0 0
        %2075 = vmatmul.mubr.bf16.gmra.mrb[0].mxu0 %v2040
        %v2076 = vpop.f32.mrb[0].mxu0
        %v2077 = vadd.f32 %v2038, %v2076
        %v2078 = vpop.f32.mrb[0].mxu0
        %v2079 = vpop.f32.mrb[0].mxu0
        %v2080 = vpop.f32.mrb[0].mxu0
        %2081 = vdwg.mxu0
        %v2082 = vtanh.pop %v2077
        %v2083 = vld [vmem:[%s18] sm:$0xff]
        %v2084 = vld [vmem:[%s18 + $0x8] sm:$0xff]
        %v2085 = vld [vmem:[%s18 + $0x10] sm:$0xff]
        %v2086 = vld [vmem:[%s18 + $0x18] sm:$0xff]
        %v2087 = vpack.c.bf16 %v2082, %v2082
        %v2088 = vpack.c.bf16 %v2084, %v2083
        %v2089 = vpack.c.bf16 %v2086, %v2085
        %v2090 = vld [vmem:[%s19] sm:$0x1]
        %v2092 = vsel %vm835, %v2087, 0
        %2094 = vmatprep.subr.bf16.mxu0 0
        %2095 = vmatpush1.bf16.msra.mxu0 %v2088
        %2096 = vmatprep.subr.bf16.mxu0 0
        %2097 = vmatpush1.bf16.msra.mxu0 %v2089
        %2098 = vmatprep.subr.bf16.mxu0 0
        %2099 = vmatpush1.bf16.msra.mxu0 0
        %2100 = vmatprep.subr.bf16.mxu0 0
        %2101 = vmatpush1.bf16.msra.mxu0 0
        %2102 = vmatprep.subr.bf16.mxu0 0
        %2103 = vmatpush1.bf16.msra.mxu0 0
        %2104 = vmatprep.subr.bf16.mxu0 0
        %2105 = vmatpush1.bf16.msra.mxu0 0
        %2106 = vmatprep.subr.bf16.mxu0 0
        %2107 = vmatpush1.bf16.msra.mxu0 0
        %2108 = vmatprep.subr.bf16.mxu0 0
        %2109 = vmatpush1.bf16.msra.mxu0 0
        %2110 = vmatprep.subr.bf16.mxu0 0
        %2111 = vmatpush1.bf16.msra.mxu0 0
        %2112 = vmatprep.subr.bf16.mxu0 0
        %2113 = vmatpush1.bf16.msra.mxu0 0
        %2114 = vmatprep.subr.bf16.mxu0 0
        %2115 = vmatpush1.bf16.msra.mxu0 0
        %2116 = vmatprep.subr.bf16.mxu0 0
        %2117 = vmatpush1.bf16.msra.mxu0 0
        %2118 = vmatprep.subr.bf16.mxu0 0
        %2119 = vmatpush1.bf16.msra.mxu0 0
        %2120 = vmatprep.subr.bf16.mxu0 0
        %2121 = vmatpush1.bf16.msra.mxu0 0
        %2122 = vmatprep.subr.bf16.mxu0 0
        %2123 = vmatpush1.bf16.msra.mxu0 0
        %2124 = vmatprep.subr.bf16.mxu0 0
        %2125 = vmatpush1.bf16.msra.mxu0 0
        %2126 = vmatprep.mubr.bf16.mxu0 0
        %2127 = vmatmul.mubr.bf16.gmra.mrb[0].mxu0 %v2092
        %v2128 = vpop.f32.mrb[0].mxu0
        %v2129 = vadd.f32 %v2090, %v2128
        %v2130 = vpop.f32.mrb[0].mxu0
        %v2131 = vpop.f32.mrb[0].mxu0
        %v2132 = vpop.f32.mrb[0].mxu0
        %2133 = vdwg.mxu0
        %v2134 = vsub.f32 0.0, %v2129
        %v2135 = vmul.f32 %v2134, 1.442695
        %v2136 = vpow.pop %v2135
        %v2137 = vadd.f32 %v2136, 1.0
        %v2138 = vrcp.pop %v2137
        %v2139 = vmul.f32 1.0, %v2138
        %vm2140 = vcmask 40960
        %2141 = vst.msk [vmem:[%s830] sm:$0x1] %vm2140, %v2139
        %s2142 = sand.u32 %s483, 1
        %s2143 = scalar_lea.sflag [#allocation4], %s2142
        %s2144 = sand.u32 %s483, 1
        %s2145 = scalar_lea.vmem [#allocation23], %s2144
        // Predicated region
        $region153: #{tpu_custom_call.1} parent=99 // pred_check
          %p2146 = pneg %p493
        $region154: #{tpu_custom_call.1} parent=99 // pred_check_branch
          %2148 = sbr.rel (%p2146) target = $region156
        $region155: #{tpu_custom_call.1} parent=99 // pred_region
          %s2150 = ssub.s32 16, 16
          %2151 = vsyncadd %s2143, %s2150
          %s2152 = smul.addr %s45, 16
          %s2153 = scalar_lea.hbm %s20, %s2152
          %s2155 = sshll.u32 %s2145, 4
          %s2156 = int_to_ptr.vmem [resolvable:$true] %s2155
          %2158 = dma.vmem_to_hbm [thread:$0]  %s2156, 16, %s2153, %s2143
        $region156: #{tpu_custom_call.1} parent=99 // pred_fallthru
          _
      $region100: #{tpu_custom_call.1} parent=5 // pred_fallthru
        _
      %p2159 = scmp.le.s32.totalorder 2, %s40
      // Predicated region
      $region157: #{tpu_custom_call.1} parent=5 // pred_check
        %p2160 = pneg %p2159
      $region158: #{tpu_custom_call.1} parent=5 // pred_check_branch
        %2162 = sbr.rel (%p2160) target = $region160
      $region159: #{tpu_custom_call.1} parent=5 // pred_region
        %s2163 = ssub.s32 %s40, 2
        // Predicated region
        $region161: #{tpu_custom_call.1} parent=159 // pred_check
          %p2164 = pneg %p499
        $region162: #{tpu_custom_call.1} parent=159 // pred_check_branch
          %2166 = sbr.rel (%p2164) target = $region164
        $region163: #{tpu_custom_call.1} parent=159 // pred_region
          %s2167 = sand.u32 %s484, 1
          %s2168 = scalar_lea.sflag [#allocation4], %s2167
          %s2169 = sand.u32 %s484, 1
          %s2170 = scalar_lea.vmem [#allocation23], %s2169
          %2171 = dma.done %s2168, 16
        $region164: #{tpu_custom_call.1} parent=159 // pred_fallthru
          _
      $region160: #{tpu_custom_call.1} parent=5 // pred_fallthru
        _
    $region6: #{tpu_custom_call.1} parent=1 // loop_footer
      %s44 = sadd.s32 1, %s40
    $region7: #{tpu_custom_call.1} parent=1 // loop_footer_branch
      %39 = sbr.rel target = $region3
    $region8: #{tpu_custom_call.1} parent=1 // loop_exit
      _
    %2172 = vsyncpa [#allocation3], 1
    %s2173 = scalar_lea.sflag [#allocation3], 1
    %2174 = vsyncpa %s2173, 1
    %2175 = vsyncpa [#allocation6], 1
    %s2176 = scalar_lea.sflag [#allocation6], 1
    %2177 = vsyncpa %s2176, 1
    %2178 = vsyncpa [#allocation9], 1
    %2179 = vsyncpa [#allocation12], 1
    %2180 = vsyncpa [#allocation15], 1
    %2181 = vsyncpa [#allocation18], 1
    %2182 = vsyncpa [#allocation21], 1
    %2183 = vsyncpa [#allocation4], 1
    %s2184 = scalar_lea.sflag [#allocation4], 1
    %2185 = vsyncpa %s2184, 1

</llo_original>
